<compile_context>
chip_gen: v7x
topology: tpu7x:2x2x1
jax: 0.10.0
libtpu: 0.0.40
codegen_flags: <defaults>
</compile_context>

<pallas_src>
import jax
import jax.numpy as jnp
from jax import lax
from jax.experimental import pallas as pl
from jax.experimental.pallas import tpu as pltpu

B = 2
L = 34            # sequence length implied by Linear(1088 = 32 * 34)
C_IN = 97
C_MID = 72
C_OUT = 32
H1 = 256
H2 = 34
N_RES = 50
BN_EPS = 1e-5
ROW0 = 8          # first data row in the activation scratch (8-aligned so the
                  # per-layer center store is sublane-tile aligned); rows
                  # ROW0-1 and ROW0+L are the zero halo rows used by the conv.


# ----------------------------- fused kernel -------------------------------- #

def _fused_kernel(x_ref, gw_ref, gs_ref, gb_ref,
                  rw_ref, rs_ref, rb_ref,
                  ow_ref, os_ref, ob_ref,
                  w1_ref, b1_ref, w2_ref, b2_ref,
                  o_ref, act_ref):
    """Whole network for one batch element (grid=(B,), batch block = 1)."""
    lo = x_ref.shape[1] - 2            # = L

    def conv_bn_relu(src_ref, row0, w, s, b):
        # src_ref: (1, R, Cin) with zero halo rows at row0-1 and row0+lo.
        # w: (3, Cin, Cout) conv taps; s, b: (1, Cout) folded BN scale / bias.
        w = w.astype(jnp.float32)
        acc = jnp.zeros((src_ref.shape[0], lo, w.shape[2]), jnp.float32)
        for k in range(3):             # static unroll over the 3 conv taps
            r = row0 - 1 + k
            acc = acc + jnp.einsum('blc,cd->bld', src_ref[:, r:r + lo, :],
                                   w[k], preferred_element_type=jnp.float32)
        return jnp.maximum(acc * s + b, 0.0)

    # ---- get: Conv(97->72)+BN+ReLU -> halo-padded VMEM activation scratch --
    h = conv_bn_relu(x_ref, 1, gw_ref[...], gs_ref[...], gb_ref[...])
    act_ref[...] = jnp.zeros_like(act_ref)          # zero the halo rows once
    act_ref[:, ROW0:ROW0 + lo, :] = h

    # ---- 50 residual blocks: weights VMEM-resident, activation never leaves
    #      VMEM (no per-layer dispatch / HBM round trip). --------------------
    def res_body(layer, carry):
        y = conv_bn_relu(act_ref, ROW0, rw_ref[layer],
                         rs_ref[layer], rb_ref[layer])
        act_ref[:, ROW0:ROW0 + lo, :] = jnp.maximum(
            act_ref[:, ROW0:ROW0 + lo, :] + y, 0.0)
        return carry

    lax.fori_loop(0, rw_ref.shape[0], res_body, 0)

    # ---- out: Conv(72->32)+BN+ReLU -----------------------------------------
    y = conv_bn_relu(act_ref, ROW0, ow_ref[...], os_ref[...], ob_ref[...])
    # y: (1, L, C_OUT)

    # ---- Flatten + Linear(1088,256) + ReLU + Linear(256,34) ----------------
    # w1 is pre-permuted to (L, C_OUT, H1); the PyTorch channel-major flatten
    # becomes a sum of per-position (1,32)@(32,256) matmuls (no relayout).
    acc1 = jnp.zeros((y.shape[0], w1_ref.shape[2]), jnp.float32)
    for l in range(lo):                # static unroll: 34 small MXU dots
        acc1 = acc1 + jnp.dot(y[:, l, :], w1_ref[l].astype(jnp.float32),
                              preferred_element_type=jnp.float32)
    h1 = jnp.maximum(acc1 + b1_ref[...], 0.0)
    out = jnp.dot(h1, w2_ref[...],
                  preferred_element_type=jnp.float32) + b2_ref[...]
    o_ref[0] = out.astype(o_ref.dtype)


# ------------------------------ wrapper ------------------------------------ #

@jax.jit
def forward(params, x_ncl):
    """x_ncl: (B, 97, 34) float32 -- same NCL convention as the PyTorch model."""
    x = jnp.transpose(x_ncl, (0, 2, 1))              # (B, L, 97)
    x_pad = jnp.pad(x, ((0, 0), (1, 1), (0, 0)))     # single pad for whole net
    bsz = x_pad.shape[0]

    flops = (2 * bsz * L * 3 * (C_IN * C_MID + N_RES * C_MID * C_MID
                                + C_MID * C_OUT)
             + 2 * bsz * (C_OUT * L * H1 + H1 * H2))
    bytes_accessed = int(sum(int(v.size) * v.dtype.itemsize
                             for v in params.values())
                         + x_pad.size * 4 + bsz * H2 * 4)

    out = pl.pallas_call(
        _fused_kernel,
        out_shape=jax.ShapeDtypeStruct((bsz, 1, H2), jnp.float32),
        grid=(bsz,),
        in_specs=[
            pl.BlockSpec((1, L + 2, C_IN), lambda b: (b, 0, 0)),
            pl.BlockSpec((3, C_IN, C_MID), lambda b: (0, 0, 0)),
            pl.BlockSpec((1, C_MID), lambda b: (0, 0)),
            pl.BlockSpec((1, C_MID), lambda b: (0, 0)),
            pl.BlockSpec((N_RES, 3, C_MID, C_MID), lambda b: (0, 0, 0, 0)),
            pl.BlockSpec((N_RES, 1, C_MID), lambda b: (0, 0, 0)),
            pl.BlockSpec((N_RES, 1, C_MID), lambda b: (0, 0, 0)),
            pl.BlockSpec((3, C_MID, C_OUT), lambda b: (0, 0, 0)),
            pl.BlockSpec((1, C_OUT), lambda b: (0, 0)),
            pl.BlockSpec((1, C_OUT), lambda b: (0, 0)),
            pl.BlockSpec((L, C_OUT, H1), lambda b: (0, 0, 0)),
            pl.BlockSpec((1, H1), lambda b: (0, 0)),
            pl.BlockSpec((H1, H2), lambda b: (0, 0)),
            pl.BlockSpec((1, H2), lambda b: (0, 0)),
        ],
        out_specs=pl.BlockSpec((1, 1, H2), lambda b: (b, 0, 0)),
        scratch_shapes=[pltpu.VMEM((1, ROW0 + L + 1, C_MID), jnp.float32)],
        compiler_params=pltpu.CompilerParams(
            dimension_semantics=("parallel",),    # megacore batch split (v7x)
            vmem_limit_bytes=32 * 1024 * 1024),
        cost_estimate=pl.CostEstimate(flops=flops, transcendentals=0,
                                      bytes_accessed=bytes_accessed),
    )(x_pad,
      params['get_w'], params['get_s'], params['get_b'],
      params['res_w'], params['res_s'], params['res_b'],
      params['out_w'], params['out_s'], params['out_b'],
      params['w1'], params['b1'], params['w2'], params['b2'])
    return out[:, 0, :]


# ------------------------------ parameters --------------------------------- #

def _conv_w(key, cin, cout):
    return 0.02 * jax.random.normal(key, (3, cin, cout), jnp.float32)


def _bn_fold(key, c):
    kg, kb = jax.random.split(key)
    gamma = 1.0 + 0.1 * jax.random.normal(kg, (1, c), jnp.float32)
    beta = 0.1 * jax.random.normal(kb, (1, c), jnp.float32)
    # Eval-mode fold with fresh BN buffers (running_mean=0, running_var=1):
    #   scale = gamma / sqrt(var + eps),  bias = beta - scale * mean.
    scale = gamma / jnp.sqrt(1.0 + BN_EPS)
    bias = beta
    return scale, bias


def init_params(key):
    keys = jax.random.split(key, 8 + 2 * N_RES)
    p = {}
    p['get_w'] = _conv_w(keys[0], C_IN, C_MID)                  # (3, 97, 72)
    p['get_s'], p['get_b'] = _bn_fold(keys[1], C_MID)

    res_w, res_s, res_b = [], [], []
    for i in range(N_RES):
        res_w.append(_conv_w(keys[2 + 2 * i], C_MID, C_MID))
        s, b = _bn_fold(keys[3 + 2 * i], C_MID)
        res_s.append(s)
        res_b.append(b)
    # bf16 storage halves the HBM weight traffic (the post-fusion floor);
    # the kernel upcasts to f32 at use and accumulates in f32.
    p['res_w'] = jnp.stack(res_w).astype(jnp.bfloat16)          # (50, 3, 72, 72)
    p['res_s'] = jnp.stack(res_s)                               # (50, 1, 72)
    p['res_b'] = jnp.stack(res_b)                               # (50, 1, 72)

    p['out_w'] = _conv_w(keys[2 + 2 * N_RES], C_MID, C_OUT)     # (3, 72, 32)
    p['out_s'], p['out_b'] = _bn_fold(keys[3 + 2 * N_RES], C_OUT)

    k1, k2, k3, k4 = jax.random.split(keys[4 + 2 * N_RES], 4)
    # w1 generated in the PyTorch layout (row index = c * L + l, i.e. Flatten
    # of a (B, C, L) tensor) and pre-permuted to (L, C_OUT, H1) for the kernel.
    w1_torch = 0.05 * jax.random.normal(k1, (C_OUT * L, H1), jnp.float32)
    p['w1'] = (w1_torch.reshape(C_OUT, L, H1)
               .transpose(1, 0, 2).astype(jnp.bfloat16))        # (34, 32, 256)
    p['b1'] = 0.05 * jax.random.normal(k2, (1, H1), jnp.float32)
    p['w2'] = 0.05 * jax.random.normal(k3, (H1, H2), jnp.float32)
    p['b2'] = 0.05 * jax.random.normal(k4, (1, H2), jnp.float32)
    return p


# ------------------------- pure-JAX reference ------------------------------ #

def _reference_forward(params, x_ncl):
    """Non-Pallas reference with the same folded-BN / bf16-weight semantics."""
    hp = jax.lax.Precision.HIGHEST
    x = jnp.transpose(x_ncl, (0, 2, 1)).astype(jnp.float32)

    def conv_bn_relu(x, w, s, b):
        xp = jnp.pad(x, ((0, 0), (1, 1), (0, 0)))
        w = w.astype(jnp.float32)
        acc = sum(jnp.einsum('blc,cd->bld', xp[:, k:k + L, :], w[k],
                             precision=hp) for k in range(3))
        return jnp.maximum(acc * s + b, 0.0)

    h = conv_bn_relu(x, params['get_w'], params['get_s'], params['get_b'])
    for i in range(N_RES):
        y = conv_bn_relu(h, params['res_w'][i], params['res_s'][i],
                         params['res_b'][i])
        h = jnp.maximum(h + y, 0.0)
    y = conv_bn_relu(h, params['out_w'], params['out_s'], params['out_b'])
    flat = y.reshape(y.shape[0], L * C_OUT)          # (l, c)-ordered flatten
    w1 = params['w1'].astype(jnp.float32).reshape(L * C_OUT, H1)
    h1 = jnp.maximum(jnp.dot(flat, w1, precision=hp) + params['b1'], 0.0)
    return jnp.dot(h1, params['w2'], precision=hp) + params['b2']


if __name__ == "__main__":
    key = jax.random.PRNGKey(0)
    k_par, k_in = jax.random.split(key)
    params = init_params(k_par)
    x = jax.random.normal(k_in, (B, C_IN, L), jnp.float32)

    out = forward(params, x)
    out = jax.block_until_ready(out)
    assert out.shape == (B, H2), out.shape
    assert bool(jnp.all(jnp.isfinite(out)))

    ref = _reference_forward(params, x)
    assert jnp.allclose(out, ref, rtol=5e-2, atol=5e-2), (
        float(jnp.max(jnp.abs(out - ref))))
    print("KERNEL_OK")
</pallas_src>

<mosaic_0001>
module attributes {stable_mosaic.version = 11 : i64} {
  func.func @_fused_kernel(%arg0: i32, %arg1: memref<1x36x97xf32, #tpu.memory_space<vmem>>, %arg2: memref<3x97x72xf32, #tpu.memory_space<vmem>>, %arg3: memref<1x72xf32, #tpu.memory_space<vmem>>, %arg4: memref<1x72xf32, #tpu.memory_space<vmem>>, %arg5: memref<50x3x72x72xbf16, #tpu.memory_space<vmem>>, %arg6: memref<50x1x72xf32, #tpu.memory_space<vmem>>, %arg7: memref<50x1x72xf32, #tpu.memory_space<vmem>>, %arg8: memref<3x72x32xf32, #tpu.memory_space<vmem>>, %arg9: memref<1x32xf32, #tpu.memory_space<vmem>>, %arg10: memref<1x32xf32, #tpu.memory_space<vmem>>, %arg11: memref<34x32x256xbf16, #tpu.memory_space<vmem>>, %arg12: memref<1x256xf32, #tpu.memory_space<vmem>>, %arg13: memref<256x34xf32, #tpu.memory_space<vmem>>, %arg14: memref<1x34xf32, #tpu.memory_space<vmem>>, %arg15: memref<1x1x34xf32, #tpu.memory_space<vmem>>, %arg16: memref<1x43x72xf32, #tpu.memory_space<vmem>>) attributes {dimension_semantics = [#tpu.dimension_semantics<parallel>], iteration_bounds = array<i64: 2>, scalar_prefetch = 0 : i64, scratch_operands = 1 : i64, tpu.core_type = #tpu.core_type<tc>, window_params = [{transform_indices = @transform_0, window_bounds = array<i64: 1, 36, 97>}, {pipeline_mode = #tpu.pipeline_mode<synchronous>, transform_indices = @transform_1, window_bounds = array<i64: 3, 97, 72>}, {pipeline_mode = #tpu.pipeline_mode<synchronous>, transform_indices = @transform_2, window_bounds = array<i64: 1, 72>}, {pipeline_mode = #tpu.pipeline_mode<synchronous>, transform_indices = @transform_3, window_bounds = array<i64: 1, 72>}, {pipeline_mode = #tpu.pipeline_mode<synchronous>, transform_indices = @transform_4, window_bounds = array<i64: 50, 3, 72, 72>}, {pipeline_mode = #tpu.pipeline_mode<synchronous>, transform_indices = @transform_5, window_bounds = array<i64: 50, 1, 72>}, {pipeline_mode = #tpu.pipeline_mode<synchronous>, transform_indices = @transform_6, window_bounds = array<i64: 50, 1, 72>}, {pipeline_mode = #tpu.pipeline_mode<synchronous>, transform_indices = @transform_7, window_bounds = array<i64: 3, 72, 32>}, {pipeline_mode = #tpu.pipeline_mode<synchronous>, transform_indices = @transform_8, window_bounds = array<i64: 1, 32>}, {pipeline_mode = #tpu.pipeline_mode<synchronous>, transform_indices = @transform_9, window_bounds = array<i64: 1, 32>}, {pipeline_mode = #tpu.pipeline_mode<synchronous>, transform_indices = @transform_10, window_bounds = array<i64: 34, 32, 256>}, {pipeline_mode = #tpu.pipeline_mode<synchronous>, transform_indices = @transform_11, window_bounds = array<i64: 1, 256>}, {pipeline_mode = #tpu.pipeline_mode<synchronous>, transform_indices = @transform_12, window_bounds = array<i64: 256, 34>}, {pipeline_mode = #tpu.pipeline_mode<synchronous>, transform_indices = @transform_13, window_bounds = array<i64: 1, 34>}, {transform_indices = @transform_14, window_bounds = array<i64: 1, 1, 34>}]} {
    %c0 = arith.constant 0 : index
    %c0_0 = arith.constant 0 : index
    %c0_1 = arith.constant 0 : index
    %0 = vector.load %arg2[%c0, %c0_0, %c0_1] : memref<3x97x72xf32, #tpu.memory_space<vmem>>, vector<3x97x72xf32>
    %c0_2 = arith.constant 0 : index
    %c0_3 = arith.constant 0 : index
    %1 = vector.load %arg3[%c0_2, %c0_3] : memref<1x72xf32, #tpu.memory_space<vmem>>, vector<1x72xf32>
    %c0_4 = arith.constant 0 : index
    %c0_5 = arith.constant 0 : index
    %2 = vector.load %arg4[%c0_4, %c0_5] : memref<1x72xf32, #tpu.memory_space<vmem>>, vector<1x72xf32>
    %cst = arith.constant 0.000000e+00 : f32
    %3 = vector.broadcast %cst : f32 to vector<1x34x72xf32>
    %c0_6 = arith.constant 0 : index
    %c0_7 = arith.constant 0 : index
    %c0_8 = arith.constant 0 : index
    %4 = vector.load %arg1[%c0_6, %c0_7, %c0_8] : memref<1x36x97xf32, #tpu.memory_space<vmem>>, vector<1x34x97xf32>
    %5 = vector.extract_strided_slice %0 {offsets = [0, 0, 0], sizes = [1, 97, 72], strides = [1, 1, 1]} : vector<3x97x72xf32> to vector<1x97x72xf32>
    %6 = vector.shape_cast %5 : vector<1x97x72xf32> to vector<97x72xf32>
    "tpu.trace_start"() <{level = 10 : i32, message = "blc,cd->bld"}> : () -> ()
    %cst_9 = arith.constant dense<0.000000e+00> : vector<1x34x72xf32>
    %7 = tpu.matmul %4, %6, %cst_9 {dimension_numbers = #tpu.dot_dimension_numbers<[2], [0], [0, 1], [1], [0, 0, 0, 1, 1, 1], [], []>} : vector<1x34x97xf32>, vector<97x72xf32>, vector<1x34x72xf32> -> vector<1x34x72xf32>
    "tpu.trace_stop"() : () -> ()
    %8 = arith.addf %3, %7 : vector<1x34x72xf32>
    %c0_10 = arith.constant 0 : index
    %c1 = arith.constant 1 : index
    %c0_11 = arith.constant 0 : index
    %9 = vector.load %arg1[%c0_10, %c1, %c0_11] : memref<1x36x97xf32, #tpu.memory_space<vmem>>, vector<1x34x97xf32>
    %10 = vector.extract_strided_slice %0 {offsets = [1, 0, 0], sizes = [1, 97, 72], strides = [1, 1, 1]} : vector<3x97x72xf32> to vector<1x97x72xf32>
    %11 = vector.shape_cast %10 : vector<1x97x72xf32> to vector<97x72xf32>
    "tpu.trace_start"() <{level = 10 : i32, message = "blc,cd->bld"}> : () -> ()
    %cst_12 = arith.constant dense<0.000000e+00> : vector<1x34x72xf32>
    %12 = tpu.matmul %9, %11, %cst_12 {dimension_numbers = #tpu.dot_dimension_numbers<[2], [0], [0, 1], [1], [0, 0, 0, 1, 1, 1], [], []>} : vector<1x34x97xf32>, vector<97x72xf32>, vector<1x34x72xf32> -> vector<1x34x72xf32>
    "tpu.trace_stop"() : () -> ()
    %13 = arith.addf %8, %12 : vector<1x34x72xf32>
    %c0_13 = arith.constant 0 : index
    %c2 = arith.constant 2 : index
    %c0_14 = arith.constant 0 : index
    %14 = vector.load %arg1[%c0_13, %c2, %c0_14] : memref<1x36x97xf32, #tpu.memory_space<vmem>>, vector<1x34x97xf32>
    %15 = vector.extract_strided_slice %0 {offsets = [2, 0, 0], sizes = [1, 97, 72], strides = [1, 1, 1]} : vector<3x97x72xf32> to vector<1x97x72xf32>
    %16 = vector.shape_cast %15 : vector<1x97x72xf32> to vector<97x72xf32>
    "tpu.trace_start"() <{level = 10 : i32, message = "blc,cd->bld"}> : () -> ()
    %cst_15 = arith.constant dense<0.000000e+00> : vector<1x34x72xf32>
    %17 = tpu.matmul %14, %16, %cst_15 {dimension_numbers = #tpu.dot_dimension_numbers<[2], [0], [0, 1], [1], [0, 0, 0, 1, 1, 1], [], []>} : vector<1x34x97xf32>, vector<97x72xf32>, vector<1x34x72xf32> -> vector<1x34x72xf32>
    "tpu.trace_stop"() : () -> ()
    %18 = arith.addf %13, %17 : vector<1x34x72xf32>
    %19 = vector.shape_cast %1 : vector<1x72xf32> to vector<1x1x72xf32>
    %20 = vector.broadcast %19 : vector<1x1x72xf32> to vector<1x34x72xf32>
    %21 = arith.mulf %18, %20 : vector<1x34x72xf32>
    %22 = vector.shape_cast %2 : vector<1x72xf32> to vector<1x1x72xf32>
    %23 = vector.broadcast %22 : vector<1x1x72xf32> to vector<1x34x72xf32>
    %24 = arith.addf %21, %23 : vector<1x34x72xf32>
    %cst_16 = arith.constant 0.000000e+00 : f32
    %25 = vector.broadcast %cst_16 : f32 to vector<1x34x72xf32>
    %26 = arith.maximumf %24, %25 : vector<1x34x72xf32>
    %cst_17 = arith.constant 0.000000e+00 : f32
    %27 = vector.broadcast %cst_17 : f32 to vector<1x43x72xf32>
    %c0_18 = arith.constant 0 : index
    %c0_19 = arith.constant 0 : index
    %c0_20 = arith.constant 0 : index
    %28 = vector.load %arg16[%c0_18, %c0_19, %c0_20] : memref<1x43x72xf32, #tpu.memory_space<vmem>>, vector<1x43x72xf32>
    tpu.vector_store %arg16[%c0_18, %c0_19, %c0_20], %27 {strides = array<i32>} : memref<1x43x72xf32, #tpu.memory_space<vmem>>, vector<1x43x72xf32>,
    %c0_21 = arith.constant 0 : index
    %c8 = arith.constant 8 : index
    %c0_22 = arith.constant 0 : index
    %29 = vector.load %arg16[%c0_21, %c8, %c0_22] : memref<1x43x72xf32, #tpu.memory_space<vmem>>, vector<1x34x72xf32>
    tpu.vector_store %arg16[%c0_21, %c8, %c0_22], %26 {strides = array<i32>} : memref<1x43x72xf32, #tpu.memory_space<vmem>>, vector<1x34x72xf32>,
    %c0_i32 = arith.constant 0 : i32
    %c50_i32 = arith.constant 50 : i32
    %30 = arith.addi %c0_i32, %c50_i32 : i32
    %c1_i32 = arith.constant 1 : i32
    scf.for %arg17 = %c0_i32 to %30 step %c1_i32  : i32 {
      %308 = arith.index_cast %arg17 : i32 to index
      %c0_163 = arith.constant 0 : index
      %c0_164 = arith.constant 0 : index
      %c0_165 = arith.constant 0 : index
      %309 = vector.load %arg5[%308, %c0_163, %c0_164, %c0_165] : memref<50x3x72x72xbf16, #tpu.memory_space<vmem>>, vector<1x3x72x72xbf16>
      %310 = vector.shape_cast %309 : vector<1x3x72x72xbf16> to vector<3x72x72xbf16>
      %311 = arith.index_cast %arg17 : i32 to index
      %c0_166 = arith.constant 0 : index
      %c0_167 = arith.constant 0 : index
      %312 = vector.load %arg6[%311, %c0_166, %c0_167] : memref<50x1x72xf32, #tpu.memory_space<vmem>>, vector<1x1x72xf32>
      %313 = vector.shape_cast %312 : vector<1x1x72xf32> to vector<1x72xf32>
      %314 = arith.index_cast %arg17 : i32 to index
      %c0_168 = arith.constant 0 : index
      %c0_169 = arith.constant 0 : index
      %315 = vector.load %arg7[%314, %c0_168, %c0_169] : memref<50x1x72xf32, #tpu.memory_space<vmem>>, vector<1x1x72xf32>
      %316 = vector.shape_cast %315 : vector<1x1x72xf32> to vector<1x72xf32>
      %317 = arith.extf %310 : vector<3x72x72xbf16> to vector<3x72x72xf32>
      %cst_170 = arith.constant 0.000000e+00 : f32
      %318 = vector.broadcast %cst_170 : f32 to vector<1x34x72xf32>
      %c0_171 = arith.constant 0 : index
      %c7_172 = arith.constant 7 : index
      %c0_173 = arith.constant 0 : index
      %319 = vector.load %arg16[%c0_171, %c7_172, %c0_173] : memref<1x43x72xf32, #tpu.memory_space<vmem>>, vector<1x34x72xf32>
      %320 = vector.extract_strided_slice %317 {offsets = [0, 0, 0], sizes = [1, 72, 72], strides = [1, 1, 1]} : vector<3x72x72xf32> to vector<1x72x72xf32>
      %321 = vector.shape_cast %320 : vector<1x72x72xf32> to vector<72x72xf32>
      "tpu.trace_start"() <{level = 10 : i32, message = "blc,cd->bld"}> : () -> ()
      %cst_174 = arith.constant dense<0.000000e+00> : vector<1x34x72xf32>
      %322 = tpu.matmul %319, %321, %cst_174 {dimension_numbers = #tpu.dot_dimension_numbers<[2], [0], [0, 1], [1], [0, 0, 0, 1, 1, 1], [], []>} : vector<1x34x72xf32>, vector<72x72xf32>, vector<1x34x72xf32> -> vector<1x34x72xf32>
      "tpu.trace_stop"() : () -> ()
      %323 = arith.addf %318, %322 : vector<1x34x72xf32>
      %c0_175 = arith.constant 0 : index
      %c8_176 = arith.constant 8 : index
      %c0_177 = arith.constant 0 : index
      %324 = vector.load %arg16[%c0_175, %c8_176, %c0_177] : memref<1x43x72xf32, #tpu.memory_space<vmem>>, vector<1x34x72xf32>
      %325 = vector.extract_strided_slice %317 {offsets = [1, 0, 0], sizes = [1, 72, 72], strides = [1, 1, 1]} : vector<3x72x72xf32> to vector<1x72x72xf32>
      %326 = vector.shape_cast %325 : vector<1x72x72xf32> to vector<72x72xf32>
      "tpu.trace_start"() <{level = 10 : i32, message = "blc,cd->bld"}> : () -> ()
      %cst_178 = arith.constant dense<0.000000e+00> : vector<1x34x72xf32>
      %327 = tpu.matmul %324, %326, %cst_178 {dimension_numbers = #tpu.dot_dimension_numbers<[2], [0], [0, 1], [1], [0, 0, 0, 1, 1, 1], [], []>} : vector<1x34x72xf32>, vector<72x72xf32>, vector<1x34x72xf32> -> vector<1x34x72xf32>
      "tpu.trace_stop"() : () -> ()
      %328 = arith.addf %323, %327 : vector<1x34x72xf32>
      %c0_179 = arith.constant 0 : index
      %c9_180 = arith.constant 9 : index
      %c0_181 = arith.constant 0 : index
      %329 = vector.load %arg16[%c0_179, %c9_180, %c0_181] : memref<1x43x72xf32, #tpu.memory_space<vmem>>, vector<1x34x72xf32>
      %330 = vector.extract_strided_slice %317 {offsets = [2, 0, 0], sizes = [1, 72, 72], strides = [1, 1, 1]} : vector<3x72x72xf32> to vector<1x72x72xf32>
      %331 = vector.shape_cast %330 : vector<1x72x72xf32> to vector<72x72xf32>
      "tpu.trace_start"() <{level = 10 : i32, message = "blc,cd->bld"}> : () -> ()
      %cst_182 = arith.constant dense<0.000000e+00> : vector<1x34x72xf32>
      %332 = tpu.matmul %329, %331, %cst_182 {dimension_numbers = #tpu.dot_dimension_numbers<[2], [0], [0, 1], [1], [0, 0, 0, 1, 1, 1], [], []>} : vector<1x34x72xf32>, vector<72x72xf32>, vector<1x34x72xf32> -> vector<1x34x72xf32>
      "tpu.trace_stop"() : () -> ()
      %333 = arith.addf %328, %332 : vector<1x34x72xf32>
      %334 = vector.shape_cast %313 : vector<1x72xf32> to vector<1x1x72xf32>
      %335 = vector.broadcast %334 : vector<1x1x72xf32> to vector<1x34x72xf32>
      %336 = arith.mulf %333, %335 : vector<1x34x72xf32>
      %337 = vector.shape_cast %316 : vector<1x72xf32> to vector<1x1x72xf32>
      %338 = vector.broadcast %337 : vector<1x1x72xf32> to vector<1x34x72xf32>
      %339 = arith.addf %336, %338 : vector<1x34x72xf32>
      %cst_183 = arith.constant 0.000000e+00 : f32
      %340 = vector.broadcast %cst_183 : f32 to vector<1x34x72xf32>
      %341 = arith.maximumf %339, %340 : vector<1x34x72xf32>
      %c0_184 = arith.constant 0 : index
      %c8_185 = arith.constant 8 : index
      %c0_186 = arith.constant 0 : index
      %342 = vector.load %arg16[%c0_184, %c8_185, %c0_186] : memref<1x43x72xf32, #tpu.memory_space<vmem>>, vector<1x34x72xf32>
      %343 = arith.addf %342, %341 : vector<1x34x72xf32>
      %cst_187 = arith.constant 0.000000e+00 : f32
      %344 = vector.broadcast %cst_187 : f32 to vector<1x34x72xf32>
      %345 = arith.maximumf %343, %344 : vector<1x34x72xf32>
      %c0_188 = arith.constant 0 : index
      %c8_189 = arith.constant 8 : index
      %c0_190 = arith.constant 0 : index
      %346 = vector.load %arg16[%c0_188, %c8_189, %c0_190] : memref<1x43x72xf32, #tpu.memory_space<vmem>>, vector<1x34x72xf32>
      tpu.vector_store %arg16[%c0_188, %c8_189, %c0_190], %345 {strides = array<i32>} : memref<1x43x72xf32, #tpu.memory_space<vmem>>, vector<1x34x72xf32>,
    }
    %c50_i32_23 = arith.constant 50 : i32
    %c0_24 = arith.constant 0 : index
    %c0_25 = arith.constant 0 : index
    %c0_26 = arith.constant 0 : index
    %31 = vector.load %arg8[%c0_24, %c0_25, %c0_26] : memref<3x72x32xf32, #tpu.memory_space<vmem>>, vector<3x72x32xf32>
    %c0_27 = arith.constant 0 : index
    %c0_28 = arith.constant 0 : index
    %32 = vector.load %arg9[%c0_27, %c0_28] : memref<1x32xf32, #tpu.memory_space<vmem>>, vector<1x32xf32>
    %c0_29 = arith.constant 0 : index
    %c0_30 = arith.constant 0 : index
    %33 = vector.load %arg10[%c0_29, %c0_30] : memref<1x32xf32, #tpu.memory_space<vmem>>, vector<1x32xf32>
    %cst_31 = arith.constant 0.000000e+00 : f32
    %34 = vector.broadcast %cst_31 : f32 to vector<1x34x32xf32>
    %c0_32 = arith.constant 0 : index
    %c7 = arith.constant 7 : index
    %c0_33 = arith.constant 0 : index
    %35 = vector.load %arg16[%c0_32, %c7, %c0_33] : memref<1x43x72xf32, #tpu.memory_space<vmem>>, vector<1x34x72xf32>
    %36 = vector.extract_strided_slice %31 {offsets = [0, 0, 0], sizes = [1, 72, 32], strides = [1, 1, 1]} : vector<3x72x32xf32> to vector<1x72x32xf32>
    %37 = vector.shape_cast %36 : vector<1x72x32xf32> to vector<72x32xf32>
    "tpu.trace_start"() <{level = 10 : i32, message = "blc,cd->bld"}> : () -> ()
    %cst_34 = arith.constant dense<0.000000e+00> : vector<1x34x32xf32>
    %38 = tpu.matmul %35, %37, %cst_34 {dimension_numbers = #tpu.dot_dimension_numbers<[2], [0], [0, 1], [1], [0, 0, 0, 1, 1, 1], [], []>} : vector<1x34x72xf32>, vector<72x32xf32>, vector<1x34x32xf32> -> vector<1x34x32xf32>
    "tpu.trace_stop"() : () -> ()
    %39 = arith.addf %34, %38 : vector<1x34x32xf32>
    %c0_35 = arith.constant 0 : index
    %c8_36 = arith.constant 8 : index
    %c0_37 = arith.constant 0 : index
    %40 = vector.load %arg16[%c0_35, %c8_36, %c0_37] : memref<1x43x72xf32, #tpu.memory_space<vmem>>, vector<1x34x72xf32>
    %41 = vector.extract_strided_slice %31 {offsets = [1, 0, 0], sizes = [1, 72, 32], strides = [1, 1, 1]} : vector<3x72x32xf32> to vector<1x72x32xf32>
    %42 = vector.shape_cast %41 : vector<1x72x32xf32> to vector<72x32xf32>
    "tpu.trace_start"() <{level = 10 : i32, message = "blc,cd->bld"}> : () -> ()
    %cst_38 = arith.constant dense<0.000000e+00> : vector<1x34x32xf32>
    %43 = tpu.matmul %40, %42, %cst_38 {dimension_numbers = #tpu.dot_dimension_numbers<[2], [0], [0, 1], [1], [0, 0, 0, 1, 1, 1], [], []>} : vector<1x34x72xf32>, vector<72x32xf32>, vector<1x34x32xf32> -> vector<1x34x32xf32>
    "tpu.trace_stop"() : () -> ()
    %44 = arith.addf %39, %43 : vector<1x34x32xf32>
    %c0_39 = arith.constant 0 : index
    %c9 = arith.constant 9 : index
    %c0_40 = arith.constant 0 : index
    %45 = vector.load %arg16[%c0_39, %c9, %c0_40] : memref<1x43x72xf32, #tpu.memory_space<vmem>>, vector<1x34x72xf32>
    %46 = vector.extract_strided_slice %31 {offsets = [2, 0, 0], sizes = [1, 72, 32], strides = [1, 1, 1]} : vector<3x72x32xf32> to vector<1x72x32xf32>
    %47 = vector.shape_cast %46 : vector<1x72x32xf32> to vector<72x32xf32>
    "tpu.trace_start"() <{level = 10 : i32, message = "blc,cd->bld"}> : () -> ()
    %cst_41 = arith.constant dense<0.000000e+00> : vector<1x34x32xf32>
    %48 = tpu.matmul %45, %47, %cst_41 {dimension_numbers = #tpu.dot_dimension_numbers<[2], [0], [0, 1], [1], [0, 0, 0, 1, 1, 1], [], []>} : vector<1x34x72xf32>, vector<72x32xf32>, vector<1x34x32xf32> -> vector<1x34x32xf32>
    "tpu.trace_stop"() : () -> ()
    %49 = arith.addf %44, %48 : vector<1x34x32xf32>
    %50 = vector.shape_cast %32 : vector<1x32xf32> to vector<1x1x32xf32>
    %51 = vector.broadcast %50 : vector<1x1x32xf32> to vector<1x34x32xf32>
    %52 = arith.mulf %49, %51 : vector<1x34x32xf32>
    %53 = vector.shape_cast %33 : vector<1x32xf32> to vector<1x1x32xf32>
    %54 = vector.broadcast %53 : vector<1x1x32xf32> to vector<1x34x32xf32>
    %55 = arith.addf %52, %54 : vector<1x34x32xf32>
    %cst_42 = arith.constant 0.000000e+00 : f32
    %56 = vector.broadcast %cst_42 : f32 to vector<1x34x32xf32>
    %57 = arith.maximumf %55, %56 : vector<1x34x32xf32>
    %cst_43 = arith.constant 0.000000e+00 : f32
    %58 = vector.broadcast %cst_43 : f32 to vector<1x256xf32>
    %59 = vector.extract_strided_slice %57 {offsets = [0, 0, 0], sizes = [1, 1, 32], strides = [1, 1, 1]} : vector<1x34x32xf32> to vector<1x1x32xf32>
    %60 = vector.shape_cast %59 : vector<1x1x32xf32> to vector<1x32xf32>
    %c0_44 = arith.constant 0 : index
    %c0_45 = arith.constant 0 : index
    %c0_46 = arith.constant 0 : index
    %61 = vector.load %arg11[%c0_44, %c0_45, %c0_46] : memref<34x32x256xbf16, #tpu.memory_space<vmem>>, vector<1x32x256xbf16>
    %62 = vector.shape_cast %61 : vector<1x32x256xbf16> to vector<32x256xbf16>
    %63 = arith.extf %62 : vector<32x256xbf16> to vector<32x256xf32>
    %cst_47 = arith.constant dense<0.000000e+00> : vector<1x256xf32>
    %64 = tpu.matmul %60, %63, %cst_47 {dimension_numbers = #tpu.dot_dimension_numbers<[1], [0], [0], [1], [0, 0, 1, 1], [], []>} : vector<1x32xf32>, vector<32x256xf32>, vector<1x256xf32> -> vector<1x256xf32>
    %65 = arith.addf %58, %64 : vector<1x256xf32>
    %66 = vector.extract_strided_slice %57 {offsets = [0, 1, 0], sizes = [1, 1, 32], strides = [1, 1, 1]} : vector<1x34x32xf32> to vector<1x1x32xf32>
    %67 = vector.shape_cast %66 : vector<1x1x32xf32> to vector<1x32xf32>
    %c1_48 = arith.constant 1 : index
    %c0_49 = arith.constant 0 : index
    %c0_50 = arith.constant 0 : index
    %68 = vector.load %arg11[%c1_48, %c0_49, %c0_50] : memref<34x32x256xbf16, #tpu.memory_space<vmem>>, vector<1x32x256xbf16>
    %69 = vector.shape_cast %68 : vector<1x32x256xbf16> to vector<32x256xbf16>
    %70 = arith.extf %69 : vector<32x256xbf16> to vector<32x256xf32>
    %cst_51 = arith.constant dense<0.000000e+00> : vector<1x256xf32>
    %71 = tpu.matmul %67, %70, %cst_51 {dimension_numbers = #tpu.dot_dimension_numbers<[1], [0], [0], [1], [0, 0, 1, 1], [], []>} : vector<1x32xf32>, vector<32x256xf32>, vector<1x256xf32> -> vector<1x256xf32>
    %72 = arith.addf %65, %71 : vector<1x256xf32>
    %73 = vector.extract_strided_slice %57 {offsets = [0, 2, 0], sizes = [1, 1, 32], strides = [1, 1, 1]} : vector<1x34x32xf32> to vector<1x1x32xf32>
    %74 = vector.shape_cast %73 : vector<1x1x32xf32> to vector<1x32xf32>
    %c2_52 = arith.constant 2 : index
    %c0_53 = arith.constant 0 : index
    %c0_54 = arith.constant 0 : index
    %75 = vector.load %arg11[%c2_52, %c0_53, %c0_54] : memref<34x32x256xbf16, #tpu.memory_space<vmem>>, vector<1x32x256xbf16>
    %76 = vector.shape_cast %75 : vector<1x32x256xbf16> to vector<32x256xbf16>
    %77 = arith.extf %76 : vector<32x256xbf16> to vector<32x256xf32>
    %cst_55 = arith.constant dense<0.000000e+00> : vector<1x256xf32>
    %78 = tpu.matmul %74, %77, %cst_55 {dimension_numbers = #tpu.dot_dimension_numbers<[1], [0], [0], [1], [0, 0, 1, 1], [], []>} : vector<1x32xf32>, vector<32x256xf32>, vector<1x256xf32> -> vector<1x256xf32>
    %79 = arith.addf %72, %78 : vector<1x256xf32>
    %80 = vector.extract_strided_slice %57 {offsets = [0, 3, 0], sizes = [1, 1, 32], strides = [1, 1, 1]} : vector<1x34x32xf32> to vector<1x1x32xf32>
    %81 = vector.shape_cast %80 : vector<1x1x32xf32> to vector<1x32xf32>
    %c3 = arith.constant 3 : index
    %c0_56 = arith.constant 0 : index
    %c0_57 = arith.constant 0 : index
    %82 = vector.load %arg11[%c3, %c0_56, %c0_57] : memref<34x32x256xbf16, #tpu.memory_space<vmem>>, vector<1x32x256xbf16>
    %83 = vector.shape_cast %82 : vector<1x32x256xbf16> to vector<32x256xbf16>
    %84 = arith.extf %83 : vector<32x256xbf16> to vector<32x256xf32>
    %cst_58 = arith.constant dense<0.000000e+00> : vector<1x256xf32>
    %85 = tpu.matmul %81, %84, %cst_58 {dimension_numbers = #tpu.dot_dimension_numbers<[1], [0], [0], [1], [0, 0, 1, 1], [], []>} : vector<1x32xf32>, vector<32x256xf32>, vector<1x256xf32> -> vector<1x256xf32>
    %86 = arith.addf %79, %85 : vector<1x256xf32>
    %87 = vector.extract_strided_slice %57 {offsets = [0, 4, 0], sizes = [1, 1, 32], strides = [1, 1, 1]} : vector<1x34x32xf32> to vector<1x1x32xf32>
    %88 = vector.shape_cast %87 : vector<1x1x32xf32> to vector<1x32xf32>
    %c4 = arith.constant 4 : index
    %c0_59 = arith.constant 0 : index
    %c0_60 = arith.constant 0 : index
    %89 = vector.load %arg11[%c4, %c0_59, %c0_60] : memref<34x32x256xbf16, #tpu.memory_space<vmem>>, vector<1x32x256xbf16>
    %90 = vector.shape_cast %89 : vector<1x32x256xbf16> to vector<32x256xbf16>
    %91 = arith.extf %90 : vector<32x256xbf16> to vector<32x256xf32>
    %cst_61 = arith.constant dense<0.000000e+00> : vector<1x256xf32>
    %92 = tpu.matmul %88, %91, %cst_61 {dimension_numbers = #tpu.dot_dimension_numbers<[1], [0], [0], [1], [0, 0, 1, 1], [], []>} : vector<1x32xf32>, vector<32x256xf32>, vector<1x256xf32> -> vector<1x256xf32>
    %93 = arith.addf %86, %92 : vector<1x256xf32>
    %94 = vector.extract_strided_slice %57 {offsets = [0, 5, 0], sizes = [1, 1, 32], strides = [1, 1, 1]} : vector<1x34x32xf32> to vector<1x1x32xf32>
    %95 = vector.shape_cast %94 : vector<1x1x32xf32> to vector<1x32xf32>
    %c5 = arith.constant 5 : index
    %c0_62 = arith.constant 0 : index
    %c0_63 = arith.constant 0 : index
    %96 = vector.load %arg11[%c5, %c0_62, %c0_63] : memref<34x32x256xbf16, #tpu.memory_space<vmem>>, vector<1x32x256xbf16>
    %97 = vector.shape_cast %96 : vector<1x32x256xbf16> to vector<32x256xbf16>
    %98 = arith.extf %97 : vector<32x256xbf16> to vector<32x256xf32>
    %cst_64 = arith.constant dense<0.000000e+00> : vector<1x256xf32>
    %99 = tpu.matmul %95, %98, %cst_64 {dimension_numbers = #tpu.dot_dimension_numbers<[1], [0], [0], [1], [0, 0, 1, 1], [], []>} : vector<1x32xf32>, vector<32x256xf32>, vector<1x256xf32> -> vector<1x256xf32>
    %100 = arith.addf %93, %99 : vector<1x256xf32>
    %101 = vector.extract_strided_slice %57 {offsets = [0, 6, 0], sizes = [1, 1, 32], strides = [1, 1, 1]} : vector<1x34x32xf32> to vector<1x1x32xf32>
    %102 = vector.shape_cast %101 : vector<1x1x32xf32> to vector<1x32xf32>
    %c6 = arith.constant 6 : index
    %c0_65 = arith.constant 0 : index
    %c0_66 = arith.constant 0 : index
    %103 = vector.load %arg11[%c6, %c0_65, %c0_66] : memref<34x32x256xbf16, #tpu.memory_space<vmem>>, vector<1x32x256xbf16>
    %104 = vector.shape_cast %103 : vector<1x32x256xbf16> to vector<32x256xbf16>
    %105 = arith.extf %104 : vector<32x256xbf16> to vector<32x256xf32>
    %cst_67 = arith.constant dense<0.000000e+00> : vector<1x256xf32>
    %106 = tpu.matmul %102, %105, %cst_67 {dimension_numbers = #tpu.dot_dimension_numbers<[1], [0], [0], [1], [0, 0, 1, 1], [], []>} : vector<1x32xf32>, vector<32x256xf32>, vector<1x256xf32> -> vector<1x256xf32>
    %107 = arith.addf %100, %106 : vector<1x256xf32>
    %108 = vector.extract_strided_slice %57 {offsets = [0, 7, 0], sizes = [1, 1, 32], strides = [1, 1, 1]} : vector<1x34x32xf32> to vector<1x1x32xf32>
    %109 = vector.shape_cast %108 : vector<1x1x32xf32> to vector<1x32xf32>
    %c7_68 = arith.constant 7 : index
    %c0_69 = arith.constant 0 : index
    %c0_70 = arith.constant 0 : index
    %110 = vector.load %arg11[%c7_68, %c0_69, %c0_70] : memref<34x32x256xbf16, #tpu.memory_space<vmem>>, vector<1x32x256xbf16>
    %111 = vector.shape_cast %110 : vector<1x32x256xbf16> to vector<32x256xbf16>
    %112 = arith.extf %111 : vector<32x256xbf16> to vector<32x256xf32>
    %cst_71 = arith.constant dense<0.000000e+00> : vector<1x256xf32>
    %113 = tpu.matmul %109, %112, %cst_71 {dimension_numbers = #tpu.dot_dimension_numbers<[1], [0], [0], [1], [0, 0, 1, 1], [], []>} : vector<1x32xf32>, vector<32x256xf32>, vector<1x256xf32> -> vector<1x256xf32>
    %114 = arith.addf %107, %113 : vector<1x256xf32>
    %115 = vector.extract_strided_slice %57 {offsets = [0, 8, 0], sizes = [1, 1, 32], strides = [1, 1, 1]} : vector<1x34x32xf32> to vector<1x1x32xf32>
    %116 = vector.shape_cast %115 : vector<1x1x32xf32> to vector<1x32xf32>
    %c8_72 = arith.constant 8 : index
    %c0_73 = arith.constant 0 : index
    %c0_74 = arith.constant 0 : index
    %117 = vector.load %arg11[%c8_72, %c0_73, %c0_74] : memref<34x32x256xbf16, #tpu.memory_space<vmem>>, vector<1x32x256xbf16>
    %118 = vector.shape_cast %117 : vector<1x32x256xbf16> to vector<32x256xbf16>
    %119 = arith.extf %118 : vector<32x256xbf16> to vector<32x256xf32>
    %cst_75 = arith.constant dense<0.000000e+00> : vector<1x256xf32>
    %120 = tpu.matmul %116, %119, %cst_75 {dimension_numbers = #tpu.dot_dimension_numbers<[1], [0], [0], [1], [0, 0, 1, 1], [], []>} : vector<1x32xf32>, vector<32x256xf32>, vector<1x256xf32> -> vector<1x256xf32>
    %121 = arith.addf %114, %120 : vector<1x256xf32>
    %122 = vector.extract_strided_slice %57 {offsets = [0, 9, 0], sizes = [1, 1, 32], strides = [1, 1, 1]} : vector<1x34x32xf32> to vector<1x1x32xf32>
    %123 = vector.shape_cast %122 : vector<1x1x32xf32> to vector<1x32xf32>
    %c9_76 = arith.constant 9 : index
    %c0_77 = arith.constant 0 : index
    %c0_78 = arith.constant 0 : index
    %124 = vector.load %arg11[%c9_76, %c0_77, %c0_78] : memref<34x32x256xbf16, #tpu.memory_space<vmem>>, vector<1x32x256xbf16>
    %125 = vector.shape_cast %124 : vector<1x32x256xbf16> to vector<32x256xbf16>
    %126 = arith.extf %125 : vector<32x256xbf16> to vector<32x256xf32>
    %cst_79 = arith.constant dense<0.000000e+00> : vector<1x256xf32>
    %127 = tpu.matmul %123, %126, %cst_79 {dimension_numbers = #tpu.dot_dimension_numbers<[1], [0], [0], [1], [0, 0, 1, 1], [], []>} : vector<1x32xf32>, vector<32x256xf32>, vector<1x256xf32> -> vector<1x256xf32>
    %128 = arith.addf %121, %127 : vector<1x256xf32>
    %129 = vector.extract_strided_slice %57 {offsets = [0, 10, 0], sizes = [1, 1, 32], strides = [1, 1, 1]} : vector<1x34x32xf32> to vector<1x1x32xf32>
    %130 = vector.shape_cast %129 : vector<1x1x32xf32> to vector<1x32xf32>
    %c10 = arith.constant 10 : index
    %c0_80 = arith.constant 0 : index
    %c0_81 = arith.constant 0 : index
    %131 = vector.load %arg11[%c10, %c0_80, %c0_81] : memref<34x32x256xbf16, #tpu.memory_space<vmem>>, vector<1x32x256xbf16>
    %132 = vector.shape_cast %131 : vector<1x32x256xbf16> to vector<32x256xbf16>
    %133 = arith.extf %132 : vector<32x256xbf16> to vector<32x256xf32>
    %cst_82 = arith.constant dense<0.000000e+00> : vector<1x256xf32>
    %134 = tpu.matmul %130, %133, %cst_82 {dimension_numbers = #tpu.dot_dimension_numbers<[1], [0], [0], [1], [0, 0, 1, 1], [], []>} : vector<1x32xf32>, vector<32x256xf32>, vector<1x256xf32> -> vector<1x256xf32>
    %135 = arith.addf %128, %134 : vector<1x256xf32>
    %136 = vector.extract_strided_slice %57 {offsets = [0, 11, 0], sizes = [1, 1, 32], strides = [1, 1, 1]} : vector<1x34x32xf32> to vector<1x1x32xf32>
    %137 = vector.shape_cast %136 : vector<1x1x32xf32> to vector<1x32xf32>
    %c11 = arith.constant 11 : index
    %c0_83 = arith.constant 0 : index
    %c0_84 = arith.constant 0 : index
    %138 = vector.load %arg11[%c11, %c0_83, %c0_84] : memref<34x32x256xbf16, #tpu.memory_space<vmem>>, vector<1x32x256xbf16>
    %139 = vector.shape_cast %138 : vector<1x32x256xbf16> to vector<32x256xbf16>
    %140 = arith.extf %139 : vector<32x256xbf16> to vector<32x256xf32>
    %cst_85 = arith.constant dense<0.000000e+00> : vector<1x256xf32>
    %141 = tpu.matmul %137, %140, %cst_85 {dimension_numbers = #tpu.dot_dimension_numbers<[1], [0], [0], [1], [0, 0, 1, 1], [], []>} : vector<1x32xf32>, vector<32x256xf32>, vector<1x256xf32> -> vector<1x256xf32>
    %142 = arith.addf %135, %141 : vector<1x256xf32>
    %143 = vector.extract_strided_slice %57 {offsets = [0, 12, 0], sizes = [1, 1, 32], strides = [1, 1, 1]} : vector<1x34x32xf32> to vector<1x1x32xf32>
    %144 = vector.shape_cast %143 : vector<1x1x32xf32> to vector<1x32xf32>
    %c12 = arith.constant 12 : index
    %c0_86 = arith.constant 0 : index
    %c0_87 = arith.constant 0 : index
    %145 = vector.load %arg11[%c12, %c0_86, %c0_87] : memref<34x32x256xbf16, #tpu.memory_space<vmem>>, vector<1x32x256xbf16>
    %146 = vector.shape_cast %145 : vector<1x32x256xbf16> to vector<32x256xbf16>
    %147 = arith.extf %146 : vector<32x256xbf16> to vector<32x256xf32>
    %cst_88 = arith.constant dense<0.000000e+00> : vector<1x256xf32>
    %148 = tpu.matmul %144, %147, %cst_88 {dimension_numbers = #tpu.dot_dimension_numbers<[1], [0], [0], [1], [0, 0, 1, 1], [], []>} : vector<1x32xf32>, vector<32x256xf32>, vector<1x256xf32> -> vector<1x256xf32>
    %149 = arith.addf %142, %148 : vector<1x256xf32>
    %150 = vector.extract_strided_slice %57 {offsets = [0, 13, 0], sizes = [1, 1, 32], strides = [1, 1, 1]} : vector<1x34x32xf32> to vector<1x1x32xf32>
    %151 = vector.shape_cast %150 : vector<1x1x32xf32> to vector<1x32xf32>
    %c13 = arith.constant 13 : index
    %c0_89 = arith.constant 0 : index
    %c0_90 = arith.constant 0 : index
    %152 = vector.load %arg11[%c13, %c0_89, %c0_90] : memref<34x32x256xbf16, #tpu.memory_space<vmem>>, vector<1x32x256xbf16>
    %153 = vector.shape_cast %152 : vector<1x32x256xbf16> to vector<32x256xbf16>
    %154 = arith.extf %153 : vector<32x256xbf16> to vector<32x256xf32>
    %cst_91 = arith.constant dense<0.000000e+00> : vector<1x256xf32>
    %155 = tpu.matmul %151, %154, %cst_91 {dimension_numbers = #tpu.dot_dimension_numbers<[1], [0], [0], [1], [0, 0, 1, 1], [], []>} : vector<1x32xf32>, vector<32x256xf32>, vector<1x256xf32> -> vector<1x256xf32>
    %156 = arith.addf %149, %155 : vector<1x256xf32>
    %157 = vector.extract_strided_slice %57 {offsets = [0, 14, 0], sizes = [1, 1, 32], strides = [1, 1, 1]} : vector<1x34x32xf32> to vector<1x1x32xf32>
    %158 = vector.shape_cast %157 : vector<1x1x32xf32> to vector<1x32xf32>
    %c14 = arith.constant 14 : index
    %c0_92 = arith.constant 0 : index
    %c0_93 = arith.constant 0 : index
    %159 = vector.load %arg11[%c14, %c0_92, %c0_93] : memref<34x32x256xbf16, #tpu.memory_space<vmem>>, vector<1x32x256xbf16>
    %160 = vector.shape_cast %159 : vector<1x32x256xbf16> to vector<32x256xbf16>
    %161 = arith.extf %160 : vector<32x256xbf16> to vector<32x256xf32>
    %cst_94 = arith.constant dense<0.000000e+00> : vector<1x256xf32>
    %162 = tpu.matmul %158, %161, %cst_94 {dimension_numbers = #tpu.dot_dimension_numbers<[1], [0], [0], [1], [0, 0, 1, 1], [], []>} : vector<1x32xf32>, vector<32x256xf32>, vector<1x256xf32> -> vector<1x256xf32>
    %163 = arith.addf %156, %162 : vector<1x256xf32>
    %164 = vector.extract_strided_slice %57 {offsets = [0, 15, 0], sizes = [1, 1, 32], strides = [1, 1, 1]} : vector<1x34x32xf32> to vector<1x1x32xf32>
    %165 = vector.shape_cast %164 : vector<1x1x32xf32> to vector<1x32xf32>
    %c15 = arith.constant 15 : index
    %c0_95 = arith.constant 0 : index
    %c0_96 = arith.constant 0 : index
    %166 = vector.load %arg11[%c15, %c0_95, %c0_96] : memref<34x32x256xbf16, #tpu.memory_space<vmem>>, vector<1x32x256xbf16>
    %167 = vector.shape_cast %166 : vector<1x32x256xbf16> to vector<32x256xbf16>
    %168 = arith.extf %167 : vector<32x256xbf16> to vector<32x256xf32>
    %cst_97 = arith.constant dense<0.000000e+00> : vector<1x256xf32>
    %169 = tpu.matmul %165, %168, %cst_97 {dimension_numbers = #tpu.dot_dimension_numbers<[1], [0], [0], [1], [0, 0, 1, 1], [], []>} : vector<1x32xf32>, vector<32x256xf32>, vector<1x256xf32> -> vector<1x256xf32>
    %170 = arith.addf %163, %169 : vector<1x256xf32>
    %171 = vector.extract_strided_slice %57 {offsets = [0, 16, 0], sizes = [1, 1, 32], strides = [1, 1, 1]} : vector<1x34x32xf32> to vector<1x1x32xf32>
    %172 = vector.shape_cast %171 : vector<1x1x32xf32> to vector<1x32xf32>
    %c16 = arith.constant 16 : index
    %c0_98 = arith.constant 0 : index
    %c0_99 = arith.constant 0 : index
    %173 = vector.load %arg11[%c16, %c0_98, %c0_99] : memref<34x32x256xbf16, #tpu.memory_space<vmem>>, vector<1x32x256xbf16>
    %174 = vector.shape_cast %173 : vector<1x32x256xbf16> to vector<32x256xbf16>
    %175 = arith.extf %174 : vector<32x256xbf16> to vector<32x256xf32>
    %cst_100 = arith.constant dense<0.000000e+00> : vector<1x256xf32>
    %176 = tpu.matmul %172, %175, %cst_100 {dimension_numbers = #tpu.dot_dimension_numbers<[1], [0], [0], [1], [0, 0, 1, 1], [], []>} : vector<1x32xf32>, vector<32x256xf32>, vector<1x256xf32> -> vector<1x256xf32>
    %177 = arith.addf %170, %176 : vector<1x256xf32>
    %178 = vector.extract_strided_slice %57 {offsets = [0, 17, 0], sizes = [1, 1, 32], strides = [1, 1, 1]} : vector<1x34x32xf32> to vector<1x1x32xf32>
    %179 = vector.shape_cast %178 : vector<1x1x32xf32> to vector<1x32xf32>
    %c17 = arith.constant 17 : index
    %c0_101 = arith.constant 0 : index
    %c0_102 = arith.constant 0 : index
    %180 = vector.load %arg11[%c17, %c0_101, %c0_102] : memref<34x32x256xbf16, #tpu.memory_space<vmem>>, vector<1x32x256xbf16>
    %181 = vector.shape_cast %180 : vector<1x32x256xbf16> to vector<32x256xbf16>
    %182 = arith.extf %181 : vector<32x256xbf16> to vector<32x256xf32>
    %cst_103 = arith.constant dense<0.000000e+00> : vector<1x256xf32>
    %183 = tpu.matmul %179, %182, %cst_103 {dimension_numbers = #tpu.dot_dimension_numbers<[1], [0], [0], [1], [0, 0, 1, 1], [], []>} : vector<1x32xf32>, vector<32x256xf32>, vector<1x256xf32> -> vector<1x256xf32>
    %184 = arith.addf %177, %183 : vector<1x256xf32>
    %185 = vector.extract_strided_slice %57 {offsets = [0, 18, 0], sizes = [1, 1, 32], strides = [1, 1, 1]} : vector<1x34x32xf32> to vector<1x1x32xf32>
    %186 = vector.shape_cast %185 : vector<1x1x32xf32> to vector<1x32xf32>
    %c18 = arith.constant 18 : index
    %c0_104 = arith.constant 0 : index
    %c0_105 = arith.constant 0 : index
    %187 = vector.load %arg11[%c18, %c0_104, %c0_105] : memref<34x32x256xbf16, #tpu.memory_space<vmem>>, vector<1x32x256xbf16>
    %188 = vector.shape_cast %187 : vector<1x32x256xbf16> to vector<32x256xbf16>
    %189 = arith.extf %188 : vector<32x256xbf16> to vector<32x256xf32>
    %cst_106 = arith.constant dense<0.000000e+00> : vector<1x256xf32>
    %190 = tpu.matmul %186, %189, %cst_106 {dimension_numbers = #tpu.dot_dimension_numbers<[1], [0], [0], [1], [0, 0, 1, 1], [], []>} : vector<1x32xf32>, vector<32x256xf32>, vector<1x256xf32> -> vector<1x256xf32>
    %191 = arith.addf %184, %190 : vector<1x256xf32>
    %192 = vector.extract_strided_slice %57 {offsets = [0, 19, 0], sizes = [1, 1, 32], strides = [1, 1, 1]} : vector<1x34x32xf32> to vector<1x1x32xf32>
    %193 = vector.shape_cast %192 : vector<1x1x32xf32> to vector<1x32xf32>
    %c19 = arith.constant 19 : index
    %c0_107 = arith.constant 0 : index
    %c0_108 = arith.constant 0 : index
    %194 = vector.load %arg11[%c19, %c0_107, %c0_108] : memref<34x32x256xbf16, #tpu.memory_space<vmem>>, vector<1x32x256xbf16>
    %195 = vector.shape_cast %194 : vector<1x32x256xbf16> to vector<32x256xbf16>
    %196 = arith.extf %195 : vector<32x256xbf16> to vector<32x256xf32>
    %cst_109 = arith.constant dense<0.000000e+00> : vector<1x256xf32>
    %197 = tpu.matmul %193, %196, %cst_109 {dimension_numbers = #tpu.dot_dimension_numbers<[1], [0], [0], [1], [0, 0, 1, 1], [], []>} : vector<1x32xf32>, vector<32x256xf32>, vector<1x256xf32> -> vector<1x256xf32>
    %198 = arith.addf %191, %197 : vector<1x256xf32>
    %199 = vector.extract_strided_slice %57 {offsets = [0, 20, 0], sizes = [1, 1, 32], strides = [1, 1, 1]} : vector<1x34x32xf32> to vector<1x1x32xf32>
    %200 = vector.shape_cast %199 : vector<1x1x32xf32> to vector<1x32xf32>
    %c20 = arith.constant 20 : index
    %c0_110 = arith.constant 0 : index
    %c0_111 = arith.constant 0 : index
    %201 = vector.load %arg11[%c20, %c0_110, %c0_111] : memref<34x32x256xbf16, #tpu.memory_space<vmem>>, vector<1x32x256xbf16>
    %202 = vector.shape_cast %201 : vector<1x32x256xbf16> to vector<32x256xbf16>
    %203 = arith.extf %202 : vector<32x256xbf16> to vector<32x256xf32>
    %cst_112 = arith.constant dense<0.000000e+00> : vector<1x256xf32>
    %204 = tpu.matmul %200, %203, %cst_112 {dimension_numbers = #tpu.dot_dimension_numbers<[1], [0], [0], [1], [0, 0, 1, 1], [], []>} : vector<1x32xf32>, vector<32x256xf32>, vector<1x256xf32> -> vector<1x256xf32>
    %205 = arith.addf %198, %204 : vector<1x256xf32>
    %206 = vector.extract_strided_slice %57 {offsets = [0, 21, 0], sizes = [1, 1, 32], strides = [1, 1, 1]} : vector<1x34x32xf32> to vector<1x1x32xf32>
    %207 = vector.shape_cast %206 : vector<1x1x32xf32> to vector<1x32xf32>
    %c21 = arith.constant 21 : index
    %c0_113 = arith.constant 0 : index
    %c0_114 = arith.constant 0 : index
    %208 = vector.load %arg11[%c21, %c0_113, %c0_114] : memref<34x32x256xbf16, #tpu.memory_space<vmem>>, vector<1x32x256xbf16>
    %209 = vector.shape_cast %208 : vector<1x32x256xbf16> to vector<32x256xbf16>
    %210 = arith.extf %209 : vector<32x256xbf16> to vector<32x256xf32>
    %cst_115 = arith.constant dense<0.000000e+00> : vector<1x256xf32>
    %211 = tpu.matmul %207, %210, %cst_115 {dimension_numbers = #tpu.dot_dimension_numbers<[1], [0], [0], [1], [0, 0, 1, 1], [], []>} : vector<1x32xf32>, vector<32x256xf32>, vector<1x256xf32> -> vector<1x256xf32>
    %212 = arith.addf %205, %211 : vector<1x256xf32>
    %213 = vector.extract_strided_slice %57 {offsets = [0, 22, 0], sizes = [1, 1, 32], strides = [1, 1, 1]} : vector<1x34x32xf32> to vector<1x1x32xf32>
    %214 = vector.shape_cast %213 : vector<1x1x32xf32> to vector<1x32xf32>
    %c22 = arith.constant 22 : index
    %c0_116 = arith.constant 0 : index
    %c0_117 = arith.constant 0 : index
    %215 = vector.load %arg11[%c22, %c0_116, %c0_117] : memref<34x32x256xbf16, #tpu.memory_space<vmem>>, vector<1x32x256xbf16>
    %216 = vector.shape_cast %215 : vector<1x32x256xbf16> to vector<32x256xbf16>
    %217 = arith.extf %216 : vector<32x256xbf16> to vector<32x256xf32>
    %cst_118 = arith.constant dense<0.000000e+00> : vector<1x256xf32>
    %218 = tpu.matmul %214, %217, %cst_118 {dimension_numbers = #tpu.dot_dimension_numbers<[1], [0], [0], [1], [0, 0, 1, 1], [], []>} : vector<1x32xf32>, vector<32x256xf32>, vector<1x256xf32> -> vector<1x256xf32>
    %219 = arith.addf %212, %218 : vector<1x256xf32>
    %220 = vector.extract_strided_slice %57 {offsets = [0, 23, 0], sizes = [1, 1, 32], strides = [1, 1, 1]} : vector<1x34x32xf32> to vector<1x1x32xf32>
    %221 = vector.shape_cast %220 : vector<1x1x32xf32> to vector<1x32xf32>
    %c23 = arith.constant 23 : index
    %c0_119 = arith.constant 0 : index
    %c0_120 = arith.constant 0 : index
    %222 = vector.load %arg11[%c23, %c0_119, %c0_120] : memref<34x32x256xbf16, #tpu.memory_space<vmem>>, vector<1x32x256xbf16>
    %223 = vector.shape_cast %222 : vector<1x32x256xbf16> to vector<32x256xbf16>
    %224 = arith.extf %223 : vector<32x256xbf16> to vector<32x256xf32>
    %cst_121 = arith.constant dense<0.000000e+00> : vector<1x256xf32>
    %225 = tpu.matmul %221, %224, %cst_121 {dimension_numbers = #tpu.dot_dimension_numbers<[1], [0], [0], [1], [0, 0, 1, 1], [], []>} : vector<1x32xf32>, vector<32x256xf32>, vector<1x256xf32> -> vector<1x256xf32>
    %226 = arith.addf %219, %225 : vector<1x256xf32>
    %227 = vector.extract_strided_slice %57 {offsets = [0, 24, 0], sizes = [1, 1, 32], strides = [1, 1, 1]} : vector<1x34x32xf32> to vector<1x1x32xf32>
    %228 = vector.shape_cast %227 : vector<1x1x32xf32> to vector<1x32xf32>
    %c24 = arith.constant 24 : index
    %c0_122 = arith.constant 0 : index
    %c0_123 = arith.constant 0 : index
    %229 = vector.load %arg11[%c24, %c0_122, %c0_123] : memref<34x32x256xbf16, #tpu.memory_space<vmem>>, vector<1x32x256xbf16>
    %230 = vector.shape_cast %229 : vector<1x32x256xbf16> to vector<32x256xbf16>
    %231 = arith.extf %230 : vector<32x256xbf16> to vector<32x256xf32>
    %cst_124 = arith.constant dense<0.000000e+00> : vector<1x256xf32>
    %232 = tpu.matmul %228, %231, %cst_124 {dimension_numbers = #tpu.dot_dimension_numbers<[1], [0], [0], [1], [0, 0, 1, 1], [], []>} : vector<1x32xf32>, vector<32x256xf32>, vector<1x256xf32> -> vector<1x256xf32>
    %233 = arith.addf %226, %232 : vector<1x256xf32>
    %234 = vector.extract_strided_slice %57 {offsets = [0, 25, 0], sizes = [1, 1, 32], strides = [1, 1, 1]} : vector<1x34x32xf32> to vector<1x1x32xf32>
    %235 = vector.shape_cast %234 : vector<1x1x32xf32> to vector<1x32xf32>
    %c25 = arith.constant 25 : index
    %c0_125 = arith.constant 0 : index
    %c0_126 = arith.constant 0 : index
    %236 = vector.load %arg11[%c25, %c0_125, %c0_126] : memref<34x32x256xbf16, #tpu.memory_space<vmem>>, vector<1x32x256xbf16>
    %237 = vector.shape_cast %236 : vector<1x32x256xbf16> to vector<32x256xbf16>
    %238 = arith.extf %237 : vector<32x256xbf16> to vector<32x256xf32>
    %cst_127 = arith.constant dense<0.000000e+00> : vector<1x256xf32>
    %239 = tpu.matmul %235, %238, %cst_127 {dimension_numbers = #tpu.dot_dimension_numbers<[1], [0], [0], [1], [0, 0, 1, 1], [], []>} : vector<1x32xf32>, vector<32x256xf32>, vector<1x256xf32> -> vector<1x256xf32>
    %240 = arith.addf %233, %239 : vector<1x256xf32>
    %241 = vector.extract_strided_slice %57 {offsets = [0, 26, 0], sizes = [1, 1, 32], strides = [1, 1, 1]} : vector<1x34x32xf32> to vector<1x1x32xf32>
    %242 = vector.shape_cast %241 : vector<1x1x32xf32> to vector<1x32xf32>
    %c26 = arith.constant 26 : index
    %c0_128 = arith.constant 0 : index
    %c0_129 = arith.constant 0 : index
    %243 = vector.load %arg11[%c26, %c0_128, %c0_129] : memref<34x32x256xbf16, #tpu.memory_space<vmem>>, vector<1x32x256xbf16>
    %244 = vector.shape_cast %243 : vector<1x32x256xbf16> to vector<32x256xbf16>
    %245 = arith.extf %244 : vector<32x256xbf16> to vector<32x256xf32>
    %cst_130 = arith.constant dense<0.000000e+00> : vector<1x256xf32>
    %246 = tpu.matmul %242, %245, %cst_130 {dimension_numbers = #tpu.dot_dimension_numbers<[1], [0], [0], [1], [0, 0, 1, 1], [], []>} : vector<1x32xf32>, vector<32x256xf32>, vector<1x256xf32> -> vector<1x256xf32>
    %247 = arith.addf %240, %246 : vector<1x256xf32>
    %248 = vector.extract_strided_slice %57 {offsets = [0, 27, 0], sizes = [1, 1, 32], strides = [1, 1, 1]} : vector<1x34x32xf32> to vector<1x1x32xf32>
    %249 = vector.shape_cast %248 : vector<1x1x32xf32> to vector<1x32xf32>
    %c27 = arith.constant 27 : index
    %c0_131 = arith.constant 0 : index
    %c0_132 = arith.constant 0 : index
    %250 = vector.load %arg11[%c27, %c0_131, %c0_132] : memref<34x32x256xbf16, #tpu.memory_space<vmem>>, vector<1x32x256xbf16>
    %251 = vector.shape_cast %250 : vector<1x32x256xbf16> to vector<32x256xbf16>
    %252 = arith.extf %251 : vector<32x256xbf16> to vector<32x256xf32>
    %cst_133 = arith.constant dense<0.000000e+00> : vector<1x256xf32>
    %253 = tpu.matmul %249, %252, %cst_133 {dimension_numbers = #tpu.dot_dimension_numbers<[1], [0], [0], [1], [0, 0, 1, 1], [], []>} : vector<1x32xf32>, vector<32x256xf32>, vector<1x256xf32> -> vector<1x256xf32>
    %254 = arith.addf %247, %253 : vector<1x256xf32>
    %255 = vector.extract_strided_slice %57 {offsets = [0, 28, 0], sizes = [1, 1, 32], strides = [1, 1, 1]} : vector<1x34x32xf32> to vector<1x1x32xf32>
    %256 = vector.shape_cast %255 : vector<1x1x32xf32> to vector<1x32xf32>
    %c28 = arith.constant 28 : index
    %c0_134 = arith.constant 0 : index
    %c0_135 = arith.constant 0 : index
    %257 = vector.load %arg11[%c28, %c0_134, %c0_135] : memref<34x32x256xbf16, #tpu.memory_space<vmem>>, vector<1x32x256xbf16>
    %258 = vector.shape_cast %257 : vector<1x32x256xbf16> to vector<32x256xbf16>
    %259 = arith.extf %258 : vector<32x256xbf16> to vector<32x256xf32>
    %cst_136 = arith.constant dense<0.000000e+00> : vector<1x256xf32>
    %260 = tpu.matmul %256, %259, %cst_136 {dimension_numbers = #tpu.dot_dimension_numbers<[1], [0], [0], [1], [0, 0, 1, 1], [], []>} : vector<1x32xf32>, vector<32x256xf32>, vector<1x256xf32> -> vector<1x256xf32>
    %261 = arith.addf %254, %260 : vector<1x256xf32>
    %262 = vector.extract_strided_slice %57 {offsets = [0, 29, 0], sizes = [1, 1, 32], strides = [1, 1, 1]} : vector<1x34x32xf32> to vector<1x1x32xf32>
    %263 = vector.shape_cast %262 : vector<1x1x32xf32> to vector<1x32xf32>
    %c29 = arith.constant 29 : index
    %c0_137 = arith.constant 0 : index
    %c0_138 = arith.constant 0 : index
    %264 = vector.load %arg11[%c29, %c0_137, %c0_138] : memref<34x32x256xbf16, #tpu.memory_space<vmem>>, vector<1x32x256xbf16>
    %265 = vector.shape_cast %264 : vector<1x32x256xbf16> to vector<32x256xbf16>
    %266 = arith.extf %265 : vector<32x256xbf16> to vector<32x256xf32>
    %cst_139 = arith.constant dense<0.000000e+00> : vector<1x256xf32>
    %267 = tpu.matmul %263, %266, %cst_139 {dimension_numbers = #tpu.dot_dimension_numbers<[1], [0], [0], [1], [0, 0, 1, 1], [], []>} : vector<1x32xf32>, vector<32x256xf32>, vector<1x256xf32> -> vector<1x256xf32>
    %268 = arith.addf %261, %267 : vector<1x256xf32>
    %269 = vector.extract_strided_slice %57 {offsets = [0, 30, 0], sizes = [1, 1, 32], strides = [1, 1, 1]} : vector<1x34x32xf32> to vector<1x1x32xf32>
    %270 = vector.shape_cast %269 : vector<1x1x32xf32> to vector<1x32xf32>
    %c30 = arith.constant 30 : index
    %c0_140 = arith.constant 0 : index
    %c0_141 = arith.constant 0 : index
    %271 = vector.load %arg11[%c30, %c0_140, %c0_141] : memref<34x32x256xbf16, #tpu.memory_space<vmem>>, vector<1x32x256xbf16>
    %272 = vector.shape_cast %271 : vector<1x32x256xbf16> to vector<32x256xbf16>
    %273 = arith.extf %272 : vector<32x256xbf16> to vector<32x256xf32>
    %cst_142 = arith.constant dense<0.000000e+00> : vector<1x256xf32>
    %274 = tpu.matmul %270, %273, %cst_142 {dimension_numbers = #tpu.dot_dimension_numbers<[1], [0], [0], [1], [0, 0, 1, 1], [], []>} : vector<1x32xf32>, vector<32x256xf32>, vector<1x256xf32> -> vector<1x256xf32>
    %275 = arith.addf %268, %274 : vector<1x256xf32>
    %276 = vector.extract_strided_slice %57 {offsets = [0, 31, 0], sizes = [1, 1, 32], strides = [1, 1, 1]} : vector<1x34x32xf32> to vector<1x1x32xf32>
    %277 = vector.shape_cast %276 : vector<1x1x32xf32> to vector<1x32xf32>
    %c31 = arith.constant 31 : index
    %c0_143 = arith.constant 0 : index
    %c0_144 = arith.constant 0 : index
    %278 = vector.load %arg11[%c31, %c0_143, %c0_144] : memref<34x32x256xbf16, #tpu.memory_space<vmem>>, vector<1x32x256xbf16>
    %279 = vector.shape_cast %278 : vector<1x32x256xbf16> to vector<32x256xbf16>
    %280 = arith.extf %279 : vector<32x256xbf16> to vector<32x256xf32>
    %cst_145 = arith.constant dense<0.000000e+00> : vector<1x256xf32>
    %281 = tpu.matmul %277, %280, %cst_145 {dimension_numbers = #tpu.dot_dimension_numbers<[1], [0], [0], [1], [0, 0, 1, 1], [], []>} : vector<1x32xf32>, vector<32x256xf32>, vector<1x256xf32> -> vector<1x256xf32>
    %282 = arith.addf %275, %281 : vector<1x256xf32>
    %283 = vector.extract_strided_slice %57 {offsets = [0, 32, 0], sizes = [1, 1, 32], strides = [1, 1, 1]} : vector<1x34x32xf32> to vector<1x1x32xf32>
    %284 = vector.shape_cast %283 : vector<1x1x32xf32> to vector<1x32xf32>
    %c32 = arith.constant 32 : index
    %c0_146 = arith.constant 0 : index
    %c0_147 = arith.constant 0 : index
    %285 = vector.load %arg11[%c32, %c0_146, %c0_147] : memref<34x32x256xbf16, #tpu.memory_space<vmem>>, vector<1x32x256xbf16>
    %286 = vector.shape_cast %285 : vector<1x32x256xbf16> to vector<32x256xbf16>
    %287 = arith.extf %286 : vector<32x256xbf16> to vector<32x256xf32>
    %cst_148 = arith.constant dense<0.000000e+00> : vector<1x256xf32>
    %288 = tpu.matmul %284, %287, %cst_148 {dimension_numbers = #tpu.dot_dimension_numbers<[1], [0], [0], [1], [0, 0, 1, 1], [], []>} : vector<1x32xf32>, vector<32x256xf32>, vector<1x256xf32> -> vector<1x256xf32>
    %289 = arith.addf %282, %288 : vector<1x256xf32>
    %290 = vector.extract_strided_slice %57 {offsets = [0, 33, 0], sizes = [1, 1, 32], strides = [1, 1, 1]} : vector<1x34x32xf32> to vector<1x1x32xf32>
    %291 = vector.shape_cast %290 : vector<1x1x32xf32> to vector<1x32xf32>
    %c33 = arith.constant 33 : index
    %c0_149 = arith.constant 0 : index
    %c0_150 = arith.constant 0 : index
    %292 = vector.load %arg11[%c33, %c0_149, %c0_150] : memref<34x32x256xbf16, #tpu.memory_space<vmem>>, vector<1x32x256xbf16>
    %293 = vector.shape_cast %292 : vector<1x32x256xbf16> to vector<32x256xbf16>
    %294 = arith.extf %293 : vector<32x256xbf16> to vector<32x256xf32>
    %cst_151 = arith.constant dense<0.000000e+00> : vector<1x256xf32>
    %295 = tpu.matmul %291, %294, %cst_151 {dimension_numbers = #tpu.dot_dimension_numbers<[1], [0], [0], [1], [0, 0, 1, 1], [], []>} : vector<1x32xf32>, vector<32x256xf32>, vector<1x256xf32> -> vector<1x256xf32>
    %296 = arith.addf %289, %295 : vector<1x256xf32>
    %c0_152 = arith.constant 0 : index
    %c0_153 = arith.constant 0 : index
    %297 = vector.load %arg12[%c0_152, %c0_153] : memref<1x256xf32, #tpu.memory_space<vmem>>, vector<1x256xf32>
    %298 = arith.addf %296, %297 : vector<1x256xf32>
    %cst_154 = arith.constant 0.000000e+00 : f32
    %299 = vector.broadcast %cst_154 : f32 to vector<1x256xf32>
    %300 = arith.maximumf %298, %299 : vector<1x256xf32>
    %c0_155 = arith.constant 0 : index
    %c0_156 = arith.constant 0 : index
    %301 = vector.load %arg13[%c0_155, %c0_156] : memref<256x34xf32, #tpu.memory_space<vmem>>, vector<256x34xf32>
    %cst_157 = arith.constant dense<0.000000e+00> : vector<1x34xf32>
    %302 = tpu.matmul %300, %301, %cst_157 {dimension_numbers = #tpu.dot_dimension_numbers<[1], [0], [0], [1], [0, 0, 1, 1], [], []>} : vector<1x256xf32>, vector<256x34xf32>, vector<1x34xf32> -> vector<1x34xf32>
    %c0_158 = arith.constant 0 : index
    %c0_159 = arith.constant 0 : index
    %303 = vector.load %arg14[%c0_158, %c0_159] : memref<1x34xf32, #tpu.memory_space<vmem>>, vector<1x34xf32>
    %304 = arith.addf %302, %303 : vector<1x34xf32>
    %c0_160 = arith.constant 0 : index
    %c0_161 = arith.constant 0 : index
    %c0_162 = arith.constant 0 : index
    %305 = vector.load %arg15[%c0_160, %c0_161, %c0_162] : memref<1x1x34xf32, #tpu.memory_space<vmem>>, vector<1x1x34xf32>
    %306 = vector.shape_cast %305 : vector<1x1x34xf32> to vector<1x34xf32>
    %307 = vector.shape_cast %304 : vector<1x34xf32> to vector<1x1x34xf32>
    tpu.vector_store %arg15[%c0_160, %c0_161, %c0_162], %307 {strides = array<i32>} : memref<1x1x34xf32, #tpu.memory_space<vmem>>, vector<1x1x34xf32>,
    return
  }
  func.func @transform_0(%arg0: i32) -> (i32, i32, i32) {
    %c0_i32 = arith.constant 0 : i32
    %c0_i32_0 = arith.constant 0 : i32
    %c0_i32_1 = arith.constant 0 : i32
    return %arg0, %c0_i32, %c0_i32_0 : i32, i32, i32
  }
  func.func @transform_1(%arg0: i32) -> (i32, i32, i32) {
    %c0_i32 = arith.constant 0 : i32
    %c0_i32_0 = arith.constant 0 : i32
    %c0_i32_1 = arith.constant 0 : i32
    %c0_i32_2 = arith.constant 0 : i32
    return %c0_i32, %c0_i32_0, %c0_i32_1 : i32, i32, i32
  }
  func.func @transform_2(%arg0: i32) -> (i32, i32) {
    %c0_i32 = arith.constant 0 : i32
    %c0_i32_0 = arith.constant 0 : i32
    %c0_i32_1 = arith.constant 0 : i32
    return %c0_i32, %c0_i32_0 : i32, i32
  }
  func.func @transform_3(%arg0: i32) -> (i32, i32) {
    %c0_i32 = arith.constant 0 : i32
    %c0_i32_0 = arith.constant 0 : i32
    %c0_i32_1 = arith.constant 0 : i32
    return %c0_i32, %c0_i32_0 : i32, i32
  }
  func.func @transform_4(%arg0: i32) -> (i32, i32, i32, i32) {
    %c0_i32 = arith.constant 0 : i32
    %c0_i32_0 = arith.constant 0 : i32
    %c0_i32_1 = arith.constant 0 : i32
    %c0_i32_2 = arith.constant 0 : i32
    %c0_i32_3 = arith.constant 0 : i32
    return %c0_i32, %c0_i32_0, %c0_i32_1, %c0_i32_2 : i32, i32, i32, i32
  }
  func.func @transform_5(%arg0: i32) -> (i32, i32, i32) {
    %c0_i32 = arith.constant 0 : i32
    %c0_i32_0 = arith.constant 0 : i32
    %c0_i32_1 = arith.constant 0 : i32
    %c0_i32_2 = arith.constant 0 : i32
    return %c0_i32, %c0_i32_0, %c0_i32_1 : i32, i32, i32
  }
  func.func @transform_6(%arg0: i32) -> (i32, i32, i32) {
    %c0_i32 = arith.constant 0 : i32
    %c0_i32_0 = arith.constant 0 : i32
    %c0_i32_1 = arith.constant 0 : i32
    %c0_i32_2 = arith.constant 0 : i32
    return %c0_i32, %c0_i32_0, %c0_i32_1 : i32, i32, i32
  }
  func.func @transform_7(%arg0: i32) -> (i32, i32, i32) {
    %c0_i32 = arith.constant 0 : i32
    %c0_i32_0 = arith.constant 0 : i32
    %c0_i32_1 = arith.constant 0 : i32
    %c0_i32_2 = arith.constant 0 : i32
    return %c0_i32, %c0_i32_0, %c0_i32_1 : i32, i32, i32
  }
  func.func @transform_8(%arg0: i32) -> (i32, i32) {
    %c0_i32 = arith.constant 0 : i32
    %c0_i32_0 = arith.constant 0 : i32
    %c0_i32_1 = arith.constant 0 : i32
    return %c0_i32, %c0_i32_0 : i32, i32
  }
  func.func @transform_9(%arg0: i32) -> (i32, i32) {
    %c0_i32 = arith.constant 0 : i32
    %c0_i32_0 = arith.constant 0 : i32
    %c0_i32_1 = arith.constant 0 : i32
    return %c0_i32, %c0_i32_0 : i32, i32
  }
  func.func @transform_10(%arg0: i32) -> (i32, i32, i32) {
    %c0_i32 = arith.constant 0 : i32
    %c0_i32_0 = arith.constant 0 : i32
    %c0_i32_1 = arith.constant 0 : i32
    %c0_i32_2 = arith.constant 0 : i32
    return %c0_i32, %c0_i32_0, %c0_i32_1 : i32, i32, i32
  }
  func.func @transform_11(%arg0: i32) -> (i32, i32) {
    %c0_i32 = arith.constant 0 : i32
    %c0_i32_0 = arith.constant 0 : i32
    %c0_i32_1 = arith.constant 0 : i32
    return %c0_i32, %c0_i32_0 : i32, i32
  }
  func.func @transform_12(%arg0: i32) -> (i32, i32) {
    %c0_i32 = arith.constant 0 : i32
    %c0_i32_0 = arith.constant 0 : i32
    %c0_i32_1 = arith.constant 0 : i32
    return %c0_i32, %c0_i32_0 : i32, i32
  }
  func.func @transform_13(%arg0: i32) -> (i32, i32) {
    %c0_i32 = arith.constant 0 : i32
    %c0_i32_0 = arith.constant 0 : i32
    %c0_i32_1 = arith.constant 0 : i32
    return %c0_i32, %c0_i32_0 : i32, i32
  }
  func.func @transform_14(%arg0: i32) -> (i32, i32, i32) {
    %c0_i32 = arith.constant 0 : i32
    %c0_i32_0 = arith.constant 0 : i32
    %c0_i32_1 = arith.constant 0 : i32
    return %arg0, %c0_i32, %c0_i32_0 : i32, i32, i32
  }
}

</mosaic_0001>

<llo_original>
// kernel: forward.1
$region0: #{forward.1}
  #allocation0 [shape = 'u32[]', space=smem, size = 0x4, offset = 0x4, fixed_abs, tag = 'smem constant byte address 0x4 - core index']
  #allocation1 [shape = 'u32[144,128]{1,0:T(1,128)}', space=vmem, size = 0x12000, scoped, tag = 'internal scratch']
  #allocation2 [shape = 'f32[1,43,72]{2,1,0:T(8,128)}', space=vmem, size = 0x6000, scoped, tag = 'scratch operand']
  %s0 = inlined_call_operand.vmem [shape: f32[2,36,97], index: 0, kind: input, shape index: {}]
  %s1 = inlined_call_operand.vmem [shape: f32[3,97,72], index: 1, kind: input, shape index: {}]
  %s2 = inlined_call_operand.hbm [shape: f32[1,72], index: 2, kind: input, shape index: {}]
  %s3 = inlined_call_operand.hbm [shape: f32[1,72], index: 3, kind: input, shape index: {}]
  %s4 = inlined_call_operand.hbm [shape: bf16[50,3,72,72], index: 4, kind: input, shape index: {}]
  %s5 = inlined_call_operand.hbm [shape: f32[50,1,72], index: 5, kind: input, shape index: {}]
  %s6 = inlined_call_operand.hbm [shape: f32[50,1,72], index: 6, kind: input, shape index: {}]
  %s7 = inlined_call_operand.vmem [shape: f32[3,72,32], index: 7, kind: input, shape index: {}]
  %s8 = inlined_call_operand.hbm [shape: f32[1,32], index: 8, kind: input, shape index: {}]
  %s9 = inlined_call_operand.hbm [shape: f32[1,32], index: 9, kind: input, shape index: {}]
  %s10 = inlined_call_operand.hbm [shape: bf16[34,32,256], index: 10, kind: input, shape index: {}]
  %s11 = inlined_call_operand.hbm [shape: f32[1,256], index: 11, kind: input, shape index: {}]
  %s12 = inlined_call_operand.vmem [shape: f32[256,34], index: 12, kind: input, shape index: {}]
  %s13 = inlined_call_operand.hbm [shape: f32[1,34], index: 13, kind: input, shape index: {}]
  %s14 = inlined_call_operand.hbm [shape: f32[2,1,34], index: 14, kind: output, shape index: {}]
  %s15 = sld [smem:[#allocation0]]
  $region136: #{forward.1} parent=0
    _
  %s17 = ssub.s32 1, %s15
  %s18 = scalar_select 0, %s17, %s15
  $region1: #{forward.1} parent=0
    #allocation3 [shape = 'u8[512]{0}', space=vmem, size = 0x400, scoped, tag = 'input window, operand 2, single buffered']
    #allocation4 [shape = 's32[2]{0}', space=sflag, size = 0x8, scoped, tag = 'scoped memory for forward.1']
    #allocation5 [shape = 's32[2]{0}', space=sflag, size = 0x8, scoped, tag = 'scoped memory for forward.1']
    #allocation6 [shape = 'u8[512]{0}', space=vmem, size = 0x400, scoped, tag = 'input window, operand 3, single buffered']
    #allocation7 [shape = 's32[1]{0}', space=sflag, size = 0x4, scoped, tag = 'scoped memory for forward.1']
    #allocation8 [shape = 'u8[2764800]{0}', space=vmem, size = 0x2a3000, scoped, tag = 'input window, operand 4, single buffered']
    #allocation9 [shape = 'u8[25600]{0}', space=vmem, size = 0x6400, scoped, tag = 'input window, operand 5, single buffered']
    #allocation10 [shape = 's32[1]{0}', space=sflag, size = 0x4, scoped, tag = 'scoped memory for forward.1']
    #allocation11 [shape = 'u8[25600]{0}', space=vmem, size = 0x6400, scoped, tag = 'input window, operand 6, single buffered']
    #allocation12 [shape = 'u8[512]{0}', space=vmem, size = 0x400, scoped, tag = 'input window, operand 8, single buffered']
    #allocation13 [shape = 's32[1]{0}', space=sflag, size = 0x4, scoped, tag = 'scoped memory for forward.1']
    #allocation14 [shape = 'u8[512]{0}', space=vmem, size = 0x400, scoped, tag = 'input window, operand 9, single buffered']
    #allocation15 [shape = 'u8[557056]{0}', space=vmem, size = 0x88000, scoped, tag = 'input window, operand 10, single buffered']
    #allocation16 [shape = 's32[1]{0}', space=sflag, size = 0x4, scoped, tag = 'scoped memory for forward.1']
    #allocation17 [shape = 'u8[1024]{0}', space=vmem, size = 0x400, scoped, tag = 'input window, operand 11, single buffered']
    #allocation18 [shape = 'u8[512]{0}', space=vmem, size = 0x400, scoped, tag = 'input window, operand 13, single buffered']
    #allocation19 [shape = 's32[1]{0}', space=sflag, size = 0x4, scoped, tag = 'scoped memory for forward.1']
    #allocation20 [shape = 'u8[1024]{0}', space=vmem, size = 0x400, scoped, tag = 'output window, operand 0']
    %19 = vsyncpa [#allocation4], 0
    %20 = vsyncpa [#allocation7], 0
    %21 = vsyncpa [#allocation10], 0
    %22 = vsyncpa [#allocation13], 0
    %23 = vsyncpa [#allocation16], 0
    %24 = vsyncpa [#allocation19], 0
    %25 = vsyncpa [#allocation5], 0
    %s26 = scalar_lea.sflag [#allocation5], 1
    %27 = vsyncpa %s26, 0
    loop: start=0, step=1, limit=4
    $region2: #{forward.1} parent=1 // loop_pre_header
      _
    $region3: #{forward.1} parent=1 // loop_header
      %s29 = sphi 0, %s33
      %p30 = scmp.ge.s32.totalorder %s29, 4
      %s39 = sphi 0, %s41
      %s42 = sphi 0, %s39
      %s43 = sphi 0, %s42
      %s59 = sphi 0, %s43
      %s63 = sphi 0, %s63
      %s65 = sphi 0, %s63
      %s66 = sphi 0, %s65
      %s80 = sphi 0, %s66
      %s84 = sphi 0, %s84
      %s86 = sphi 0, %s84
      %s87 = sphi 0, %s86
      %s101 = sphi 0, %s87
      %s105 = sphi 0, %s105
      %s107 = sphi 0, %s105
      %s108 = sphi 0, %s107
      %s122 = sphi 0, %s108
      %s126 = sphi 0, %s126
      %s128 = sphi 0, %s126
      %s129 = sphi 0, %s128
      %s143 = sphi 0, %s129
      %s147 = sphi 0, %s147
      %s149 = sphi 0, %s147
      %s150 = sphi 0, %s149
      %s164 = sphi 0, %s150
      %s168 = sphi 0, %s168
      %s170 = sphi 0, %s168
      %s171 = sphi 0, %s170
      %s185 = sphi 0, %s171
      %s189 = sphi 0, %s189
      %s191 = sphi 0, %s189
      %s192 = sphi 0, %s191
      %s206 = sphi 0, %s192
      %s210 = sphi 0, %s210
      %s212 = sphi 0, %s210
      %s213 = sphi 0, %s212
      %s227 = sphi 0, %s213
      %s231 = sphi 0, %s231
      %s233 = sphi 0, %s231
      %s234 = sphi 0, %s233
      %s248 = sphi 0, %s234
      %s252 = sphi 0, %s252
      %s254 = sphi 0, %s252
      %s255 = sphi 0, %s254
      %s269 = sphi 0, %s255
      %s273 = sphi 0, %s273
      %s275 = sphi 0, %s273
      %s276 = sphi 0, %s275
      %s290 = sphi 0, %s276
      %s294 = sphi 0, %s294
      %s296 = sphi 0, %s294
      %s297 = sphi 0, %s296
      %s311 = sphi 0, %s297
      %s315 = sphi 0, %s315
      %s317 = sphi 0, %s315
      %s318 = sphi 0, %s317
      %s332 = sphi 0, %s318
      %s338 = sphi 0, %s340
      %s341 = sphi 0, %s338
      %s342 = sphi 0, %s341
      %s358 = sphi 0, %s342
    $region4: #{forward.1} parent=1 // loop_header_branch
      %32 = sbr.rel (%p30) target = $region8
    $region5: #{forward.1} parent=1 // loop_body
      %s34 = ssub.s32 %s29, 1
      %s35 = ssub.s32 %s29, 2
      %s36 = sadd.s32 %s29, 1
      %s37 = ssub.s32 %s29, %s36
      %p38 = scmp.eq.s32.totalorder %s37, 0
      %s40 = sadd.s32 %s39, 1
      %s41 = scalar_select %p38, %s39, %s40
      %p44 = pneg %p38
      %p45 = scmp.eq.s32.totalorder %s29, 1
      %p46 = por %p44, %p45
      %p47 = scmp.ne.s32.totalorder %s39, %s42
      %p48 = scmp.eq.s32.totalorder %s29, 0
      %p49 = por %p47, %p48
      %p50 = scmp.ne.s32.totalorder %s39, %s42
      %p51 = scmp.eq.s32.totalorder %s34, 1
      %p52 = por %p50, %p51
      %p53 = scmp.ne.s32.totalorder %s42, %s43
      %p54 = scmp.eq.s32.totalorder %s34, 0
      %p55 = por %p53, %p54
      %p56 = scmp.ne.s32.totalorder %s42, %s43
      %p57 = scmp.eq.s32.totalorder %s35, 1
      %p58 = por %p56, %p57
      %p60 = scmp.ne.s32.totalorder %s43, %s59
      %p61 = scmp.eq.s32.totalorder %s35, 0
      %p62 = por %p60, %p61
      %s64 = sadd.s32 %s63, 1
      %p67 = scmp.eq.s32.totalorder %s29, 1
      %p68 = scmp.ne.s32.totalorder %s63, %s65
      %p69 = scmp.eq.s32.totalorder %s29, 0
      %p70 = por %p68, %p69
      %p71 = scmp.ne.s32.totalorder %s63, %s65
      %p72 = scmp.eq.s32.totalorder %s34, 1
      %p73 = por %p71, %p72
      %p74 = scmp.ne.s32.totalorder %s65, %s66
      %p75 = scmp.eq.s32.totalorder %s34, 0
      %p76 = por %p74, %p75
      %p77 = scmp.ne.s32.totalorder %s65, %s66
      %p78 = scmp.eq.s32.totalorder %s35, 1
      %p79 = por %p77, %p78
      %p81 = scmp.ne.s32.totalorder %s66, %s80
      %p82 = scmp.eq.s32.totalorder %s35, 0
      %p83 = por %p81, %p82
      %s85 = sadd.s32 %s84, 1
      %p88 = scmp.eq.s32.totalorder %s29, 1
      %p89 = scmp.ne.s32.totalorder %s84, %s86
      %p90 = scmp.eq.s32.totalorder %s29, 0
      %p91 = por %p89, %p90
      %p92 = scmp.ne.s32.totalorder %s84, %s86
      %p93 = scmp.eq.s32.totalorder %s34, 1
      %p94 = por %p92, %p93
      %p95 = scmp.ne.s32.totalorder %s86, %s87
      %p96 = scmp.eq.s32.totalorder %s34, 0
      %p97 = por %p95, %p96
      %p98 = scmp.ne.s32.totalorder %s86, %s87
      %p99 = scmp.eq.s32.totalorder %s35, 1
      %p100 = por %p98, %p99
      %p102 = scmp.ne.s32.totalorder %s87, %s101
      %p103 = scmp.eq.s32.totalorder %s35, 0
      %p104 = por %p102, %p103
      %s106 = sadd.s32 %s105, 1
      %p109 = scmp.eq.s32.totalorder %s29, 1
      %p110 = scmp.ne.s32.totalorder %s105, %s107
      %p111 = scmp.eq.s32.totalorder %s29, 0
      %p112 = por %p110, %p111
      %p113 = scmp.ne.s32.totalorder %s105, %s107
      %p114 = scmp.eq.s32.totalorder %s34, 1
      %p115 = por %p113, %p114
      %p116 = scmp.ne.s32.totalorder %s107, %s108
      %p117 = scmp.eq.s32.totalorder %s34, 0
      %p118 = por %p116, %p117
      %p119 = scmp.ne.s32.totalorder %s107, %s108
      %p120 = scmp.eq.s32.totalorder %s35, 1
      %p121 = por %p119, %p120
      %p123 = scmp.ne.s32.totalorder %s108, %s122
      %p124 = scmp.eq.s32.totalorder %s35, 0
      %p125 = por %p123, %p124
      %s127 = sadd.s32 %s126, 1
      %p130 = scmp.eq.s32.totalorder %s29, 1
      %p131 = scmp.ne.s32.totalorder %s126, %s128
      %p132 = scmp.eq.s32.totalorder %s29, 0
      %p133 = por %p131, %p132
      %p134 = scmp.ne.s32.totalorder %s126, %s128
      %p135 = scmp.eq.s32.totalorder %s34, 1
      %p136 = por %p134, %p135
      %p137 = scmp.ne.s32.totalorder %s128, %s129
      %p138 = scmp.eq.s32.totalorder %s34, 0
      %p139 = por %p137, %p138
      %p140 = scmp.ne.s32.totalorder %s128, %s129
      %p141 = scmp.eq.s32.totalorder %s35, 1
      %p142 = por %p140, %p141
      %p144 = scmp.ne.s32.totalorder %s129, %s143
      %p145 = scmp.eq.s32.totalorder %s35, 0
      %p146 = por %p144, %p145
      %s148 = sadd.s32 %s147, 1
      %p151 = scmp.eq.s32.totalorder %s29, 1
      %p152 = scmp.ne.s32.totalorder %s147, %s149
      %p153 = scmp.eq.s32.totalorder %s29, 0
      %p154 = por %p152, %p153
      %p155 = scmp.ne.s32.totalorder %s147, %s149
      %p156 = scmp.eq.s32.totalorder %s34, 1
      %p157 = por %p155, %p156
      %p158 = scmp.ne.s32.totalorder %s149, %s150
      %p159 = scmp.eq.s32.totalorder %s34, 0
      %p160 = por %p158, %p159
      %p161 = scmp.ne.s32.totalorder %s149, %s150
      %p162 = scmp.eq.s32.totalorder %s35, 1
      %p163 = por %p161, %p162
      %p165 = scmp.ne.s32.totalorder %s150, %s164
      %p166 = scmp.eq.s32.totalorder %s35, 0
      %p167 = por %p165, %p166
      %s169 = sadd.s32 %s168, 1
      %p172 = scmp.eq.s32.totalorder %s29, 1
      %p173 = scmp.ne.s32.totalorder %s168, %s170
      %p174 = scmp.eq.s32.totalorder %s29, 0
      %p175 = por %p173, %p174
      %p176 = scmp.ne.s32.totalorder %s168, %s170
      %p177 = scmp.eq.s32.totalorder %s34, 1
      %p178 = por %p176, %p177
      %p179 = scmp.ne.s32.totalorder %s170, %s171
      %p180 = scmp.eq.s32.totalorder %s34, 0
      %p181 = por %p179, %p180
      %p182 = scmp.ne.s32.totalorder %s170, %s171
      %p183 = scmp.eq.s32.totalorder %s35, 1
      %p184 = por %p182, %p183
      %p186 = scmp.ne.s32.totalorder %s171, %s185
      %p187 = scmp.eq.s32.totalorder %s35, 0
      %p188 = por %p186, %p187
      %s190 = sadd.s32 %s189, 1
      %p193 = scmp.eq.s32.totalorder %s29, 1
      %p194 = scmp.ne.s32.totalorder %s189, %s191
      %p195 = scmp.eq.s32.totalorder %s29, 0
      %p196 = por %p194, %p195
      %p197 = scmp.ne.s32.totalorder %s189, %s191
      %p198 = scmp.eq.s32.totalorder %s34, 1
      %p199 = por %p197, %p198
      %p200 = scmp.ne.s32.totalorder %s191, %s192
      %p201 = scmp.eq.s32.totalorder %s34, 0
      %p202 = por %p200, %p201
      %p203 = scmp.ne.s32.totalorder %s191, %s192
      %p204 = scmp.eq.s32.totalorder %s35, 1
      %p205 = por %p203, %p204
      %p207 = scmp.ne.s32.totalorder %s192, %s206
      %p208 = scmp.eq.s32.totalorder %s35, 0
      %p209 = por %p207, %p208
      %s211 = sadd.s32 %s210, 1
      %p214 = scmp.eq.s32.totalorder %s29, 1
      %p215 = scmp.ne.s32.totalorder %s210, %s212
      %p216 = scmp.eq.s32.totalorder %s29, 0
      %p217 = por %p215, %p216
      %p218 = scmp.ne.s32.totalorder %s210, %s212
      %p219 = scmp.eq.s32.totalorder %s34, 1
      %p220 = por %p218, %p219
      %p221 = scmp.ne.s32.totalorder %s212, %s213
      %p222 = scmp.eq.s32.totalorder %s34, 0
      %p223 = por %p221, %p222
      %p224 = scmp.ne.s32.totalorder %s212, %s213
      %p225 = scmp.eq.s32.totalorder %s35, 1
      %p226 = por %p224, %p225
      %p228 = scmp.ne.s32.totalorder %s213, %s227
      %p229 = scmp.eq.s32.totalorder %s35, 0
      %p230 = por %p228, %p229
      %s232 = sadd.s32 %s231, 1
      %p235 = scmp.eq.s32.totalorder %s29, 1
      %p236 = scmp.ne.s32.totalorder %s231, %s233
      %p237 = scmp.eq.s32.totalorder %s29, 0
      %p238 = por %p236, %p237
      %p239 = scmp.ne.s32.totalorder %s231, %s233
      %p240 = scmp.eq.s32.totalorder %s34, 1
      %p241 = por %p239, %p240
      %p242 = scmp.ne.s32.totalorder %s233, %s234
      %p243 = scmp.eq.s32.totalorder %s34, 0
      %p244 = por %p242, %p243
      %p245 = scmp.ne.s32.totalorder %s233, %s234
      %p246 = scmp.eq.s32.totalorder %s35, 1
      %p247 = por %p245, %p246
      %p249 = scmp.ne.s32.totalorder %s234, %s248
      %p250 = scmp.eq.s32.totalorder %s35, 0
      %p251 = por %p249, %p250
      %s253 = sadd.s32 %s252, 1
      %p256 = scmp.eq.s32.totalorder %s29, 1
      %p257 = scmp.ne.s32.totalorder %s252, %s254
      %p258 = scmp.eq.s32.totalorder %s29, 0
      %p259 = por %p257, %p258
      %p260 = scmp.ne.s32.totalorder %s252, %s254
      %p261 = scmp.eq.s32.totalorder %s34, 1
      %p262 = por %p260, %p261
      %p263 = scmp.ne.s32.totalorder %s254, %s255
      %p264 = scmp.eq.s32.totalorder %s34, 0
      %p265 = por %p263, %p264
      %p266 = scmp.ne.s32.totalorder %s254, %s255
      %p267 = scmp.eq.s32.totalorder %s35, 1
      %p268 = por %p266, %p267
      %p270 = scmp.ne.s32.totalorder %s255, %s269
      %p271 = scmp.eq.s32.totalorder %s35, 0
      %p272 = por %p270, %p271
      %s274 = sadd.s32 %s273, 1
      %p277 = scmp.eq.s32.totalorder %s29, 1
      %p278 = scmp.ne.s32.totalorder %s273, %s275
      %p279 = scmp.eq.s32.totalorder %s29, 0
      %p280 = por %p278, %p279
      %p281 = scmp.ne.s32.totalorder %s273, %s275
      %p282 = scmp.eq.s32.totalorder %s34, 1
      %p283 = por %p281, %p282
      %p284 = scmp.ne.s32.totalorder %s275, %s276
      %p285 = scmp.eq.s32.totalorder %s34, 0
      %p286 = por %p284, %p285
      %p287 = scmp.ne.s32.totalorder %s275, %s276
      %p288 = scmp.eq.s32.totalorder %s35, 1
      %p289 = por %p287, %p288
      %p291 = scmp.ne.s32.totalorder %s276, %s290
      %p292 = scmp.eq.s32.totalorder %s35, 0
      %p293 = por %p291, %p292
      %s295 = sadd.s32 %s294, 1
      %p298 = scmp.eq.s32.totalorder %s29, 1
      %p299 = scmp.ne.s32.totalorder %s294, %s296
      %p300 = scmp.eq.s32.totalorder %s29, 0
      %p301 = por %p299, %p300
      %p302 = scmp.ne.s32.totalorder %s294, %s296
      %p303 = scmp.eq.s32.totalorder %s34, 1
      %p304 = por %p302, %p303
      %p305 = scmp.ne.s32.totalorder %s296, %s297
      %p306 = scmp.eq.s32.totalorder %s34, 0
      %p307 = por %p305, %p306
      %p308 = scmp.ne.s32.totalorder %s296, %s297
      %p309 = scmp.eq.s32.totalorder %s35, 1
      %p310 = por %p308, %p309
      %p312 = scmp.ne.s32.totalorder %s297, %s311
      %p313 = scmp.eq.s32.totalorder %s35, 0
      %p314 = por %p312, %p313
      %s316 = sadd.s32 %s315, 1
      %p319 = scmp.eq.s32.totalorder %s29, 1
      %p320 = scmp.ne.s32.totalorder %s315, %s317
      %p321 = scmp.eq.s32.totalorder %s29, 0
      %p322 = por %p320, %p321
      %p323 = scmp.ne.s32.totalorder %s315, %s317
      %p324 = scmp.eq.s32.totalorder %s34, 1
      %p325 = por %p323, %p324
      %p326 = scmp.ne.s32.totalorder %s317, %s318
      %p327 = scmp.eq.s32.totalorder %s34, 0
      %p328 = por %p326, %p327
      %p329 = scmp.ne.s32.totalorder %s317, %s318
      %p330 = scmp.eq.s32.totalorder %s35, 1
      %p331 = por %p329, %p330
      %p333 = scmp.ne.s32.totalorder %s318, %s332
      %p334 = scmp.eq.s32.totalorder %s35, 0
      %p335 = por %p333, %p334
      %s336 = ssub.s32 %s29, %s36
      %p337 = scmp.eq.s32.totalorder %s336, 0
      %s339 = sadd.s32 %s338, 1
      %s340 = scalar_select %p337, %s338, %s339
      %p343 = pneg %p337
      %p344 = scmp.eq.s32.totalorder %s29, 1
      %p345 = por %p343, %p344
      %p346 = scmp.ne.s32.totalorder %s338, %s341
      %p347 = scmp.eq.s32.totalorder %s29, 0
      %p348 = por %p346, %p347
      %p349 = scmp.ne.s32.totalorder %s338, %s341
      %p350 = scmp.eq.s32.totalorder %s34, 1
      %p351 = por %p349, %p350
      %p352 = scmp.ne.s32.totalorder %s341, %s342
      %p353 = scmp.eq.s32.totalorder %s34, 0
      %p354 = por %p352, %p353
      %p355 = scmp.ne.s32.totalorder %s341, %s342
      %p356 = scmp.eq.s32.totalorder %s35, 1
      %p357 = por %p355, %p356
      %p359 = scmp.ne.s32.totalorder %s342, %s358
      %p360 = scmp.eq.s32.totalorder %s35, 0
      %p361 = por %p359, %p360
      %p362 = scmp.le.s32.totalorder 1, %s29
      %p363 = scmp.lt.s32.totalorder %s29, 3
      %p364 = pnand %p362, %p363
      %p365 = pneg %p364
      // Predicated region
      $region9: #{forward.1} parent=5 // pred_check
        _
      $region10: #{forward.1} parent=5 // pred_check_branch
        %367 = sbr.rel (%p364) target = $region12
      $region11: #{forward.1} parent=5 // pred_region
        %s368 = ssub.s32 %s29, 1
        // Predicated region
        $region13: #{forward.1} parent=11 // pred_check
          %p369 = pneg %p76
        $region14: #{forward.1} parent=11 // pred_check_branch
          %371 = sbr.rel (%p369) target = $region16
        $region15: #{forward.1} parent=11 // pred_region
          _
        $region16: #{forward.1} parent=11 // pred_fallthru
          _
        // Predicated region
        $region17: #{forward.1} parent=11 // pred_check
          %p372 = pneg %p97
        $region18: #{forward.1} parent=11 // pred_check_branch
          %374 = sbr.rel (%p372) target = $region20
        $region19: #{forward.1} parent=11 // pred_region
          %s376 = ssub.s32 16, 16
          %377 = vsyncadd [#allocation4], %s376
          %s379 = sshll.u32 [#allocation3], 4
          %s380 = int_to_ptr.vmem [resolvable:$true] %s379
          %382 = dma.hbm_to_vmem [thread:$0]  %s2, 16, %s380, [#allocation4]
        $region20: #{forward.1} parent=11 // pred_fallthru
          _
        // Predicated region
        $region21: #{forward.1} parent=11 // pred_check
          %p383 = pneg %p118
        $region22: #{forward.1} parent=11 // pred_check_branch
          %385 = sbr.rel (%p383) target = $region24
        $region23: #{forward.1} parent=11 // pred_region
          %s387 = ssub.s32 16, 16
          %388 = vsyncadd [#allocation7], %s387
          %s390 = sshll.u32 [#allocation6], 4
          %s391 = int_to_ptr.vmem [resolvable:$true] %s390
          %393 = dma.hbm_to_vmem [thread:$0]  %s3, 16, %s391, [#allocation7]
        $region24: #{forward.1} parent=11 // pred_fallthru
          _
        // Predicated region
        $region25: #{forward.1} parent=11 // pred_check
          %p394 = pneg %p139
        $region26: #{forward.1} parent=11 // pred_check_branch
          %396 = sbr.rel (%p394) target = $region28
        $region27: #{forward.1} parent=11 // pred_region
          %s398 = ssub.s32 86400, 86400
          %399 = vsyncadd [#allocation7], %s398
          %s400 = sshll.u32 [#allocation8], 4
          %s401 = int_to_ptr.vmem [resolvable:$true] %s400
          %406 = dma.hbm_to_vmem [thread:$0]  %s4, 86400, %s401, [#allocation7], 64, 64, 4
        $region28: #{forward.1} parent=11 // pred_fallthru
          _
        // Predicated region
        $region29: #{forward.1} parent=11 // pred_check
          %p407 = pneg %p160
        $region30: #{forward.1} parent=11 // pred_check_branch
          %409 = sbr.rel (%p407) target = $region32
        $region31: #{forward.1} parent=11 // pred_region
          %s411 = ssub.s32 800, 800
          %412 = vsyncadd [#allocation10], %s411
          %s413 = sshll.u32 [#allocation9], 4
          %s414 = int_to_ptr.vmem [resolvable:$true] %s413
          %419 = dma.hbm_to_vmem [thread:$0]  %s5, 800, %s414, [#allocation10], 16, 16, 1
        $region32: #{forward.1} parent=11 // pred_fallthru
          _
        // Predicated region
        $region33: #{forward.1} parent=11 // pred_check
          %p420 = pneg %p181
        $region34: #{forward.1} parent=11 // pred_check_branch
          %422 = sbr.rel (%p420) target = $region36
        $region35: #{forward.1} parent=11 // pred_region
          %s424 = ssub.s32 800, 800
          %425 = vsyncadd [#allocation10], %s424
          %s426 = sshll.u32 [#allocation11], 4
          %s427 = int_to_ptr.vmem [resolvable:$true] %s426
          %432 = dma.hbm_to_vmem [thread:$0]  %s6, 800, %s427, [#allocation10], 16, 16, 1
        $region36: #{forward.1} parent=11 // pred_fallthru
          _
        // Predicated region
        $region37: #{forward.1} parent=11 // pred_check
          %p433 = pneg %p202
        $region38: #{forward.1} parent=11 // pred_check_branch
          %435 = sbr.rel (%p433) target = $region40
        $region39: #{forward.1} parent=11 // pred_region
          _
        $region40: #{forward.1} parent=11 // pred_fallthru
          _
        // Predicated region
        $region41: #{forward.1} parent=11 // pred_check
          %p436 = pneg %p223
        $region42: #{forward.1} parent=11 // pred_check_branch
          %438 = sbr.rel (%p436) target = $region44
        $region43: #{forward.1} parent=11 // pred_region
          %s440 = ssub.s32 16, 16
          %441 = vsyncadd [#allocation13], %s440
          %s443 = sshll.u32 [#allocation12], 4
          %s444 = int_to_ptr.vmem [resolvable:$true] %s443
          %446 = dma.hbm_to_vmem [thread:$0]  %s8, 16, %s444, [#allocation13]
        $region44: #{forward.1} parent=11 // pred_fallthru
          _
        // Predicated region
        $region45: #{forward.1} parent=11 // pred_check
          %p447 = pneg %p244
        $region46: #{forward.1} parent=11 // pred_check_branch
          %449 = sbr.rel (%p447) target = $region48
        $region47: #{forward.1} parent=11 // pred_region
          %s451 = ssub.s32 16, 16
          %452 = vsyncadd [#allocation13], %s451
          %s454 = sshll.u32 [#allocation14], 4
          %s455 = int_to_ptr.vmem [resolvable:$true] %s454
          %457 = dma.hbm_to_vmem [thread:$0]  %s9, 16, %s455, [#allocation13]
        $region48: #{forward.1} parent=11 // pred_fallthru
          _
        // Predicated region
        $region49: #{forward.1} parent=11 // pred_check
          %p458 = pneg %p265
        $region50: #{forward.1} parent=11 // pred_check_branch
          %460 = sbr.rel (%p458) target = $region52
        $region51: #{forward.1} parent=11 // pred_region
          %s462 = ssub.s32 17408, 17408
          %463 = vsyncadd [#allocation16], %s462
          %s464 = sshll.u32 [#allocation15], 4
          %s465 = int_to_ptr.vmem [resolvable:$true] %s464
          %470 = dma.hbm_to_vmem [thread:$0]  %s10, 17408, %s465, [#allocation16], 128, 128, 8
        $region52: #{forward.1} parent=11 // pred_fallthru
          _
        // Predicated region
        $region53: #{forward.1} parent=11 // pred_check
          %p471 = pneg %p286
        $region54: #{forward.1} parent=11 // pred_check_branch
          %473 = sbr.rel (%p471) target = $region56
        $region55: #{forward.1} parent=11 // pred_region
          %s475 = ssub.s32 32, 32
          %476 = vsyncadd [#allocation16], %s475
          %s478 = sshll.u32 [#allocation17], 4
          %s479 = int_to_ptr.vmem [resolvable:$true] %s478
          %481 = dma.hbm_to_vmem [thread:$0]  %s11, 32, %s479, [#allocation16]
        $region56: #{forward.1} parent=11 // pred_fallthru
          _
        // Predicated region
        $region57: #{forward.1} parent=11 // pred_check
          %p482 = pneg %p307
        $region58: #{forward.1} parent=11 // pred_check_branch
          %484 = sbr.rel (%p482) target = $region60
        $region59: #{forward.1} parent=11 // pred_region
          _
        $region60: #{forward.1} parent=11 // pred_fallthru
          _
        // Predicated region
        $region61: #{forward.1} parent=11 // pred_check
          %p485 = pneg %p328
        $region62: #{forward.1} parent=11 // pred_check_branch
          %487 = sbr.rel (%p485) target = $region64
        $region63: #{forward.1} parent=11 // pred_region
          %s489 = ssub.s32 16, 16
          %490 = vsyncadd [#allocation19], %s489
          %s492 = sshll.u32 [#allocation18], 4
          %s493 = int_to_ptr.vmem [resolvable:$true] %s492
          %495 = dma.hbm_to_vmem [thread:$0]  %s13, 16, %s493, [#allocation19]
        $region64: #{forward.1} parent=11 // pred_fallthru
          _
      $region12: #{forward.1} parent=5 // pred_fallthru
        _
      %p496 = scmp.lt.s32.totalorder %s29, 2
      // Predicated region
      $region65: #{forward.1} parent=5 // pred_check
        %p497 = pneg %p496
      $region66: #{forward.1} parent=5 // pred_check_branch
        %499 = sbr.rel (%p497) target = $region68
      $region67: #{forward.1} parent=5 // pred_region
        // Predicated region
        $region69: #{forward.1} parent=67 // pred_check
          %p500 = pneg %p49
        $region70: #{forward.1} parent=67 // pred_check_branch
          %502 = sbr.rel (%p500) target = $region72
        $region71: #{forward.1} parent=67 // pred_region
          %p503 = scmp.lt.s32.totalorder %s29, 1
          %s504 = scalar_select %p503, %s29, 1
          %s505 = smul.addr %s504, 5
          %s506 = smul.addr %s505, 8
          %s507 = scalar_lea.vmem %s0, %s506
        $region72: #{forward.1} parent=67 // pred_fallthru
          _
      $region68: #{forward.1} parent=5 // pred_fallthru
        _
      %p508 = scmp.le.s32.totalorder 1, %s29
      %p509 = scmp.lt.s32.totalorder %s29, 3
      %p510 = pnand %p508, %p509
      %p511 = pneg %p510
      // Predicated region
      $region73: #{forward.1} parent=5 // pred_check
        _
      $region74: #{forward.1} parent=5 // pred_check_branch
        %513 = sbr.rel (%p510) target = $region76
      $region75: #{forward.1} parent=5 // pred_region
        %s514 = ssub.s32 %s29, 1
        // Predicated region
        $region77: #{forward.1} parent=75 // pred_check
          %p515 = pneg %p97
        $region78: #{forward.1} parent=75 // pred_check_branch
          %517 = sbr.rel (%p515) target = $region80
        $region79: #{forward.1} parent=75 // pred_region
          %518 = dma.done [#allocation4], 16
        $region80: #{forward.1} parent=75 // pred_fallthru
          _
        // Predicated region
        $region81: #{forward.1} parent=75 // pred_check
          %p519 = pneg %p118
        $region82: #{forward.1} parent=75 // pred_check_branch
          %521 = sbr.rel (%p519) target = $region84
        $region83: #{forward.1} parent=75 // pred_region
          %522 = dma.done [#allocation7], 16
        $region84: #{forward.1} parent=75 // pred_fallthru
          _
        // Predicated region
        $region85: #{forward.1} parent=75 // pred_check
          %p523 = pneg %p139
        $region86: #{forward.1} parent=75 // pred_check_branch
          %525 = sbr.rel (%p523) target = $region88
        $region87: #{forward.1} parent=75 // pred_region
          %526 = dma.done [#allocation7], 86400
        $region88: #{forward.1} parent=75 // pred_fallthru
          _
        // Predicated region
        $region89: #{forward.1} parent=75 // pred_check
          %p527 = pneg %p160
        $region90: #{forward.1} parent=75 // pred_check_branch
          %529 = sbr.rel (%p527) target = $region92
        $region91: #{forward.1} parent=75 // pred_region
          %530 = dma.done [#allocation10], 800
        $region92: #{forward.1} parent=75 // pred_fallthru
          _
        // Predicated region
        $region93: #{forward.1} parent=75 // pred_check
          %p531 = pneg %p181
        $region94: #{forward.1} parent=75 // pred_check_branch
          %533 = sbr.rel (%p531) target = $region96
        $region95: #{forward.1} parent=75 // pred_region
          %534 = dma.done [#allocation10], 800
        $region96: #{forward.1} parent=75 // pred_fallthru
          _
        // Predicated region
        $region97: #{forward.1} parent=75 // pred_check
          %p535 = pneg %p223
        $region98: #{forward.1} parent=75 // pred_check_branch
          %537 = sbr.rel (%p535) target = $region100
        $region99: #{forward.1} parent=75 // pred_region
          %538 = dma.done [#allocation13], 16
        $region100: #{forward.1} parent=75 // pred_fallthru
          _
        // Predicated region
        $region101: #{forward.1} parent=75 // pred_check
          %p539 = pneg %p244
        $region102: #{forward.1} parent=75 // pred_check_branch
          %541 = sbr.rel (%p539) target = $region104
        $region103: #{forward.1} parent=75 // pred_region
          %542 = dma.done [#allocation13], 16
        $region104: #{forward.1} parent=75 // pred_fallthru
          _
        // Predicated region
        $region105: #{forward.1} parent=75 // pred_check
          %p543 = pneg %p265
        $region106: #{forward.1} parent=75 // pred_check_branch
          %545 = sbr.rel (%p543) target = $region108
        $region107: #{forward.1} parent=75 // pred_region
          %546 = dma.done [#allocation16], 17408
        $region108: #{forward.1} parent=75 // pred_fallthru
          _
        // Predicated region
        $region109: #{forward.1} parent=75 // pred_check
          %p547 = pneg %p286
        $region110: #{forward.1} parent=75 // pred_check_branch
          %549 = sbr.rel (%p547) target = $region112
        $region111: #{forward.1} parent=75 // pred_region
          %550 = dma.done [#allocation16], 32
        $region112: #{forward.1} parent=75 // pred_fallthru
          _
        // Predicated region
        $region113: #{forward.1} parent=75 // pred_check
          %p551 = pneg %p328
        $region114: #{forward.1} parent=75 // pred_check_branch
          %553 = sbr.rel (%p551) target = $region116
        $region115: #{forward.1} parent=75 // pred_region
          %554 = dma.done [#allocation19], 16
        $region116: #{forward.1} parent=75 // pred_fallthru
          _
        %p555 = scmp.lt.s32.totalorder %s34, 1
        %s556 = scalar_select %p555, %s34, 1
        %s557 = smul.addr %s556, 5
        %s558 = smul.addr %s557, 8
        %s559 = scalar_lea.vmem %s0, %s558
        %p560 = pneg %p55
        %p561 = pneg %p52
        %p562 = pneg %p76
        %p563 = pneg %p73
        %p564 = pneg %p97
        %p565 = pneg %p94
        %p566 = pneg %p118
        %p567 = pneg %p115
        %p568 = pneg %p139
        %p569 = pneg %p136
        %p570 = pneg %p160
        %p571 = pneg %p157
        %p572 = pneg %p181
        %p573 = pneg %p178
        %p574 = pneg %p202
        %p575 = pneg %p199
        %p576 = pneg %p223
        %p577 = pneg %p220
        %p578 = pneg %p244
        %p579 = pneg %p241
        %p580 = pneg %p265
        %p581 = pneg %p262
        %p582 = pneg %p286
        %p583 = pneg %p283
        %p584 = pneg %p307
        %p585 = pneg %p304
        %p586 = pneg %p328
        %p587 = pneg %p325
        %p588 = pneg %p354
        %p589 = pneg %p351
        %s590 = sand.u32 %s341, 1
        %s591 = scalar_lea.sflag [#allocation5], %s590
        %s592 = sand.u32 %s341, 1
        %s593 = scalar_lea.vmem [#allocation20], %s592
        %p594 = scmp.lt.s32.totalorder %s34, 1
        %s595 = scalar_select %p594, %s34, 1
        %s596 = smul.addr %s595, 5
        %s597 = smul.addr %s596, 8
        %s598 = scalar_lea.vmem %s0, %s597
        %v599 = vld [vmem:[%s1] sm:$0xff]
        %v600 = vld [vmem:[%s1 + $0x8] sm:$0xff]
        %v601 = vld [vmem:[%s1 + $0x10] sm:$0xff]
        %v602 = vld [vmem:[%s1 + $0x18] sm:$0xff]
        %v603 = vld [vmem:[%s1 + $0x20] sm:$0xff]
        %v604 = vld [vmem:[%s1 + $0x28] sm:$0xff]
        %v605 = vld [vmem:[%s1 + $0x30] sm:$0xff]
        %v606 = vld [vmem:[%s1 + $0x38] sm:$0xff]
        %v607 = vld [vmem:[%s1 + $0x40] sm:$0xff]
        %v608 = vld [vmem:[%s1 + $0x48] sm:$0xff]
        %v609 = vld [vmem:[%s1 + $0x50] sm:$0xff]
        %v610 = vld [vmem:[%s1 + $0x58] sm:$0xff]
        %v611 = vld [vmem:[%s1 + $0x60] sm:$0x1]
        %v612 = vld [vmem:[%s1 + $0x68] sm:$0xff]
        %v613 = vld [vmem:[%s1 + $0x70] sm:$0xff]
        %v614 = vld [vmem:[%s1 + $0x78] sm:$0xff]
        %v615 = vld [vmem:[%s1 + $0x80] sm:$0xff]
        %v616 = vld [vmem:[%s1 + $0x88] sm:$0xff]
        %v617 = vld [vmem:[%s1 + $0x90] sm:$0xff]
        %v618 = vld [vmem:[%s1 + $0x98] sm:$0xff]
        %v619 = vld [vmem:[%s1 + $0xa0] sm:$0xff]
        %v620 = vld [vmem:[%s1 + $0xa8] sm:$0xff]
        %v621 = vld [vmem:[%s1 + $0xb0] sm:$0xff]
        %v622 = vld [vmem:[%s1 + $0xb8] sm:$0xff]
        %v623 = vld [vmem:[%s1 + $0xc0] sm:$0xff]
        %v624 = vld [vmem:[%s1 + $0xc8] sm:$0x1]
        %v625 = vld [vmem:[%s1 + $0xd0] sm:$0xff]
        %v626 = vld [vmem:[%s1 + $0xd8] sm:$0xff]
        %v627 = vld [vmem:[%s1 + $0xe0] sm:$0xff]
        %v628 = vld [vmem:[%s1 + $0xe8] sm:$0xff]
        %v629 = vld [vmem:[%s1 + $0xf0] sm:$0xff]
        %v630 = vld [vmem:[%s1 + $0xf8] sm:$0xff]
        %v631 = vld [vmem:[%s1 + $0x100] sm:$0xff]
        %v632 = vld [vmem:[%s1 + $0x108] sm:$0xff]
        %v633 = vld [vmem:[%s1 + $0x110] sm:$0xff]
        %v634 = vld [vmem:[%s1 + $0x118] sm:$0xff]
        %v635 = vld [vmem:[%s1 + $0x120] sm:$0xff]
        %v636 = vld [vmem:[%s1 + $0x128] sm:$0xff]
        %v637 = vld [vmem:[%s1 + $0x130] sm:$0x1]
        %v638 = vld [vmem:[#allocation3] sm:$0x1]
        %v639 = vld [vmem:[#allocation6] sm:$0x1]
        %v640 = vld [vmem:[%s598] sm:$0xff]
        %v641 = vld [vmem:[%s598 + $0x8] sm:$0xff]
        %v642 = vld [vmem:[%s598 + $0x10] sm:$0xff]
        %v643 = vld [vmem:[%s598 + $0x18] sm:$0xff]
        %v644 = vld [vmem:[%s598 + $0x20] sm:$0x3]
        %v645 = vld [vmem:[%s598 + $0x1] sm:$0xff]
        %v646 = vld [vmem:[%s598 + $0x9] sm:$0xff]
        %v647 = vld [vmem:[%s598 + $0x11] sm:$0xff]
        %v648 = vld [vmem:[%s598 + $0x19] sm:$0xff]
        %v649 = vld [vmem:[%s598 + $0x21] sm:$0x3]
        %vm650 = vcmask 793600
        %v652 = vsel %vm650, %v645, 0
        %v655 = vsel %vm650, %v646, 0
        %v658 = vsel %vm650, %v647, 0
        %v661 = vsel %vm650, %v648, 0
        %v664 = vsel %vm650, %v649, 0
        %vm666 = vcmask 1040384
        %v668 = vsel %vm666, %v624, 0
        %670 = vmatprep.subr.mxu0 0.0
        %671 = vmatpush1.msra.mxu0 %v612
        %672 = vmatprep.subr.mxu0 0.0
        %673 = vmatpush1.msra.mxu0 %v613
        %674 = vmatprep.subr.mxu0 0.0
        %675 = vmatpush1.msra.mxu0 %v614
        %676 = vmatprep.subr.mxu0 0.0
        %677 = vmatpush1.msra.mxu0 %v615
        %678 = vmatprep.subr.mxu0 0.0
        %679 = vmatpush1.msra.mxu0 %v616
        %680 = vmatprep.subr.mxu0 0.0
        %681 = vmatpush1.msra.mxu0 %v617
        %682 = vmatprep.subr.mxu0 0.0
        %683 = vmatpush1.msra.mxu0 %v618
        %684 = vmatprep.subr.mxu0 0.0
        %685 = vmatpush1.msra.mxu0 %v619
        %686 = vmatprep.subr.mxu0 0.0
        %687 = vmatpush1.msra.mxu0 %v620
        %688 = vmatprep.subr.mxu0 0.0
        %689 = vmatpush1.msra.mxu0 %v621
        %690 = vmatprep.subr.mxu0 0.0
        %691 = vmatpush1.msra.mxu0 %v622
        %692 = vmatprep.subr.mxu0 0.0
        %693 = vmatpush1.msra.mxu0 %v623
        %694 = vmatprep.subr.mxu0 0.0
        %695 = vmatpush1.msra.mxu0 %v668
        %696 = vmatprep.subr.mxu0 0.0
        %697 = vmatpush1.msra.mxu0 0.0
        %698 = vmatprep.subr.mxu0 0.0
        %699 = vmatpush1.msra.mxu0 0.0
        %700 = vmatprep.subr.mxu0 0.0
        %701 = vmatpush1.msra.mxu0 0.0
        %702 = vmatprep.subr.mxu0 0.0
        %703 = vmatpush1.msra.mxu0 0.0
        %704 = vmatprep.subr.mxu0 0.0
        %705 = vmatpush1.msra.mxu0 0.0
        %706 = vmatprep.subr.mxu0 0.0
        %707 = vmatpush1.msra.mxu0 0.0
        %708 = vmatprep.subr.mxu0 0.0
        %709 = vmatpush1.msra.mxu0 0.0
        %710 = vmatprep.subr.mxu0 0.0
        %711 = vmatpush1.msra.mxu0 0.0
        %712 = vmatprep.subr.mxu0 0.0
        %713 = vmatpush1.msra.mxu0 0.0
        %714 = vmatprep.subr.mxu0 0.0
        %715 = vmatpush1.msra.mxu0 0.0
        %716 = vmatprep.subr.mxu0 0.0
        %717 = vmatpush1.msra.mxu0 0.0
        %718 = vmatprep.subr.mxu0 0.0
        %719 = vmatpush1.msra.mxu0 0.0
        %720 = vmatprep.subr.mxu0 0.0
        %721 = vmatpush1.msra.mxu0 0.0
        %722 = vmatprep.subr.mxu0 0.0
        %723 = vmatpush1.msra.mxu0 0.0
        %724 = vmatprep.subr.mxu0 0.0
        %725 = vmatpush1.msra.mxu0 0.0
        %726 = vmatprep.subr.mxu0 0.0
        %727 = vmatpush1.msra.mxu0 0.0
        %728 = vmatprep.subr.mxu0 0.0
        %729 = vmatpush1.msra.mxu0 0.0
        %730 = vmatprep.subr.mxu0 0.0
        %731 = vmatpush1.msra.mxu0 0.0
        %732 = vmatprep.subr.mxu0 0.0
        %733 = vmatpush1.msra.mxu0 0.0
        %734 = vmatprep.mubr.f32.mxu0 0.0
        %735 = vmatmul.mubr.f32.gmra.mrb[0].mxu0 %v652
        %v736 = vpop.f32.mrb[0].mxu0
        %v737 = vadd.f32 0.0, %v736
        %v738 = vpop.f32.mrb[0].mxu0
        %739 = vmatprep.mubr.f32.mxu0 0.0
        %740 = vmatmul.mubr.f32.gmra.mrb[0].mxu0 %v655
        %v741 = vpop.f32.mrb[0].mxu0
        %v742 = vadd.f32 0.0, %v741
        %v743 = vpop.f32.mrb[0].mxu0
        %744 = vmatprep.mubr.f32.mxu0 0.0
        %745 = vmatmul.mubr.f32.gmra.mrb[0].mxu0 %v658
        %v746 = vpop.f32.mrb[0].mxu0
        %v747 = vadd.f32 0.0, %v746
        %v748 = vpop.f32.mrb[0].mxu0
        %749 = vmatprep.mubr.f32.mxu0 0.0
        %750 = vmatmul.mubr.f32.gmra.mrb[0].mxu0 %v661
        %v751 = vpop.f32.mrb[0].mxu0
        %v752 = vadd.f32 0.0, %v751
        %v753 = vpop.f32.mrb[0].mxu0
        %754 = vmatprep.mubr.f32.mxu0 0.0
        %755 = vmatmul.mubr.f32.gmra.mrb[0].mxu0 %v664
        %v756 = vpop.f32.mrb[0].mxu0
        %v757 = vadd.f32 0.0, %v756
        %v758 = vpop.f32.mrb[0].mxu0
        %759 = vdwg.mxu0
        %v761 = vsel %vm650, %v640, 0
        %v764 = vsel %vm650, %v641, 0
        %v767 = vsel %vm650, %v642, 0
        %v770 = vsel %vm650, %v643, 0
        %v773 = vsel %vm650, %v644, 0
        %v776 = vsel %vm666, %v611, 0
        %778 = vmatprep.subr.mxu0 0.0
        %779 = vmatpush1.msra.mxu0 %v599
        %780 = vmatprep.subr.mxu0 0.0
        %781 = vmatpush1.msra.mxu0 %v600
        %782 = vmatprep.subr.mxu0 0.0
        %783 = vmatpush1.msra.mxu0 %v601
        %784 = vmatprep.subr.mxu0 0.0
        %785 = vmatpush1.msra.mxu0 %v602
        %786 = vmatprep.subr.mxu0 0.0
        %787 = vmatpush1.msra.mxu0 %v603
        %788 = vmatprep.subr.mxu0 0.0
        %789 = vmatpush1.msra.mxu0 %v604
        %790 = vmatprep.subr.mxu0 0.0
        %791 = vmatpush1.msra.mxu0 %v605
        %792 = vmatprep.subr.mxu0 0.0
        %793 = vmatpush1.msra.mxu0 %v606
        %794 = vmatprep.subr.mxu0 0.0
        %795 = vmatpush1.msra.mxu0 %v607
        %796 = vmatprep.subr.mxu0 0.0
        %797 = vmatpush1.msra.mxu0 %v608
        %798 = vmatprep.subr.mxu0 0.0
        %799 = vmatpush1.msra.mxu0 %v609
        %800 = vmatprep.subr.mxu0 0.0
        %801 = vmatpush1.msra.mxu0 %v610
        %802 = vmatprep.subr.mxu0 0.0
        %803 = vmatpush1.msra.mxu0 %v776
        %804 = vmatprep.subr.mxu0 0.0
        %805 = vmatpush1.msra.mxu0 0.0
        %806 = vmatprep.subr.mxu0 0.0
        %807 = vmatpush1.msra.mxu0 0.0
        %808 = vmatprep.subr.mxu0 0.0
        %809 = vmatpush1.msra.mxu0 0.0
        %810 = vmatprep.subr.mxu0 0.0
        %811 = vmatpush1.msra.mxu0 0.0
        %812 = vmatprep.subr.mxu0 0.0
        %813 = vmatpush1.msra.mxu0 0.0
        %814 = vmatprep.subr.mxu0 0.0
        %815 = vmatpush1.msra.mxu0 0.0
        %816 = vmatprep.subr.mxu0 0.0
        %817 = vmatpush1.msra.mxu0 0.0
        %818 = vmatprep.subr.mxu0 0.0
        %819 = vmatpush1.msra.mxu0 0.0
        %820 = vmatprep.subr.mxu0 0.0
        %821 = vmatpush1.msra.mxu0 0.0
        %822 = vmatprep.subr.mxu0 0.0
        %823 = vmatpush1.msra.mxu0 0.0
        %824 = vmatprep.subr.mxu0 0.0
        %825 = vmatpush1.msra.mxu0 0.0
        %826 = vmatprep.subr.mxu0 0.0
        %827 = vmatpush1.msra.mxu0 0.0
        %828 = vmatprep.subr.mxu0 0.0
        %829 = vmatpush1.msra.mxu0 0.0
        %830 = vmatprep.subr.mxu0 0.0
        %831 = vmatpush1.msra.mxu0 0.0
        %832 = vmatprep.subr.mxu0 0.0
        %833 = vmatpush1.msra.mxu0 0.0
        %834 = vmatprep.subr.mxu0 0.0
        %835 = vmatpush1.msra.mxu0 0.0
        %836 = vmatprep.subr.mxu0 0.0
        %837 = vmatpush1.msra.mxu0 0.0
        %838 = vmatprep.subr.mxu0 0.0
        %839 = vmatpush1.msra.mxu0 0.0
        %840 = vmatprep.subr.mxu0 0.0
        %841 = vmatpush1.msra.mxu0 0.0
        %842 = vmatprep.mubr.f32.mxu0 0.0
        %843 = vmatmul.mubr.f32.gmra.mrb[0].mxu0 %v761
        %v844 = vpop.f32.mrb[0].mxu0
        %v845 = vadd.f32 %v737, %v844
        %v846 = vpop.f32.mrb[0].mxu0
        %847 = vmatprep.mubr.f32.mxu0 0.0
        %848 = vmatmul.mubr.f32.gmra.mrb[0].mxu0 %v764
        %v849 = vpop.f32.mrb[0].mxu0
        %v850 = vadd.f32 %v742, %v849
        %v851 = vpop.f32.mrb[0].mxu0
        %852 = vmatprep.mubr.f32.mxu0 0.0
        %853 = vmatmul.mubr.f32.gmra.mrb[0].mxu0 %v767
        %v854 = vpop.f32.mrb[0].mxu0
        %v855 = vadd.f32 %v747, %v854
        %v856 = vpop.f32.mrb[0].mxu0
        %857 = vmatprep.mubr.f32.mxu0 0.0
        %858 = vmatmul.mubr.f32.gmra.mrb[0].mxu0 %v770
        %v859 = vpop.f32.mrb[0].mxu0
        %v860 = vadd.f32 %v752, %v859
        %v861 = vpop.f32.mrb[0].mxu0
        %862 = vmatprep.mubr.f32.mxu0 0.0
        %863 = vmatmul.mubr.f32.gmra.mrb[0].mxu0 %v773
        %v864 = vpop.f32.mrb[0].mxu0
        %v865 = vadd.f32 %v757, %v864
        %v866 = vpop.f32.mrb[0].mxu0
        %867 = vdwg.mxu0
        %v868 = vld [vmem:[%s598 + $0x2] sm:$0xff]
        %v869 = vld [vmem:[%s598 + $0xa] sm:$0xff]
        %v870 = vld [vmem:[%s598 + $0x12] sm:$0xff]
        %v871 = vld [vmem:[%s598 + $0x1a] sm:$0xff]
        %v872 = vld [vmem:[%s598 + $0x22] sm:$0x3]
        %v874 = vsel %vm650, %v868, 0
        %v877 = vsel %vm650, %v869, 0
        %v880 = vsel %vm650, %v870, 0
        %v883 = vsel %vm650, %v871, 0
        %v886 = vsel %vm650, %v872, 0
        %v889 = vsel %vm666, %v637, 0
        %891 = vmatprep.subr.mxu0 0.0
        %892 = vmatpush1.msra.mxu0 %v625
        %893 = vmatprep.subr.mxu0 0.0
        %894 = vmatpush1.msra.mxu0 %v626
        %895 = vmatprep.subr.mxu0 0.0
        %896 = vmatpush1.msra.mxu0 %v627
        %897 = vmatprep.subr.mxu0 0.0
        %898 = vmatpush1.msra.mxu0 %v628
        %899 = vmatprep.subr.mxu0 0.0
        %900 = vmatpush1.msra.mxu0 %v629
        %901 = vmatprep.subr.mxu0 0.0
        %902 = vmatpush1.msra.mxu0 %v630
        %903 = vmatprep.subr.mxu0 0.0
        %904 = vmatpush1.msra.mxu0 %v631
        %905 = vmatprep.subr.mxu0 0.0
        %906 = vmatpush1.msra.mxu0 %v632
        %907 = vmatprep.subr.mxu0 0.0
        %908 = vmatpush1.msra.mxu0 %v633
        %909 = vmatprep.subr.mxu0 0.0
        %910 = vmatpush1.msra.mxu0 %v634
        %911 = vmatprep.subr.mxu0 0.0
        %912 = vmatpush1.msra.mxu0 %v635
        %913 = vmatprep.subr.mxu0 0.0
        %914 = vmatpush1.msra.mxu0 %v636
        %915 = vmatprep.subr.mxu0 0.0
        %916 = vmatpush1.msra.mxu0 %v889
        %917 = vmatprep.subr.mxu0 0.0
        %918 = vmatpush1.msra.mxu0 0.0
        %919 = vmatprep.subr.mxu0 0.0
        %920 = vmatpush1.msra.mxu0 0.0
        %921 = vmatprep.subr.mxu0 0.0
        %922 = vmatpush1.msra.mxu0 0.0
        %923 = vmatprep.subr.mxu0 0.0
        %924 = vmatpush1.msra.mxu0 0.0
        %925 = vmatprep.subr.mxu0 0.0
        %926 = vmatpush1.msra.mxu0 0.0
        %927 = vmatprep.subr.mxu0 0.0
        %928 = vmatpush1.msra.mxu0 0.0
        %929 = vmatprep.subr.mxu0 0.0
        %930 = vmatpush1.msra.mxu0 0.0
        %931 = vmatprep.subr.mxu0 0.0
        %932 = vmatpush1.msra.mxu0 0.0
        %933 = vmatprep.subr.mxu0 0.0
        %934 = vmatpush1.msra.mxu0 0.0
        %935 = vmatprep.subr.mxu0 0.0
        %936 = vmatpush1.msra.mxu0 0.0
        %937 = vmatprep.subr.mxu0 0.0
        %938 = vmatpush1.msra.mxu0 0.0
        %939 = vmatprep.subr.mxu0 0.0
        %940 = vmatpush1.msra.mxu0 0.0
        %941 = vmatprep.subr.mxu0 0.0
        %942 = vmatpush1.msra.mxu0 0.0
        %943 = vmatprep.subr.mxu0 0.0
        %944 = vmatpush1.msra.mxu0 0.0
        %945 = vmatprep.subr.mxu0 0.0
        %946 = vmatpush1.msra.mxu0 0.0
        %947 = vmatprep.subr.mxu0 0.0
        %948 = vmatpush1.msra.mxu0 0.0
        %949 = vmatprep.subr.mxu0 0.0
        %950 = vmatpush1.msra.mxu0 0.0
        %951 = vmatprep.subr.mxu0 0.0
        %952 = vmatpush1.msra.mxu0 0.0
        %953 = vmatprep.subr.mxu0 0.0
        %954 = vmatpush1.msra.mxu0 0.0
        %955 = vmatprep.mubr.f32.mxu0 0.0
        %956 = vmatmul.mubr.f32.gmra.mrb[0].mxu0 %v874
        %v957 = vpop.f32.mrb[0].mxu0
        %v958 = vadd.f32 0.0, %v957
        %v959 = vpop.f32.mrb[0].mxu0
        %960 = vmatprep.mubr.f32.mxu0 0.0
        %961 = vmatmul.mubr.f32.gmra.mrb[0].mxu0 %v877
        %v962 = vpop.f32.mrb[0].mxu0
        %v963 = vadd.f32 0.0, %v962
        %v964 = vpop.f32.mrb[0].mxu0
        %965 = vmatprep.mubr.f32.mxu0 0.0
        %966 = vmatmul.mubr.f32.gmra.mrb[0].mxu0 %v880
        %v967 = vpop.f32.mrb[0].mxu0
        %v968 = vadd.f32 0.0, %v967
        %v969 = vpop.f32.mrb[0].mxu0
        %970 = vmatprep.mubr.f32.mxu0 0.0
        %971 = vmatmul.mubr.f32.gmra.mrb[0].mxu0 %v883
        %v972 = vpop.f32.mrb[0].mxu0
        %v973 = vadd.f32 0.0, %v972
        %v974 = vpop.f32.mrb[0].mxu0
        %975 = vmatprep.mubr.f32.mxu0 0.0
        %976 = vmatmul.mubr.f32.gmra.mrb[0].mxu0 %v886
        %v977 = vpop.f32.mrb[0].mxu0
        %v978 = vadd.f32 0.0, %v977
        %v979 = vpop.f32.mrb[0].mxu0
        %980 = vdwg.mxu0
        %v981 = vadd.f32 %v845, %v958
        %v982 = vadd.f32 %v850, %v963
        %v983 = vadd.f32 %v855, %v968
        %v984 = vadd.f32 %v860, %v973
        %v985 = vadd.f32 %v865, %v978
        %v987 = vlaneseq
        %v988 = vshrl.u32 %v987, 7
        %v989 = vsub.s32 0, %v988
        %v990 = vrot.slane %v638, %v989
        %v992 = vmul.f32 %v981, %v990
        %v993 = vmul.f32 %v982, %v990
        %v994 = vmul.f32 %v983, %v990
        %v995 = vmul.f32 %v984, %v990
        %v996 = vmul.f32 %v985, %v990
        %v998 = vlaneseq
        %v999 = vshrl.u32 %v998, 7
        %v1000 = vsub.s32 0, %v999
        %v1001 = vrot.slane %v639, %v1000
        %v1003 = vadd.f32 %v992, %v1001
        %v1004 = vadd.f32 %v993, %v1001
        %v1005 = vadd.f32 %v994, %v1001
        %v1006 = vadd.f32 %v995, %v1001
        %v1007 = vadd.f32 %v996, %v1001
        %v1008 = vmax.f32 %v1003, 0.0
        %v1009 = vmax.f32 %v1004, 0.0
        %v1010 = vmax.f32 %v1005, 0.0
        %v1011 = vmax.f32 %v1006, 0.0
        %v1012 = vmax.f32 %v1007, 0.0
        %vm1013 = vcmask 588800
        %1014 = vst.msk [vmem:[#allocation2] sm:$0xff] %vm1013, 0.0
        %1015 = vst.msk [vmem:[#allocation2 + $0x8] sm:$0xff] %vm1013, 0.0
        %1016 = vst.msk [vmem:[#allocation2 + $0x10] sm:$0xff] %vm1013, 0.0
        %1017 = vst.msk [vmem:[#allocation2 + $0x18] sm:$0xff] %vm1013, 0.0
        %1018 = vst.msk [vmem:[#allocation2 + $0x20] sm:$0xff] %vm1013, 0.0
        %vm1019 = vcmask 583680
        %1020 = vst.msk [vmem:[#allocation2 + $0x28] sm:$0x7] %vm1019, 0.0
        %1021 = vst.msk [vmem:[#allocation2 + $0x8] sm:$0xff] %vm1013, %v1008
        %1022 = vst.msk [vmem:[#allocation2 + $0x10] sm:$0xff] %vm1013, %v1009
        %1023 = vst.msk [vmem:[#allocation2 + $0x18] sm:$0xff] %vm1013, %v1010
        %1024 = vst.msk [vmem:[#allocation2 + $0x20] sm:$0xff] %vm1013, %v1011
        %vm1025 = vcmask 582656
        %1026 = vst.msk [vmem:[#allocation2 + $0x28] sm:$0x3] %vm1025, %v1012
        loop: start=0, step=1, limit=50
        $region117: #{forward.1} parent=75 // loop_pre_header
          _
        $region118: #{forward.1} parent=75 // loop_header
          %s1028 = sphi 0, %s1032
          %p1029 = scmp.ge.s32.totalorder %s1028, 50
        $region119: #{forward.1} parent=75 // loop_header_branch
          %1031 = sbr.rel (%p1029) target = $region123
        $region120: #{forward.1} parent=75 // loop_body
          %s1033 = smul.u32 %s1028, 27
          %s1034 = smul.addr %s1033, 4
          %s1035 = scalar_lea.vmem [#allocation8], %s1034
          %v1036 = vld [vmem:[%s1035] sm:$0xf]
          %v1037 = vld [vmem:[%s1035 + $0x4] sm:$0xf]
          %v1038 = vld [vmem:[%s1035 + $0x8] sm:$0xf]
          %v1039 = vld [vmem:[%s1035 + $0xc] sm:$0xf]
          %v1040 = vld [vmem:[%s1035 + $0x10] sm:$0xf]
          %v1041 = vld [vmem:[%s1035 + $0x14] sm:$0xf]
          %v1042 = vld [vmem:[%s1035 + $0x18] sm:$0xf]
          %v1043 = vld [vmem:[%s1035 + $0x1c] sm:$0xf]
          %v1044 = vld [vmem:[%s1035 + $0x20] sm:$0xf]
          %v1045 = vld [vmem:[%s1035 + $0x24] sm:$0xf]
          %v1046 = vld [vmem:[%s1035 + $0x28] sm:$0xf]
          %v1047 = vld [vmem:[%s1035 + $0x2c] sm:$0xf]
          %v1048 = vld [vmem:[%s1035 + $0x30] sm:$0xf]
          %v1049 = vld [vmem:[%s1035 + $0x34] sm:$0xf]
          %v1050 = vld [vmem:[%s1035 + $0x38] sm:$0xf]
          %v1051 = vld [vmem:[%s1035 + $0x3c] sm:$0xf]
          %v1052 = vld [vmem:[%s1035 + $0x40] sm:$0xf]
          %v1053 = vld [vmem:[%s1035 + $0x44] sm:$0xf]
          %v1054 = vld [vmem:[%s1035 + $0x48] sm:$0xf]
          %v1055 = vld [vmem:[%s1035 + $0x4c] sm:$0xf]
          %v1056 = vld [vmem:[%s1035 + $0x50] sm:$0xf]
          %v1057 = vld [vmem:[%s1035 + $0x54] sm:$0xf]
          %v1058 = vld [vmem:[%s1035 + $0x58] sm:$0xf]
          %v1059 = vld [vmem:[%s1035 + $0x5c] sm:$0xf]
          %v1060 = vld [vmem:[%s1035 + $0x60] sm:$0xf]
          %v1061 = vld [vmem:[%s1035 + $0x64] sm:$0xf]
          %v1062 = vld [vmem:[%s1035 + $0x68] sm:$0xf]
          %s1063 = scalar_lea.vmem [#allocation9], %s1028
          %v1064 = vld [vmem:[%s1063] sm:$0x1]
          %s1065 = scalar_lea.vmem [#allocation11], %s1028
          %v1066 = vld [vmem:[%s1065] sm:$0x1]
          %v1067 = vunpack.c.l.bf16 %v1036
          %v1068 = vunpack.c.l.bf16 %v1037
          %v1069 = vunpack.c.l.bf16 %v1038
          %v1070 = vunpack.c.l.bf16 %v1039
          %v1071 = vunpack.c.l.bf16 %v1040
          %v1072 = vunpack.c.l.bf16 %v1041
          %v1073 = vunpack.c.l.bf16 %v1042
          %v1074 = vunpack.c.l.bf16 %v1043
          %v1075 = vunpack.c.l.bf16 %v1044
          %v1076 = vunpack.c.l.bf16 %v1045
          %v1077 = vunpack.c.l.bf16 %v1046
          %v1078 = vunpack.c.l.bf16 %v1047
          %v1079 = vunpack.c.l.bf16 %v1048
          %v1080 = vunpack.c.l.bf16 %v1049
          %v1081 = vunpack.c.l.bf16 %v1050
          %v1082 = vunpack.c.l.bf16 %v1051
          %v1083 = vunpack.c.l.bf16 %v1052
          %v1084 = vunpack.c.l.bf16 %v1053
          %v1085 = vunpack.c.l.bf16 %v1054
          %v1086 = vunpack.c.l.bf16 %v1055
          %v1087 = vunpack.c.l.bf16 %v1056
          %v1088 = vunpack.c.l.bf16 %v1057
          %v1089 = vunpack.c.l.bf16 %v1058
          %v1090 = vunpack.c.l.bf16 %v1059
          %v1091 = vunpack.c.l.bf16 %v1060
          %v1092 = vunpack.c.l.bf16 %v1061
          %v1093 = vunpack.c.l.bf16 %v1062
          %v1094 = vld [vmem:[#allocation2 + $0x7] sm:$0xff]
          %v1095 = vld [vmem:[#allocation2 + $0xf] sm:$0xff]
          %v1096 = vld [vmem:[#allocation2 + $0x17] sm:$0xff]
          %v1097 = vld [vmem:[#allocation2 + $0x1f] sm:$0xff]
          %v1098 = vld [vmem:[#allocation2 + $0x27] sm:$0x3]
          %v1099 = vld [vmem:[#allocation2 + $0x8] sm:$0xff]
          %v1100 = vld [vmem:[#allocation2 + $0x10] sm:$0xff]
          %v1101 = vld [vmem:[#allocation2 + $0x18] sm:$0xff]
          %v1102 = vld [vmem:[#allocation2 + $0x20] sm:$0xff]
          %v1103 = vld [vmem:[#allocation2 + $0x28] sm:$0x3]
          %v1105 = vsel %vm1013, %v1099, 0
          %v1108 = vsel %vm1013, %v1100, 0
          %v1111 = vsel %vm1013, %v1101, 0
          %v1114 = vsel %vm1013, %v1102, 0
          %v1117 = vsel %vm1013, %v1103, 0
          %1119 = vmatprep.subr.mxu0 0.0
          %1120 = vmatpush1.msra.mxu0 %v1076
          %1121 = vmatprep.subr.mxu0 0.0
          %1122 = vmatpush1.msra.mxu0 %v1077
          %1123 = vmatprep.subr.mxu0 0.0
          %1124 = vmatpush1.msra.mxu0 %v1078
          %1125 = vmatprep.subr.mxu0 0.0
          %1126 = vmatpush1.msra.mxu0 %v1079
          %1127 = vmatprep.subr.mxu0 0.0
          %1128 = vmatpush1.msra.mxu0 %v1080
          %1129 = vmatprep.subr.mxu0 0.0
          %1130 = vmatpush1.msra.mxu0 %v1081
          %1131 = vmatprep.subr.mxu0 0.0
          %1132 = vmatpush1.msra.mxu0 %v1082
          %1133 = vmatprep.subr.mxu0 0.0
          %1134 = vmatpush1.msra.mxu0 %v1083
          %1135 = vmatprep.subr.mxu0 0.0
          %1136 = vmatpush1.msra.mxu0 %v1084
          %1137 = vmatprep.subr.mxu0 0.0
          %1138 = vmatpush1.msra.mxu0 0.0
          %1139 = vmatprep.subr.mxu0 0.0
          %1140 = vmatpush1.msra.mxu0 0.0
          %1141 = vmatprep.subr.mxu0 0.0
          %1142 = vmatpush1.msra.mxu0 0.0
          %1143 = vmatprep.subr.mxu0 0.0
          %1144 = vmatpush1.msra.mxu0 0.0
          %1145 = vmatprep.subr.mxu0 0.0
          %1146 = vmatpush1.msra.mxu0 0.0
          %1147 = vmatprep.subr.mxu0 0.0
          %1148 = vmatpush1.msra.mxu0 0.0
          %1149 = vmatprep.subr.mxu0 0.0
          %1150 = vmatpush1.msra.mxu0 0.0
          %1151 = vmatprep.subr.mxu0 0.0
          %1152 = vmatpush1.msra.mxu0 0.0
          %1153 = vmatprep.subr.mxu0 0.0
          %1154 = vmatpush1.msra.mxu0 0.0
          %1155 = vmatprep.subr.mxu0 0.0
          %1156 = vmatpush1.msra.mxu0 0.0
          %1157 = vmatprep.subr.mxu0 0.0
          %1158 = vmatpush1.msra.mxu0 0.0
          %1159 = vmatprep.subr.mxu0 0.0
          %1160 = vmatpush1.msra.mxu0 0.0
          %1161 = vmatprep.subr.mxu0 0.0
          %1162 = vmatpush1.msra.mxu0 0.0
          %1163 = vmatprep.subr.mxu0 0.0
          %1164 = vmatpush1.msra.mxu0 0.0
          %1165 = vmatprep.subr.mxu0 0.0
          %1166 = vmatpush1.msra.mxu0 0.0
          %1167 = vmatprep.subr.mxu0 0.0
          %1168 = vmatpush1.msra.mxu0 0.0
          %1169 = vmatprep.subr.mxu0 0.0
          %1170 = vmatpush1.msra.mxu0 0.0
          %1171 = vmatprep.subr.mxu0 0.0
          %1172 = vmatpush1.msra.mxu0 0.0
          %1173 = vmatprep.subr.mxu0 0.0
          %1174 = vmatpush1.msra.mxu0 0.0
          %1175 = vmatprep.subr.mxu0 0.0
          %1176 = vmatpush1.msra.mxu0 0.0
          %1177 = vmatprep.subr.mxu0 0.0
          %1178 = vmatpush1.msra.mxu0 0.0
          %1179 = vmatprep.subr.mxu0 0.0
          %1180 = vmatpush1.msra.mxu0 0.0
          %1181 = vmatprep.subr.mxu0 0.0
          %1182 = vmatpush1.msra.mxu0 0.0
          %1183 = vmatprep.mubr.f32.mxu0 0.0
          %1184 = vmatmul.mubr.f32.gmra.mrb[0].mxu0 %v1105
          %v1185 = vpop.f32.mrb[0].mxu0
          %v1186 = vadd.f32 0.0, %v1185
          %v1187 = vpop.f32.mrb[0].mxu0
          %1188 = vmatprep.mubr.f32.mxu0 0.0
          %1189 = vmatmul.mubr.f32.gmra.mrb[0].mxu0 %v1108
          %v1190 = vpop.f32.mrb[0].mxu0
          %v1191 = vadd.f32 0.0, %v1190
          %v1192 = vpop.f32.mrb[0].mxu0
          %1193 = vmatprep.mubr.f32.mxu0 0.0
          %1194 = vmatmul.mubr.f32.gmra.mrb[0].mxu0 %v1111
          %v1195 = vpop.f32.mrb[0].mxu0
          %v1196 = vadd.f32 0.0, %v1195
          %v1197 = vpop.f32.mrb[0].mxu0
          %1198 = vmatprep.mubr.f32.mxu0 0.0
          %1199 = vmatmul.mubr.f32.gmra.mrb[0].mxu0 %v1114
          %v1200 = vpop.f32.mrb[0].mxu0
          %v1201 = vadd.f32 0.0, %v1200
          %v1202 = vpop.f32.mrb[0].mxu0
          %1203 = vmatprep.mubr.f32.mxu0 0.0
          %1204 = vmatmul.mubr.f32.gmra.mrb[0].mxu0 %v1117
          %v1205 = vpop.f32.mrb[0].mxu0
          %v1206 = vadd.f32 0.0, %v1205
          %v1207 = vpop.f32.mrb[0].mxu0
          %1208 = vdwg.mxu0
          %v1210 = vsel %vm1013, %v1094, 0
          %v1213 = vsel %vm1013, %v1095, 0
          %v1216 = vsel %vm1013, %v1096, 0
          %v1219 = vsel %vm1013, %v1097, 0
          %v1222 = vsel %vm1013, %v1098, 0
          %1224 = vmatprep.subr.mxu0 0.0
          %1225 = vmatpush1.msra.mxu0 %v1067
          %1226 = vmatprep.subr.mxu0 0.0
          %1227 = vmatpush1.msra.mxu0 %v1068
          %1228 = vmatprep.subr.mxu0 0.0
          %1229 = vmatpush1.msra.mxu0 %v1069
          %1230 = vmatprep.subr.mxu0 0.0
          %1231 = vmatpush1.msra.mxu0 %v1070
          %1232 = vmatprep.subr.mxu0 0.0
          %1233 = vmatpush1.msra.mxu0 %v1071
          %1234 = vmatprep.subr.mxu0 0.0
          %1235 = vmatpush1.msra.mxu0 %v1072
          %1236 = vmatprep.subr.mxu0 0.0
          %1237 = vmatpush1.msra.mxu0 %v1073
          %1238 = vmatprep.subr.mxu0 0.0
          %1239 = vmatpush1.msra.mxu0 %v1074
          %1240 = vmatprep.subr.mxu0 0.0
          %1241 = vmatpush1.msra.mxu0 %v1075
          %1242 = vmatprep.subr.mxu0 0.0
          %1243 = vmatpush1.msra.mxu0 0.0
          %1244 = vmatprep.subr.mxu0 0.0
          %1245 = vmatpush1.msra.mxu0 0.0
          %1246 = vmatprep.subr.mxu0 0.0
          %1247 = vmatpush1.msra.mxu0 0.0
          %1248 = vmatprep.subr.mxu0 0.0
          %1249 = vmatpush1.msra.mxu0 0.0
          %1250 = vmatprep.subr.mxu0 0.0
          %1251 = vmatpush1.msra.mxu0 0.0
          %1252 = vmatprep.subr.mxu0 0.0
          %1253 = vmatpush1.msra.mxu0 0.0
          %1254 = vmatprep.subr.mxu0 0.0
          %1255 = vmatpush1.msra.mxu0 0.0
          %1256 = vmatprep.subr.mxu0 0.0
          %1257 = vmatpush1.msra.mxu0 0.0
          %1258 = vmatprep.subr.mxu0 0.0
          %1259 = vmatpush1.msra.mxu0 0.0
          %1260 = vmatprep.subr.mxu0 0.0
          %1261 = vmatpush1.msra.mxu0 0.0
          %1262 = vmatprep.subr.mxu0 0.0
          %1263 = vmatpush1.msra.mxu0 0.0
          %1264 = vmatprep.subr.mxu0 0.0
          %1265 = vmatpush1.msra.mxu0 0.0
          %1266 = vmatprep.subr.mxu0 0.0
          %1267 = vmatpush1.msra.mxu0 0.0
          %1268 = vmatprep.subr.mxu0 0.0
          %1269 = vmatpush1.msra.mxu0 0.0
          %1270 = vmatprep.subr.mxu0 0.0
          %1271 = vmatpush1.msra.mxu0 0.0
          %1272 = vmatprep.subr.mxu0 0.0
          %1273 = vmatpush1.msra.mxu0 0.0
          %1274 = vmatprep.subr.mxu0 0.0
          %1275 = vmatpush1.msra.mxu0 0.0
          %1276 = vmatprep.subr.mxu0 0.0
          %1277 = vmatpush1.msra.mxu0 0.0
          %1278 = vmatprep.subr.mxu0 0.0
          %1279 = vmatpush1.msra.mxu0 0.0
          %1280 = vmatprep.subr.mxu0 0.0
          %1281 = vmatpush1.msra.mxu0 0.0
          %1282 = vmatprep.subr.mxu0 0.0
          %1283 = vmatpush1.msra.mxu0 0.0
          %1284 = vmatprep.subr.mxu0 0.0
          %1285 = vmatpush1.msra.mxu0 0.0
          %1286 = vmatprep.subr.mxu0 0.0
          %1287 = vmatpush1.msra.mxu0 0.0
          %1288 = vmatprep.mubr.f32.mxu0 0.0
          %1289 = vmatmul.mubr.f32.gmra.mrb[0].mxu0 %v1210
          %v1290 = vpop.f32.mrb[0].mxu0
          %v1291 = vadd.f32 %v1186, %v1290
          %v1292 = vpop.f32.mrb[0].mxu0
          %1293 = vmatprep.mubr.f32.mxu0 0.0
          %1294 = vmatmul.mubr.f32.gmra.mrb[0].mxu0 %v1213
          %v1295 = vpop.f32.mrb[0].mxu0
          %v1296 = vadd.f32 %v1191, %v1295
          %v1297 = vpop.f32.mrb[0].mxu0
          %1298 = vmatprep.mubr.f32.mxu0 0.0
          %1299 = vmatmul.mubr.f32.gmra.mrb[0].mxu0 %v1216
          %v1300 = vpop.f32.mrb[0].mxu0
          %v1301 = vadd.f32 %v1196, %v1300
          %v1302 = vpop.f32.mrb[0].mxu0
          %1303 = vmatprep.mubr.f32.mxu0 0.0
          %1304 = vmatmul.mubr.f32.gmra.mrb[0].mxu0 %v1219
          %v1305 = vpop.f32.mrb[0].mxu0
          %v1306 = vadd.f32 %v1201, %v1305
          %v1307 = vpop.f32.mrb[0].mxu0
          %1308 = vmatprep.mubr.f32.mxu0 0.0
          %1309 = vmatmul.mubr.f32.gmra.mrb[0].mxu0 %v1222
          %v1310 = vpop.f32.mrb[0].mxu0
          %v1311 = vadd.f32 %v1206, %v1310
          %v1312 = vpop.f32.mrb[0].mxu0
          %1313 = vdwg.mxu0
          %v1314 = vld [vmem:[#allocation2 + $0x9] sm:$0xff]
          %v1315 = vld [vmem:[#allocation2 + $0x11] sm:$0xff]
          %v1316 = vld [vmem:[#allocation2 + $0x19] sm:$0xff]
          %v1317 = vld [vmem:[#allocation2 + $0x21] sm:$0xff]
          %v1318 = vld [vmem:[#allocation2 + $0x29] sm:$0x3]
          %v1320 = vsel %vm1013, %v1314, 0
          %v1323 = vsel %vm1013, %v1315, 0
          %v1326 = vsel %vm1013, %v1316, 0
          %v1329 = vsel %vm1013, %v1317, 0
          %v1332 = vsel %vm1013, %v1318, 0
          %1334 = vmatprep.subr.mxu0 0.0
          %1335 = vmatpush1.msra.mxu0 %v1085
          %1336 = vmatprep.subr.mxu0 0.0
          %1337 = vmatpush1.msra.mxu0 %v1086
          %1338 = vmatprep.subr.mxu0 0.0
          %1339 = vmatpush1.msra.mxu0 %v1087
          %1340 = vmatprep.subr.mxu0 0.0
          %1341 = vmatpush1.msra.mxu0 %v1088
          %1342 = vmatprep.subr.mxu0 0.0
          %1343 = vmatpush1.msra.mxu0 %v1089
          %1344 = vmatprep.subr.mxu0 0.0
          %1345 = vmatpush1.msra.mxu0 %v1090
          %1346 = vmatprep.subr.mxu0 0.0
          %1347 = vmatpush1.msra.mxu0 %v1091
          %1348 = vmatprep.subr.mxu0 0.0
          %1349 = vmatpush1.msra.mxu0 %v1092
          %1350 = vmatprep.subr.mxu0 0.0
          %1351 = vmatpush1.msra.mxu0 %v1093
          %1352 = vmatprep.subr.mxu0 0.0
          %1353 = vmatpush1.msra.mxu0 0.0
          %1354 = vmatprep.subr.mxu0 0.0
          %1355 = vmatpush1.msra.mxu0 0.0
          %1356 = vmatprep.subr.mxu0 0.0
          %1357 = vmatpush1.msra.mxu0 0.0
          %1358 = vmatprep.subr.mxu0 0.0
          %1359 = vmatpush1.msra.mxu0 0.0
          %1360 = vmatprep.subr.mxu0 0.0
          %1361 = vmatpush1.msra.mxu0 0.0
          %1362 = vmatprep.subr.mxu0 0.0
          %1363 = vmatpush1.msra.mxu0 0.0
          %1364 = vmatprep.subr.mxu0 0.0
          %1365 = vmatpush1.msra.mxu0 0.0
          %1366 = vmatprep.subr.mxu0 0.0
          %1367 = vmatpush1.msra.mxu0 0.0
          %1368 = vmatprep.subr.mxu0 0.0
          %1369 = vmatpush1.msra.mxu0 0.0
          %1370 = vmatprep.subr.mxu0 0.0
          %1371 = vmatpush1.msra.mxu0 0.0
          %1372 = vmatprep.subr.mxu0 0.0
          %1373 = vmatpush1.msra.mxu0 0.0
          %1374 = vmatprep.subr.mxu0 0.0
          %1375 = vmatpush1.msra.mxu0 0.0
          %1376 = vmatprep.subr.mxu0 0.0
          %1377 = vmatpush1.msra.mxu0 0.0
          %1378 = vmatprep.subr.mxu0 0.0
          %1379 = vmatpush1.msra.mxu0 0.0
          %1380 = vmatprep.subr.mxu0 0.0
          %1381 = vmatpush1.msra.mxu0 0.0
          %1382 = vmatprep.subr.mxu0 0.0
          %1383 = vmatpush1.msra.mxu0 0.0
          %1384 = vmatprep.subr.mxu0 0.0
          %1385 = vmatpush1.msra.mxu0 0.0
          %1386 = vmatprep.subr.mxu0 0.0
          %1387 = vmatpush1.msra.mxu0 0.0
          %1388 = vmatprep.subr.mxu0 0.0
          %1389 = vmatpush1.msra.mxu0 0.0
          %1390 = vmatprep.subr.mxu0 0.0
          %1391 = vmatpush1.msra.mxu0 0.0
          %1392 = vmatprep.subr.mxu0 0.0
          %1393 = vmatpush1.msra.mxu0 0.0
          %1394 = vmatprep.subr.mxu0 0.0
          %1395 = vmatpush1.msra.mxu0 0.0
          %1396 = vmatprep.subr.mxu0 0.0
          %1397 = vmatpush1.msra.mxu0 0.0
          %1398 = vmatprep.mubr.f32.mxu0 0.0
          %1399 = vmatmul.mubr.f32.gmra.mrb[0].mxu0 %v1320
          %v1400 = vpop.f32.mrb[0].mxu0
          %v1401 = vadd.f32 0.0, %v1400
          %v1402 = vpop.f32.mrb[0].mxu0
          %1403 = vmatprep.mubr.f32.mxu0 0.0
          %1404 = vmatmul.mubr.f32.gmra.mrb[0].mxu0 %v1323
          %v1405 = vpop.f32.mrb[0].mxu0
          %v1406 = vadd.f32 0.0, %v1405
          %v1407 = vpop.f32.mrb[0].mxu0
          %1408 = vmatprep.mubr.f32.mxu0 0.0
          %1409 = vmatmul.mubr.f32.gmra.mrb[0].mxu0 %v1326
          %v1410 = vpop.f32.mrb[0].mxu0
          %v1411 = vadd.f32 0.0, %v1410
          %v1412 = vpop.f32.mrb[0].mxu0
          %1413 = vmatprep.mubr.f32.mxu0 0.0
          %1414 = vmatmul.mubr.f32.gmra.mrb[0].mxu0 %v1329
          %v1415 = vpop.f32.mrb[0].mxu0
          %v1416 = vadd.f32 0.0, %v1415
          %v1417 = vpop.f32.mrb[0].mxu0
          %1418 = vmatprep.mubr.f32.mxu0 0.0
          %1419 = vmatmul.mubr.f32.gmra.mrb[0].mxu0 %v1332
          %v1420 = vpop.f32.mrb[0].mxu0
          %v1421 = vadd.f32 0.0, %v1420
          %v1422 = vpop.f32.mrb[0].mxu0
          %1423 = vdwg.mxu0
          %v1424 = vadd.f32 %v1291, %v1401
          %v1425 = vadd.f32 %v1296, %v1406
          %v1426 = vadd.f32 %v1301, %v1411
          %v1427 = vadd.f32 %v1306, %v1416
          %v1428 = vadd.f32 %v1311, %v1421
          %v1430 = vlaneseq
          %v1431 = vshrl.u32 %v1430, 7
          %v1432 = vsub.s32 0, %v1431
          %v1433 = vrot.slane %v1064, %v1432
          %v1435 = vmul.f32 %v1424, %v1433
          %v1436 = vmul.f32 %v1425, %v1433
          %v1437 = vmul.f32 %v1426, %v1433
          %v1438 = vmul.f32 %v1427, %v1433
          %v1439 = vmul.f32 %v1428, %v1433
          %v1441 = vlaneseq
          %v1442 = vshrl.u32 %v1441, 7
          %v1443 = vsub.s32 0, %v1442
          %v1444 = vrot.slane %v1066, %v1443
          %v1446 = vadd.f32 %v1435, %v1444
          %v1447 = vadd.f32 %v1436, %v1444
          %v1448 = vadd.f32 %v1437, %v1444
          %v1449 = vadd.f32 %v1438, %v1444
          %v1450 = vadd.f32 %v1439, %v1444
          %v1451 = vmax.f32 %v1446, 0.0
          %v1452 = vmax.f32 %v1447, 0.0
          %v1453 = vmax.f32 %v1448, 0.0
          %v1454 = vmax.f32 %v1449, 0.0
          %v1455 = vmax.f32 %v1450, 0.0
          %v1456 = vld [vmem:[#allocation2 + $0x8] sm:$0xff]
          %v1457 = vld [vmem:[#allocation2 + $0x10] sm:$0xff]
          %v1458 = vld [vmem:[#allocation2 + $0x18] sm:$0xff]
          %v1459 = vld [vmem:[#allocation2 + $0x20] sm:$0xff]
          %v1460 = vld [vmem:[#allocation2 + $0x28] sm:$0x3]
          %v1461 = vadd.f32 %v1456, %v1451
          %v1462 = vadd.f32 %v1457, %v1452
          %v1463 = vadd.f32 %v1458, %v1453
          %v1464 = vadd.f32 %v1459, %v1454
          %v1465 = vadd.f32 %v1460, %v1455
          %v1466 = vmax.f32 %v1461, 0.0
          %v1467 = vmax.f32 %v1462, 0.0
          %v1468 = vmax.f32 %v1463, 0.0
          %v1469 = vmax.f32 %v1464, 0.0
          %v1470 = vmax.f32 %v1465, 0.0
          %1471 = vst.msk [vmem:[#allocation2 + $0x8] sm:$0xff] %vm1013, %v1466
          %1472 = vst.msk [vmem:[#allocation2 + $0x10] sm:$0xff] %vm1013, %v1467
          %1473 = vst.msk [vmem:[#allocation2 + $0x18] sm:$0xff] %vm1013, %v1468
          %1474 = vst.msk [vmem:[#allocation2 + $0x20] sm:$0xff] %vm1013, %v1469
          %1475 = vst.msk [vmem:[#allocation2 + $0x28] sm:$0x3] %vm1025, %v1470
        $region121: #{forward.1} parent=75 // loop_footer
          %s1032 = sadd.s32 1, %s1028
        $region122: #{forward.1} parent=75 // loop_footer_branch
          %1027 = sbr.rel target = $region118
        $region123: #{forward.1} parent=75 // loop_exit
          _
        %v1476 = vld [vmem:[%s7] sm:$0xff]
        %v1477 = vld [vmem:[%s7 + $0x8] sm:$0xff]
        %v1478 = vld [vmem:[%s7 + $0x10] sm:$0xff]
        %v1479 = vld [vmem:[%s7 + $0x18] sm:$0xff]
        %v1480 = vld [vmem:[%s7 + $0x20] sm:$0xff]
        %v1481 = vld [vmem:[%s7 + $0x28] sm:$0xff]
        %v1482 = vld [vmem:[%s7 + $0x30] sm:$0xff]
        %v1483 = vld [vmem:[%s7 + $0x38] sm:$0xff]
        %v1484 = vld [vmem:[%s7 + $0x40] sm:$0xff]
        %v1485 = vld [vmem:[%s7 + $0x48] sm:$0xff]
        %v1486 = vld [vmem:[%s7 + $0x50] sm:$0xff]
        %v1487 = vld [vmem:[%s7 + $0x58] sm:$0xff]
        %v1488 = vld [vmem:[%s7 + $0x60] sm:$0xff]
        %v1489 = vld [vmem:[%s7 + $0x68] sm:$0xff]
        %v1490 = vld [vmem:[%s7 + $0x70] sm:$0xff]
        %v1491 = vld [vmem:[%s7 + $0x78] sm:$0xff]
        %v1492 = vld [vmem:[%s7 + $0x80] sm:$0xff]
        %v1493 = vld [vmem:[%s7 + $0x88] sm:$0xff]
        %v1494 = vld [vmem:[%s7 + $0x90] sm:$0xff]
        %v1495 = vld [vmem:[%s7 + $0x98] sm:$0xff]
        %v1496 = vld [vmem:[%s7 + $0xa0] sm:$0xff]
        %v1497 = vld [vmem:[%s7 + $0xa8] sm:$0xff]
        %v1498 = vld [vmem:[%s7 + $0xb0] sm:$0xff]
        %v1499 = vld [vmem:[%s7 + $0xb8] sm:$0xff]
        %v1500 = vld [vmem:[%s7 + $0xc0] sm:$0xff]
        %v1501 = vld [vmem:[%s7 + $0xc8] sm:$0xff]
        %v1502 = vld [vmem:[%s7 + $0xd0] sm:$0xff]
        %v1503 = vld [vmem:[#allocation12] sm:$0x1]
        %v1504 = vld [vmem:[#allocation14] sm:$0x1]
        %v1505 = vld [vmem:[#allocation2 + $0x7] sm:$0xff]
        %v1506 = vld [vmem:[#allocation2 + $0xf] sm:$0xff]
        %v1507 = vld [vmem:[#allocation2 + $0x17] sm:$0xff]
        %v1508 = vld [vmem:[#allocation2 + $0x1f] sm:$0xff]
        %v1509 = vld [vmem:[#allocation2 + $0x27] sm:$0x3]
        %v1510 = vld [vmem:[#allocation2 + $0x8] sm:$0xff]
        %v1511 = vld [vmem:[#allocation2 + $0x10] sm:$0xff]
        %v1512 = vld [vmem:[#allocation2 + $0x18] sm:$0xff]
        %v1513 = vld [vmem:[#allocation2 + $0x20] sm:$0xff]
        %v1514 = vld [vmem:[#allocation2 + $0x28] sm:$0x3]
        %v1516 = vsel %vm1013, %v1510, 0
        %v1519 = vsel %vm1013, %v1511, 0
        %v1522 = vsel %vm1013, %v1512, 0
        %v1525 = vsel %vm1013, %v1513, 0
        %v1528 = vsel %vm1013, %v1514, 0
        %1530 = vmatprep.subr.mxu0 0.0
        %1531 = vmatpush1.msra.mxu0 %v1485
        %1532 = vmatprep.subr.mxu0 0.0
        %1533 = vmatpush1.msra.mxu0 %v1486
        %1534 = vmatprep.subr.mxu0 0.0
        %1535 = vmatpush1.msra.mxu0 %v1487
        %1536 = vmatprep.subr.mxu0 0.0
        %1537 = vmatpush1.msra.mxu0 %v1488
        %1538 = vmatprep.subr.mxu0 0.0
        %1539 = vmatpush1.msra.mxu0 %v1489
        %1540 = vmatprep.subr.mxu0 0.0
        %1541 = vmatpush1.msra.mxu0 %v1490
        %1542 = vmatprep.subr.mxu0 0.0
        %1543 = vmatpush1.msra.mxu0 %v1491
        %1544 = vmatprep.subr.mxu0 0.0
        %1545 = vmatpush1.msra.mxu0 %v1492
        %1546 = vmatprep.subr.mxu0 0.0
        %1547 = vmatpush1.msra.mxu0 %v1493
        %1548 = vmatprep.subr.mxu0 0.0
        %1549 = vmatpush1.msra.mxu0 0.0
        %1550 = vmatprep.subr.mxu0 0.0
        %1551 = vmatpush1.msra.mxu0 0.0
        %1552 = vmatprep.subr.mxu0 0.0
        %1553 = vmatpush1.msra.mxu0 0.0
        %1554 = vmatprep.subr.mxu0 0.0
        %1555 = vmatpush1.msra.mxu0 0.0
        %1556 = vmatprep.subr.mxu0 0.0
        %1557 = vmatpush1.msra.mxu0 0.0
        %1558 = vmatprep.subr.mxu0 0.0
        %1559 = vmatpush1.msra.mxu0 0.0
        %1560 = vmatprep.subr.mxu0 0.0
        %1561 = vmatpush1.msra.mxu0 0.0
        %1562 = vmatprep.subr.mxu0 0.0
        %1563 = vmatpush1.msra.mxu0 0.0
        %1564 = vmatprep.subr.mxu0 0.0
        %1565 = vmatpush1.msra.mxu0 0.0
        %1566 = vmatprep.subr.mxu0 0.0
        %1567 = vmatpush1.msra.mxu0 0.0
        %1568 = vmatprep.subr.mxu0 0.0
        %1569 = vmatpush1.msra.mxu0 0.0
        %1570 = vmatprep.subr.mxu0 0.0
        %1571 = vmatpush1.msra.mxu0 0.0
        %1572 = vmatprep.subr.mxu0 0.0
        %1573 = vmatpush1.msra.mxu0 0.0
        %1574 = vmatprep.subr.mxu0 0.0
        %1575 = vmatpush1.msra.mxu0 0.0
        %1576 = vmatprep.subr.mxu0 0.0
        %1577 = vmatpush1.msra.mxu0 0.0
        %1578 = vmatprep.subr.mxu0 0.0
        %1579 = vmatpush1.msra.mxu0 0.0
        %1580 = vmatprep.subr.mxu0 0.0
        %1581 = vmatpush1.msra.mxu0 0.0
        %1582 = vmatprep.subr.mxu0 0.0
        %1583 = vmatpush1.msra.mxu0 0.0
        %1584 = vmatprep.subr.mxu0 0.0
        %1585 = vmatpush1.msra.mxu0 0.0
        %1586 = vmatprep.subr.mxu0 0.0
        %1587 = vmatpush1.msra.mxu0 0.0
        %1588 = vmatprep.subr.mxu0 0.0
        %1589 = vmatpush1.msra.mxu0 0.0
        %1590 = vmatprep.subr.mxu0 0.0
        %1591 = vmatpush1.msra.mxu0 0.0
        %1592 = vmatprep.subr.mxu0 0.0
        %1593 = vmatpush1.msra.mxu0 0.0
        %1594 = vmatprep.mubr.f32.mxu0 0.0
        %1595 = vmatmul.mubr.f32.gmra.mrb[0].mxu0 %v1516
        %v1596 = vpop.f32.mrb[0].mxu0
        %v1597 = vadd.f32 0.0, %v1596
        %v1598 = vpop.f32.mrb[0].mxu0
        %1599 = vmatprep.mubr.f32.mxu0 0.0
        %1600 = vmatmul.mubr.f32.gmra.mrb[0].mxu0 %v1519
        %v1601 = vpop.f32.mrb[0].mxu0
        %v1602 = vadd.f32 0.0, %v1601
        %v1603 = vpop.f32.mrb[0].mxu0
        %1604 = vmatprep.mubr.f32.mxu0 0.0
        %1605 = vmatmul.mubr.f32.gmra.mrb[0].mxu0 %v1522
        %v1606 = vpop.f32.mrb[0].mxu0
        %v1607 = vadd.f32 0.0, %v1606
        %v1608 = vpop.f32.mrb[0].mxu0
        %1609 = vmatprep.mubr.f32.mxu0 0.0
        %1610 = vmatmul.mubr.f32.gmra.mrb[0].mxu0 %v1525
        %v1611 = vpop.f32.mrb[0].mxu0
        %v1612 = vadd.f32 0.0, %v1611
        %v1613 = vpop.f32.mrb[0].mxu0
        %1614 = vmatprep.mubr.f32.mxu0 0.0
        %1615 = vmatmul.mubr.f32.gmra.mrb[0].mxu0 %v1528
        %v1616 = vpop.f32.mrb[0].mxu0
        %v1617 = vadd.f32 0.0, %v1616
        %v1618 = vpop.f32.mrb[0].mxu0
        %1619 = vdwg.mxu0
        %v1621 = vsel %vm1013, %v1505, 0
        %v1624 = vsel %vm1013, %v1506, 0
        %v1627 = vsel %vm1013, %v1507, 0
        %v1630 = vsel %vm1013, %v1508, 0
        %v1633 = vsel %vm1013, %v1509, 0
        %1635 = vmatprep.subr.mxu0 0.0
        %1636 = vmatpush1.msra.mxu0 %v1476
        %1637 = vmatprep.subr.mxu0 0.0
        %1638 = vmatpush1.msra.mxu0 %v1477
        %1639 = vmatprep.subr.mxu0 0.0
        %1640 = vmatpush1.msra.mxu0 %v1478
        %1641 = vmatprep.subr.mxu0 0.0
        %1642 = vmatpush1.msra.mxu0 %v1479
        %1643 = vmatprep.subr.mxu0 0.0
        %1644 = vmatpush1.msra.mxu0 %v1480
        %1645 = vmatprep.subr.mxu0 0.0
        %1646 = vmatpush1.msra.mxu0 %v1481
        %1647 = vmatprep.subr.mxu0 0.0
        %1648 = vmatpush1.msra.mxu0 %v1482
        %1649 = vmatprep.subr.mxu0 0.0
        %1650 = vmatpush1.msra.mxu0 %v1483
        %1651 = vmatprep.subr.mxu0 0.0
        %1652 = vmatpush1.msra.mxu0 %v1484
        %1653 = vmatprep.subr.mxu0 0.0
        %1654 = vmatpush1.msra.mxu0 0.0
        %1655 = vmatprep.subr.mxu0 0.0
        %1656 = vmatpush1.msra.mxu0 0.0
        %1657 = vmatprep.subr.mxu0 0.0
        %1658 = vmatpush1.msra.mxu0 0.0
        %1659 = vmatprep.subr.mxu0 0.0
        %1660 = vmatpush1.msra.mxu0 0.0
        %1661 = vmatprep.subr.mxu0 0.0
        %1662 = vmatpush1.msra.mxu0 0.0
        %1663 = vmatprep.subr.mxu0 0.0
        %1664 = vmatpush1.msra.mxu0 0.0
        %1665 = vmatprep.subr.mxu0 0.0
        %1666 = vmatpush1.msra.mxu0 0.0
        %1667 = vmatprep.subr.mxu0 0.0
        %1668 = vmatpush1.msra.mxu0 0.0
        %1669 = vmatprep.subr.mxu0 0.0
        %1670 = vmatpush1.msra.mxu0 0.0
        %1671 = vmatprep.subr.mxu0 0.0
        %1672 = vmatpush1.msra.mxu0 0.0
        %1673 = vmatprep.subr.mxu0 0.0
        %1674 = vmatpush1.msra.mxu0 0.0
        %1675 = vmatprep.subr.mxu0 0.0
        %1676 = vmatpush1.msra.mxu0 0.0
        %1677 = vmatprep.subr.mxu0 0.0
        %1678 = vmatpush1.msra.mxu0 0.0
        %1679 = vmatprep.subr.mxu0 0.0
        %1680 = vmatpush1.msra.mxu0 0.0
        %1681 = vmatprep.subr.mxu0 0.0
        %1682 = vmatpush1.msra.mxu0 0.0
        %1683 = vmatprep.subr.mxu0 0.0
        %1684 = vmatpush1.msra.mxu0 0.0
        %1685 = vmatprep.subr.mxu0 0.0
        %1686 = vmatpush1.msra.mxu0 0.0
        %1687 = vmatprep.subr.mxu0 0.0
        %1688 = vmatpush1.msra.mxu0 0.0
        %1689 = vmatprep.subr.mxu0 0.0
        %1690 = vmatpush1.msra.mxu0 0.0
        %1691 = vmatprep.subr.mxu0 0.0
        %1692 = vmatpush1.msra.mxu0 0.0
        %1693 = vmatprep.subr.mxu0 0.0
        %1694 = vmatpush1.msra.mxu0 0.0
        %1695 = vmatprep.subr.mxu0 0.0
        %1696 = vmatpush1.msra.mxu0 0.0
        %1697 = vmatprep.subr.mxu0 0.0
        %1698 = vmatpush1.msra.mxu0 0.0
        %1699 = vmatprep.mubr.f32.mxu0 0.0
        %1700 = vmatmul.mubr.f32.gmra.mrb[0].mxu0 %v1621
        %v1701 = vpop.f32.mrb[0].mxu0
        %v1702 = vadd.f32 %v1597, %v1701
        %v1703 = vpop.f32.mrb[0].mxu0
        %1704 = vmatprep.mubr.f32.mxu0 0.0
        %1705 = vmatmul.mubr.f32.gmra.mrb[0].mxu0 %v1624
        %v1706 = vpop.f32.mrb[0].mxu0
        %v1707 = vadd.f32 %v1602, %v1706
        %v1708 = vpop.f32.mrb[0].mxu0
        %1709 = vmatprep.mubr.f32.mxu0 0.0
        %1710 = vmatmul.mubr.f32.gmra.mrb[0].mxu0 %v1627
        %v1711 = vpop.f32.mrb[0].mxu0
        %v1712 = vadd.f32 %v1607, %v1711
        %v1713 = vpop.f32.mrb[0].mxu0
        %1714 = vmatprep.mubr.f32.mxu0 0.0
        %1715 = vmatmul.mubr.f32.gmra.mrb[0].mxu0 %v1630
        %v1716 = vpop.f32.mrb[0].mxu0
        %v1717 = vadd.f32 %v1612, %v1716
        %v1718 = vpop.f32.mrb[0].mxu0
        %1719 = vmatprep.mubr.f32.mxu0 0.0
        %1720 = vmatmul.mubr.f32.gmra.mrb[0].mxu0 %v1633
        %v1721 = vpop.f32.mrb[0].mxu0
        %v1722 = vadd.f32 %v1617, %v1721
        %v1723 = vpop.f32.mrb[0].mxu0
        %1724 = vdwg.mxu0
        %v1725 = vld [vmem:[#allocation2 + $0x9] sm:$0xff]
        %v1726 = vld [vmem:[#allocation2 + $0x11] sm:$0xff]
        %v1727 = vld [vmem:[#allocation2 + $0x19] sm:$0xff]
        %v1728 = vld [vmem:[#allocation2 + $0x21] sm:$0xff]
        %v1729 = vld [vmem:[#allocation2 + $0x29] sm:$0x3]
        %v1731 = vsel %vm1013, %v1725, 0
        %v1734 = vsel %vm1013, %v1726, 0
        %v1737 = vsel %vm1013, %v1727, 0
        %v1740 = vsel %vm1013, %v1728, 0
        %v1743 = vsel %vm1013, %v1729, 0
        %1745 = vmatprep.subr.mxu0 0.0
        %1746 = vmatpush1.msra.mxu0 %v1494
        %1747 = vmatprep.subr.mxu0 0.0
        %1748 = vmatpush1.msra.mxu0 %v1495
        %1749 = vmatprep.subr.mxu0 0.0
        %1750 = vmatpush1.msra.mxu0 %v1496
        %1751 = vmatprep.subr.mxu0 0.0
        %1752 = vmatpush1.msra.mxu0 %v1497
        %1753 = vmatprep.subr.mxu0 0.0
        %1754 = vmatpush1.msra.mxu0 %v1498
        %1755 = vmatprep.subr.mxu0 0.0
        %1756 = vmatpush1.msra.mxu0 %v1499
        %1757 = vmatprep.subr.mxu0 0.0
        %1758 = vmatpush1.msra.mxu0 %v1500
        %1759 = vmatprep.subr.mxu0 0.0
        %1760 = vmatpush1.msra.mxu0 %v1501
        %1761 = vmatprep.subr.mxu0 0.0
        %1762 = vmatpush1.msra.mxu0 %v1502
        %1763 = vmatprep.subr.mxu0 0.0
        %1764 = vmatpush1.msra.mxu0 0.0
        %1765 = vmatprep.subr.mxu0 0.0
        %1766 = vmatpush1.msra.mxu0 0.0
        %1767 = vmatprep.subr.mxu0 0.0
        %1768 = vmatpush1.msra.mxu0 0.0
        %1769 = vmatprep.subr.mxu0 0.0
        %1770 = vmatpush1.msra.mxu0 0.0
        %1771 = vmatprep.subr.mxu0 0.0
        %1772 = vmatpush1.msra.mxu0 0.0
        %1773 = vmatprep.subr.mxu0 0.0
        %1774 = vmatpush1.msra.mxu0 0.0
        %1775 = vmatprep.subr.mxu0 0.0
        %1776 = vmatpush1.msra.mxu0 0.0
        %1777 = vmatprep.subr.mxu0 0.0
        %1778 = vmatpush1.msra.mxu0 0.0
        %1779 = vmatprep.subr.mxu0 0.0
        %1780 = vmatpush1.msra.mxu0 0.0
        %1781 = vmatprep.subr.mxu0 0.0
        %1782 = vmatpush1.msra.mxu0 0.0
        %1783 = vmatprep.subr.mxu0 0.0
        %1784 = vmatpush1.msra.mxu0 0.0
        %1785 = vmatprep.subr.mxu0 0.0
        %1786 = vmatpush1.msra.mxu0 0.0
        %1787 = vmatprep.subr.mxu0 0.0
        %1788 = vmatpush1.msra.mxu0 0.0
        %1789 = vmatprep.subr.mxu0 0.0
        %1790 = vmatpush1.msra.mxu0 0.0
        %1791 = vmatprep.subr.mxu0 0.0
        %1792 = vmatpush1.msra.mxu0 0.0
        %1793 = vmatprep.subr.mxu0 0.0
        %1794 = vmatpush1.msra.mxu0 0.0
        %1795 = vmatprep.subr.mxu0 0.0
        %1796 = vmatpush1.msra.mxu0 0.0
        %1797 = vmatprep.subr.mxu0 0.0
        %1798 = vmatpush1.msra.mxu0 0.0
        %1799 = vmatprep.subr.mxu0 0.0
        %1800 = vmatpush1.msra.mxu0 0.0
        %1801 = vmatprep.subr.mxu0 0.0
        %1802 = vmatpush1.msra.mxu0 0.0
        %1803 = vmatprep.subr.mxu0 0.0
        %1804 = vmatpush1.msra.mxu0 0.0
        %1805 = vmatprep.subr.mxu0 0.0
        %1806 = vmatpush1.msra.mxu0 0.0
        %1807 = vmatprep.subr.mxu0 0.0
        %1808 = vmatpush1.msra.mxu0 0.0
        %1809 = vmatprep.mubr.f32.mxu0 0.0
        %1810 = vmatmul.mubr.f32.gmra.mrb[0].mxu0 %v1731
        %v1811 = vpop.f32.mrb[0].mxu0
        %v1812 = vadd.f32 0.0, %v1811
        %v1813 = vpop.f32.mrb[0].mxu0
        %1814 = vmatprep.mubr.f32.mxu0 0.0
        %1815 = vmatmul.mubr.f32.gmra.mrb[0].mxu0 %v1734
        %v1816 = vpop.f32.mrb[0].mxu0
        %v1817 = vadd.f32 0.0, %v1816
        %v1818 = vpop.f32.mrb[0].mxu0
        %1819 = vmatprep.mubr.f32.mxu0 0.0
        %1820 = vmatmul.mubr.f32.gmra.mrb[0].mxu0 %v1737
        %v1821 = vpop.f32.mrb[0].mxu0
        %v1822 = vadd.f32 0.0, %v1821
        %v1823 = vpop.f32.mrb[0].mxu0
        %1824 = vmatprep.mubr.f32.mxu0 0.0
        %1825 = vmatmul.mubr.f32.gmra.mrb[0].mxu0 %v1740
        %v1826 = vpop.f32.mrb[0].mxu0
        %v1827 = vadd.f32 0.0, %v1826
        %v1828 = vpop.f32.mrb[0].mxu0
        %1829 = vmatprep.mubr.f32.mxu0 0.0
        %1830 = vmatmul.mubr.f32.gmra.mrb[0].mxu0 %v1743
        %v1831 = vpop.f32.mrb[0].mxu0
        %v1832 = vadd.f32 0.0, %v1831
        %v1833 = vpop.f32.mrb[0].mxu0
        %1834 = vdwg.mxu0
        %v1835 = vadd.f32 %v1702, %v1812
        %v1836 = vadd.f32 %v1707, %v1817
        %v1837 = vadd.f32 %v1712, %v1822
        %v1838 = vadd.f32 %v1717, %v1827
        %v1839 = vadd.f32 %v1722, %v1832
        %v1841 = vlaneseq
        %v1842 = vshrl.u32 %v1841, 7
        %v1843 = vsub.s32 0, %v1842
        %v1844 = vrot.slane %v1503, %v1843
        %v1846 = vmul.f32 %v1835, %v1844
        %v1847 = vmul.f32 %v1836, %v1844
        %v1848 = vmul.f32 %v1837, %v1844
        %v1849 = vmul.f32 %v1838, %v1844
        %v1850 = vmul.f32 %v1839, %v1844
        %v1852 = vlaneseq
        %v1853 = vshrl.u32 %v1852, 7
        %v1854 = vsub.s32 0, %v1853
        %v1855 = vrot.slane %v1504, %v1854
        %v1857 = vadd.f32 %v1846, %v1855
        %v1858 = vadd.f32 %v1847, %v1855
        %v1859 = vadd.f32 %v1848, %v1855
        %v1860 = vadd.f32 %v1849, %v1855
        %v1861 = vadd.f32 %v1850, %v1855
        %v1862 = vmax.f32 %v1857, 0.0
        %v1863 = vmax.f32 %v1858, 0.0
        %v1864 = vmax.f32 %v1859, 0.0
        %v1865 = vmax.f32 %v1860, 0.0
        %v1866 = vmax.f32 %v1861, 0.0
        %v1867 = vld [vmem:[#allocation15] sm:$0xff]
        %v1868 = vld [vmem:[#allocation15 + $0x8] sm:$0xff]
        %v1869 = vld [vmem:[#allocation15 + $0x10] sm:$0xff]
        %v1870 = vld [vmem:[#allocation15 + $0x18] sm:$0xff]
        %v1871 = vunpack.c.l.bf16 %v1867
        %v1872 = vunpack.c.h.bf16 %v1867
        %v1873 = vunpack.c.l.bf16 %v1868
        %v1874 = vunpack.c.h.bf16 %v1868
        %v1875 = vunpack.c.l.bf16 %v1869
        %v1876 = vunpack.c.h.bf16 %v1869
        %v1877 = vunpack.c.l.bf16 %v1870
        %v1878 = vunpack.c.h.bf16 %v1870
        %s1879 = scalar_lea.vmem [#allocation15], 32
        %v1880 = vld [vmem:[%s1879] sm:$0xff]
        %v1881 = vld [vmem:[%s1879 + $0x8] sm:$0xff]
        %v1882 = vld [vmem:[%s1879 + $0x10] sm:$0xff]
        %v1883 = vld [vmem:[%s1879 + $0x18] sm:$0xff]
        %v1884 = vunpack.c.l.bf16 %v1880
        %v1885 = vunpack.c.h.bf16 %v1880
        %v1886 = vunpack.c.l.bf16 %v1881
        %v1887 = vunpack.c.h.bf16 %v1881
        %v1888 = vunpack.c.l.bf16 %v1882
        %v1889 = vunpack.c.h.bf16 %v1882
        %v1890 = vunpack.c.l.bf16 %v1883
        %v1891 = vunpack.c.h.bf16 %v1883
        %v1893 = vrot.slane %v1862, 1
        %vm1894 = vcmask 261120
        %v1895 = vsel %vm1894, %v1893, 0
        %1897 = vmatprep.subr.mxu0 %v1885
        %1898 = vmatpush1.msra.mxu0 %v1884
        %1899 = vmatprep.subr.mxu0 %v1887
        %1900 = vmatpush1.msra.mxu0 %v1886
        %1901 = vmatprep.subr.mxu0 %v1889
        %1902 = vmatpush1.msra.mxu0 %v1888
        %1903 = vmatprep.subr.mxu0 %v1891
        %1904 = vmatpush1.msra.mxu0 %v1890
        %1905 = vmatprep.subr.mxu0 0.0
        %1906 = vmatpush1.msra.mxu0 0.0
        %1907 = vmatprep.subr.mxu0 0.0
        %1908 = vmatpush1.msra.mxu0 0.0
        %1909 = vmatprep.subr.mxu0 0.0
        %1910 = vmatpush1.msra.mxu0 0.0
        %1911 = vmatprep.subr.mxu0 0.0
        %1912 = vmatpush1.msra.mxu0 0.0
        %1913 = vmatprep.subr.mxu0 0.0
        %1914 = vmatpush1.msra.mxu0 0.0
        %1915 = vmatprep.subr.mxu0 0.0
        %1916 = vmatpush1.msra.mxu0 0.0
        %1917 = vmatprep.subr.mxu0 0.0
        %1918 = vmatpush1.msra.mxu0 0.0
        %1919 = vmatprep.subr.mxu0 0.0
        %1920 = vmatpush1.msra.mxu0 0.0
        %1921 = vmatprep.subr.mxu0 0.0
        %1922 = vmatpush1.msra.mxu0 0.0
        %1923 = vmatprep.subr.mxu0 0.0
        %1924 = vmatpush1.msra.mxu0 0.0
        %1925 = vmatprep.subr.mxu0 0.0
        %1926 = vmatpush1.msra.mxu0 0.0
        %1927 = vmatprep.subr.mxu0 0.0
        %1928 = vmatpush1.msra.mxu0 0.0
        %1929 = vmatprep.subr.mxu0 0.0
        %1930 = vmatpush1.msra.mxu0 0.0
        %1931 = vmatprep.subr.mxu0 0.0
        %1932 = vmatpush1.msra.mxu0 0.0
        %1933 = vmatprep.subr.mxu0 0.0
        %1934 = vmatpush1.msra.mxu0 0.0
        %1935 = vmatprep.subr.mxu0 0.0
        %1936 = vmatpush1.msra.mxu0 0.0
        %1937 = vmatprep.subr.mxu0 0.0
        %1938 = vmatpush1.msra.mxu0 0.0
        %1939 = vmatprep.subr.mxu0 0.0
        %1940 = vmatpush1.msra.mxu0 0.0
        %1941 = vmatprep.subr.mxu0 0.0
        %1942 = vmatpush1.msra.mxu0 0.0
        %1943 = vmatprep.subr.mxu0 0.0
        %1944 = vmatpush1.msra.mxu0 0.0
        %1945 = vmatprep.subr.mxu0 0.0
        %1946 = vmatpush1.msra.mxu0 0.0
        %1947 = vmatprep.subr.mxu0 0.0
        %1948 = vmatpush1.msra.mxu0 0.0
        %1949 = vmatprep.subr.mxu0 0.0
        %1950 = vmatpush1.msra.mxu0 0.0
        %1951 = vmatprep.subr.mxu0 0.0
        %1952 = vmatpush1.msra.mxu0 0.0
        %1953 = vmatprep.subr.mxu0 0.0
        %1954 = vmatpush1.msra.mxu0 0.0
        %1955 = vmatprep.subr.mxu0 0.0
        %1956 = vmatpush1.msra.mxu0 0.0
        %1957 = vmatprep.subr.mxu0 0.0
        %1958 = vmatpush1.msra.mxu0 0.0
        %1959 = vmatprep.subr.mxu0 0.0
        %1960 = vmatpush1.msra.mxu0 0.0
        %1961 = vmatprep.mubr.f32.mxu0 0.0
        %1962 = vmatmul.mubr.f32.gmra.mrb[0].mxu0 %v1895
        %v1963 = vpop.f32.mrb[0].mxu0
        %v1964 = vadd.f32 0.0, %v1963
        %v1965 = vpop.f32.mrb[0].mxu0
        %v1966 = vadd.f32 0.0, %v1965
        %1967 = vdwg.mxu0
        %v1968 = vsel %vm1894, %v1862, 0
        %1970 = vmatprep.subr.mxu0 %v1872
        %1971 = vmatpush1.msra.mxu0 %v1871
        %1972 = vmatprep.subr.mxu0 %v1874
        %1973 = vmatpush1.msra.mxu0 %v1873
        %1974 = vmatprep.subr.mxu0 %v1876
        %1975 = vmatpush1.msra.mxu0 %v1875
        %1976 = vmatprep.subr.mxu0 %v1878
        %1977 = vmatpush1.msra.mxu0 %v1877
        %1978 = vmatprep.subr.mxu0 0.0
        %1979 = vmatpush1.msra.mxu0 0.0
        %1980 = vmatprep.subr.mxu0 0.0
        %1981 = vmatpush1.msra.mxu0 0.0
        %1982 = vmatprep.subr.mxu0 0.0
        %1983 = vmatpush1.msra.mxu0 0.0
        %1984 = vmatprep.subr.mxu0 0.0
        %1985 = vmatpush1.msra.mxu0 0.0
        %1986 = vmatprep.subr.mxu0 0.0
        %1987 = vmatpush1.msra.mxu0 0.0
        %1988 = vmatprep.subr.mxu0 0.0
        %1989 = vmatpush1.msra.mxu0 0.0
        %1990 = vmatprep.subr.mxu0 0.0
        %1991 = vmatpush1.msra.mxu0 0.0
        %1992 = vmatprep.subr.mxu0 0.0
        %1993 = vmatpush1.msra.mxu0 0.0
        %1994 = vmatprep.subr.mxu0 0.0
        %1995 = vmatpush1.msra.mxu0 0.0
        %1996 = vmatprep.subr.mxu0 0.0
        %1997 = vmatpush1.msra.mxu0 0.0
        %1998 = vmatprep.subr.mxu0 0.0
        %1999 = vmatpush1.msra.mxu0 0.0
        %2000 = vmatprep.subr.mxu0 0.0
        %2001 = vmatpush1.msra.mxu0 0.0
        %2002 = vmatprep.subr.mxu0 0.0
        %2003 = vmatpush1.msra.mxu0 0.0
        %2004 = vmatprep.subr.mxu0 0.0
        %2005 = vmatpush1.msra.mxu0 0.0
        %2006 = vmatprep.subr.mxu0 0.0
        %2007 = vmatpush1.msra.mxu0 0.0
        %2008 = vmatprep.subr.mxu0 0.0
        %2009 = vmatpush1.msra.mxu0 0.0
        %2010 = vmatprep.subr.mxu0 0.0
        %2011 = vmatpush1.msra.mxu0 0.0
        %2012 = vmatprep.subr.mxu0 0.0
        %2013 = vmatpush1.msra.mxu0 0.0
        %2014 = vmatprep.subr.mxu0 0.0
        %2015 = vmatpush1.msra.mxu0 0.0
        %2016 = vmatprep.subr.mxu0 0.0
        %2017 = vmatpush1.msra.mxu0 0.0
        %2018 = vmatprep.subr.mxu0 0.0
        %2019 = vmatpush1.msra.mxu0 0.0
        %2020 = vmatprep.subr.mxu0 0.0
        %2021 = vmatpush1.msra.mxu0 0.0
        %2022 = vmatprep.subr.mxu0 0.0
        %2023 = vmatpush1.msra.mxu0 0.0
        %2024 = vmatprep.subr.mxu0 0.0
        %2025 = vmatpush1.msra.mxu0 0.0
        %2026 = vmatprep.subr.mxu0 0.0
        %2027 = vmatpush1.msra.mxu0 0.0
        %2028 = vmatprep.subr.mxu0 0.0
        %2029 = vmatpush1.msra.mxu0 0.0
        %2030 = vmatprep.subr.mxu0 0.0
        %2031 = vmatpush1.msra.mxu0 0.0
        %2032 = vmatprep.subr.mxu0 0.0
        %2033 = vmatpush1.msra.mxu0 0.0
        %2034 = vmatprep.mubr.f32.mxu0 0.0
        %2035 = vmatmul.mubr.f32.gmra.mrb[0].mxu0 %v1968
        %v2036 = vpop.f32.mrb[0].mxu0
        %v2037 = vadd.f32 %v1964, %v2036
        %v2038 = vpop.f32.mrb[0].mxu0
        %v2039 = vadd.f32 %v1966, %v2038
        %2040 = vdwg.mxu0
        %s2041 = scalar_lea.vmem [#allocation15], 64
        %v2042 = vld [vmem:[%s2041] sm:$0xff]
        %v2043 = vld [vmem:[%s2041 + $0x8] sm:$0xff]
        %v2044 = vld [vmem:[%s2041 + $0x10] sm:$0xff]
        %v2045 = vld [vmem:[%s2041 + $0x18] sm:$0xff]
        %v2046 = vunpack.c.l.bf16 %v2042
        %v2047 = vunpack.c.h.bf16 %v2042
        %v2048 = vunpack.c.l.bf16 %v2043
        %v2049 = vunpack.c.h.bf16 %v2043
        %v2050 = vunpack.c.l.bf16 %v2044
        %v2051 = vunpack.c.h.bf16 %v2044
        %v2052 = vunpack.c.l.bf16 %v2045
        %v2053 = vunpack.c.h.bf16 %v2045
        %v2054 = vrot.slane %v1862, 2
        %v2055 = vsel %vm1894, %v2054, 0
        %2057 = vmatprep.subr.mxu0 %v2047
        %2058 = vmatpush1.msra.mxu0 %v2046
        %2059 = vmatprep.subr.mxu0 %v2049
        %2060 = vmatpush1.msra.mxu0 %v2048
        %2061 = vmatprep.subr.mxu0 %v2051
        %2062 = vmatpush1.msra.mxu0 %v2050
        %2063 = vmatprep.subr.mxu0 %v2053
        %2064 = vmatpush1.msra.mxu0 %v2052
        %2065 = vmatprep.subr.mxu0 0.0
        %2066 = vmatpush1.msra.mxu0 0.0
        %2067 = vmatprep.subr.mxu0 0.0
        %2068 = vmatpush1.msra.mxu0 0.0
        %2069 = vmatprep.subr.mxu0 0.0
        %2070 = vmatpush1.msra.mxu0 0.0
        %2071 = vmatprep.subr.mxu0 0.0
        %2072 = vmatpush1.msra.mxu0 0.0
        %2073 = vmatprep.subr.mxu0 0.0
        %2074 = vmatpush1.msra.mxu0 0.0
        %2075 = vmatprep.subr.mxu0 0.0
        %2076 = vmatpush1.msra.mxu0 0.0
        %2077 = vmatprep.subr.mxu0 0.0
        %2078 = vmatpush1.msra.mxu0 0.0
        %2079 = vmatprep.subr.mxu0 0.0
        %2080 = vmatpush1.msra.mxu0 0.0
        %2081 = vmatprep.subr.mxu0 0.0
        %2082 = vmatpush1.msra.mxu0 0.0
        %2083 = vmatprep.subr.mxu0 0.0
        %2084 = vmatpush1.msra.mxu0 0.0
        %2085 = vmatprep.subr.mxu0 0.0
        %2086 = vmatpush1.msra.mxu0 0.0
        %2087 = vmatprep.subr.mxu0 0.0
        %2088 = vmatpush1.msra.mxu0 0.0
        %2089 = vmatprep.subr.mxu0 0.0
        %2090 = vmatpush1.msra.mxu0 0.0
        %2091 = vmatprep.subr.mxu0 0.0
        %2092 = vmatpush1.msra.mxu0 0.0
        %2093 = vmatprep.subr.mxu0 0.0
        %2094 = vmatpush1.msra.mxu0 0.0
        %2095 = vmatprep.subr.mxu0 0.0
        %2096 = vmatpush1.msra.mxu0 0.0
        %2097 = vmatprep.subr.mxu0 0.0
        %2098 = vmatpush1.msra.mxu0 0.0
        %2099 = vmatprep.subr.mxu0 0.0
        %2100 = vmatpush1.msra.mxu0 0.0
        %2101 = vmatprep.subr.mxu0 0.0
        %2102 = vmatpush1.msra.mxu0 0.0
        %2103 = vmatprep.subr.mxu0 0.0
        %2104 = vmatpush1.msra.mxu0 0.0
        %2105 = vmatprep.subr.mxu0 0.0
        %2106 = vmatpush1.msra.mxu0 0.0
        %2107 = vmatprep.subr.mxu0 0.0
        %2108 = vmatpush1.msra.mxu0 0.0
        %2109 = vmatprep.subr.mxu0 0.0
        %2110 = vmatpush1.msra.mxu0 0.0
        %2111 = vmatprep.subr.mxu0 0.0
        %2112 = vmatpush1.msra.mxu0 0.0
        %2113 = vmatprep.subr.mxu0 0.0
        %2114 = vmatpush1.msra.mxu0 0.0
        %2115 = vmatprep.subr.mxu0 0.0
        %2116 = vmatpush1.msra.mxu0 0.0
        %2117 = vmatprep.subr.mxu0 0.0
        %2118 = vmatpush1.msra.mxu0 0.0
        %2119 = vmatprep.subr.mxu0 0.0
        %2120 = vmatpush1.msra.mxu0 0.0
        %2121 = vmatprep.mubr.f32.mxu0 0.0
        %2122 = vmatmul.mubr.f32.gmra.mrb[0].mxu0 %v2055
        %v2123 = vpop.f32.mrb[0].mxu0
        %v2124 = vadd.f32 0.0, %v2123
        %v2125 = vpop.f32.mrb[0].mxu0
        %v2126 = vadd.f32 0.0, %v2125
        %2127 = vdwg.mxu0
        %v2128 = vadd.f32 %v2037, %v2124
        %v2129 = vadd.f32 %v2039, %v2126
        %s2130 = scalar_lea.vmem [#allocation15], 96
        %v2131 = vld [vmem:[%s2130] sm:$0xff]
        %v2132 = vld [vmem:[%s2130 + $0x8] sm:$0xff]
        %v2133 = vld [vmem:[%s2130 + $0x10] sm:$0xff]
        %v2134 = vld [vmem:[%s2130 + $0x18] sm:$0xff]
        %v2135 = vunpack.c.l.bf16 %v2131
        %v2136 = vunpack.c.h.bf16 %v2131
        %v2137 = vunpack.c.l.bf16 %v2132
        %v2138 = vunpack.c.h.bf16 %v2132
        %v2139 = vunpack.c.l.bf16 %v2133
        %v2140 = vunpack.c.h.bf16 %v2133
        %v2141 = vunpack.c.l.bf16 %v2134
        %v2142 = vunpack.c.h.bf16 %v2134
        %v2143 = vrot.slane %v1862, 3
        %v2144 = vsel %vm1894, %v2143, 0
        %2146 = vmatprep.subr.mxu0 %v2136
        %2147 = vmatpush1.msra.mxu0 %v2135
        %2148 = vmatprep.subr.mxu0 %v2138
        %2149 = vmatpush1.msra.mxu0 %v2137
        %2150 = vmatprep.subr.mxu0 %v2140
        %2151 = vmatpush1.msra.mxu0 %v2139
        %2152 = vmatprep.subr.mxu0 %v2142
        %2153 = vmatpush1.msra.mxu0 %v2141
        %2154 = vmatprep.subr.mxu0 0.0
        %2155 = vmatpush1.msra.mxu0 0.0
        %2156 = vmatprep.subr.mxu0 0.0
        %2157 = vmatpush1.msra.mxu0 0.0
        %2158 = vmatprep.subr.mxu0 0.0
        %2159 = vmatpush1.msra.mxu0 0.0
        %2160 = vmatprep.subr.mxu0 0.0
        %2161 = vmatpush1.msra.mxu0 0.0
        %2162 = vmatprep.subr.mxu0 0.0
        %2163 = vmatpush1.msra.mxu0 0.0
        %2164 = vmatprep.subr.mxu0 0.0
        %2165 = vmatpush1.msra.mxu0 0.0
        %2166 = vmatprep.subr.mxu0 0.0
        %2167 = vmatpush1.msra.mxu0 0.0
        %2168 = vmatprep.subr.mxu0 0.0
        %2169 = vmatpush1.msra.mxu0 0.0
        %2170 = vmatprep.subr.mxu0 0.0
        %2171 = vmatpush1.msra.mxu0 0.0
        %2172 = vmatprep.subr.mxu0 0.0
        %2173 = vmatpush1.msra.mxu0 0.0
        %2174 = vmatprep.subr.mxu0 0.0
        %2175 = vmatpush1.msra.mxu0 0.0
        %2176 = vmatprep.subr.mxu0 0.0
        %2177 = vmatpush1.msra.mxu0 0.0
        %2178 = vmatprep.subr.mxu0 0.0
        %2179 = vmatpush1.msra.mxu0 0.0
        %2180 = vmatprep.subr.mxu0 0.0
        %2181 = vmatpush1.msra.mxu0 0.0
        %2182 = vmatprep.subr.mxu0 0.0
        %2183 = vmatpush1.msra.mxu0 0.0
        %2184 = vmatprep.subr.mxu0 0.0
        %2185 = vmatpush1.msra.mxu0 0.0
        %2186 = vmatprep.subr.mxu0 0.0
        %2187 = vmatpush1.msra.mxu0 0.0
        %2188 = vmatprep.subr.mxu0 0.0
        %2189 = vmatpush1.msra.mxu0 0.0
        %2190 = vmatprep.subr.mxu0 0.0
        %2191 = vmatpush1.msra.mxu0 0.0
        %2192 = vmatprep.subr.mxu0 0.0
        %2193 = vmatpush1.msra.mxu0 0.0
        %2194 = vmatprep.subr.mxu0 0.0
        %2195 = vmatpush1.msra.mxu0 0.0
        %2196 = vmatprep.subr.mxu0 0.0
        %2197 = vmatpush1.msra.mxu0 0.0
        %2198 = vmatprep.subr.mxu0 0.0
        %2199 = vmatpush1.msra.mxu0 0.0
        %2200 = vmatprep.subr.mxu0 0.0
        %2201 = vmatpush1.msra.mxu0 0.0
        %2202 = vmatprep.subr.mxu0 0.0
        %2203 = vmatpush1.msra.mxu0 0.0
        %2204 = vmatprep.subr.mxu0 0.0
        %2205 = vmatpush1.msra.mxu0 0.0
        %2206 = vmatprep.subr.mxu0 0.0
        %2207 = vmatpush1.msra.mxu0 0.0
        %2208 = vmatprep.subr.mxu0 0.0
        %2209 = vmatpush1.msra.mxu0 0.0
        %2210 = vmatprep.mubr.f32.mxu0 0.0
        %2211 = vmatmul.mubr.f32.gmra.mrb[0].mxu0 %v2144
        %v2212 = vpop.f32.mrb[0].mxu0
        %v2213 = vadd.f32 0.0, %v2212
        %v2214 = vpop.f32.mrb[0].mxu0
        %v2215 = vadd.f32 0.0, %v2214
        %2216 = vdwg.mxu0
        %v2217 = vadd.f32 %v2128, %v2213
        %v2218 = vadd.f32 %v2129, %v2215
        %s2219 = scalar_lea.vmem [#allocation15], 128
        %v2220 = vld [vmem:[%s2219] sm:$0xff]
        %v2221 = vld [vmem:[%s2219 + $0x8] sm:$0xff]
        %v2222 = vld [vmem:[%s2219 + $0x10] sm:$0xff]
        %v2223 = vld [vmem:[%s2219 + $0x18] sm:$0xff]
        %v2224 = vunpack.c.l.bf16 %v2220
        %v2225 = vunpack.c.h.bf16 %v2220
        %v2226 = vunpack.c.l.bf16 %v2221
        %v2227 = vunpack.c.h.bf16 %v2221
        %v2228 = vunpack.c.l.bf16 %v2222
        %v2229 = vunpack.c.h.bf16 %v2222
        %v2230 = vunpack.c.l.bf16 %v2223
        %v2231 = vunpack.c.h.bf16 %v2223
        %v2232 = vrot.slane %v1862, 4
        %v2233 = vsel %vm1894, %v2232, 0
        %2235 = vmatprep.subr.mxu0 %v2225
        %2236 = vmatpush1.msra.mxu0 %v2224
        %2237 = vmatprep.subr.mxu0 %v2227
        %2238 = vmatpush1.msra.mxu0 %v2226
        %2239 = vmatprep.subr.mxu0 %v2229
        %2240 = vmatpush1.msra.mxu0 %v2228
        %2241 = vmatprep.subr.mxu0 %v2231
        %2242 = vmatpush1.msra.mxu0 %v2230
        %2243 = vmatprep.subr.mxu0 0.0
        %2244 = vmatpush1.msra.mxu0 0.0
        %2245 = vmatprep.subr.mxu0 0.0
        %2246 = vmatpush1.msra.mxu0 0.0
        %2247 = vmatprep.subr.mxu0 0.0
        %2248 = vmatpush1.msra.mxu0 0.0
        %2249 = vmatprep.subr.mxu0 0.0
        %2250 = vmatpush1.msra.mxu0 0.0
        %2251 = vmatprep.subr.mxu0 0.0
        %2252 = vmatpush1.msra.mxu0 0.0
        %2253 = vmatprep.subr.mxu0 0.0
        %2254 = vmatpush1.msra.mxu0 0.0
        %2255 = vmatprep.subr.mxu0 0.0
        %2256 = vmatpush1.msra.mxu0 0.0
        %2257 = vmatprep.subr.mxu0 0.0
        %2258 = vmatpush1.msra.mxu0 0.0
        %2259 = vmatprep.subr.mxu0 0.0
        %2260 = vmatpush1.msra.mxu0 0.0
        %2261 = vmatprep.subr.mxu0 0.0
        %2262 = vmatpush1.msra.mxu0 0.0
        %2263 = vmatprep.subr.mxu0 0.0
        %2264 = vmatpush1.msra.mxu0 0.0
        %2265 = vmatprep.subr.mxu0 0.0
        %2266 = vmatpush1.msra.mxu0 0.0
        %2267 = vmatprep.subr.mxu0 0.0
        %2268 = vmatpush1.msra.mxu0 0.0
        %2269 = vmatprep.subr.mxu0 0.0
        %2270 = vmatpush1.msra.mxu0 0.0
        %2271 = vmatprep.subr.mxu0 0.0
        %2272 = vmatpush1.msra.mxu0 0.0
        %2273 = vmatprep.subr.mxu0 0.0
        %2274 = vmatpush1.msra.mxu0 0.0
        %2275 = vmatprep.subr.mxu0 0.0
        %2276 = vmatpush1.msra.mxu0 0.0
        %2277 = vmatprep.subr.mxu0 0.0
        %2278 = vmatpush1.msra.mxu0 0.0
        %2279 = vmatprep.subr.mxu0 0.0
        %2280 = vmatpush1.msra.mxu0 0.0
        %2281 = vmatprep.subr.mxu0 0.0
        %2282 = vmatpush1.msra.mxu0 0.0
        %2283 = vmatprep.subr.mxu0 0.0
        %2284 = vmatpush1.msra.mxu0 0.0
        %2285 = vmatprep.subr.mxu0 0.0
        %2286 = vmatpush1.msra.mxu0 0.0
        %2287 = vmatprep.subr.mxu0 0.0
        %2288 = vmatpush1.msra.mxu0 0.0
        %2289 = vmatprep.subr.mxu0 0.0
        %2290 = vmatpush1.msra.mxu0 0.0
        %2291 = vmatprep.subr.mxu0 0.0
        %2292 = vmatpush1.msra.mxu0 0.0
        %2293 = vmatprep.subr.mxu0 0.0
        %2294 = vmatpush1.msra.mxu0 0.0
        %2295 = vmatprep.subr.mxu0 0.0
        %2296 = vmatpush1.msra.mxu0 0.0
        %2297 = vmatprep.subr.mxu0 0.0
        %2298 = vmatpush1.msra.mxu0 0.0
        %2299 = vmatprep.mubr.f32.mxu0 0.0
        %2300 = vmatmul.mubr.f32.gmra.mrb[0].mxu0 %v2233
        %v2301 = vpop.f32.mrb[0].mxu0
        %v2302 = vadd.f32 0.0, %v2301
        %v2303 = vpop.f32.mrb[0].mxu0
        %v2304 = vadd.f32 0.0, %v2303
        %2305 = vdwg.mxu0
        %v2306 = vadd.f32 %v2217, %v2302
        %v2307 = vadd.f32 %v2218, %v2304
        %s2308 = scalar_lea.vmem [#allocation15], 160
        %v2309 = vld [vmem:[%s2308] sm:$0xff]
        %v2310 = vld [vmem:[%s2308 + $0x8] sm:$0xff]
        %v2311 = vld [vmem:[%s2308 + $0x10] sm:$0xff]
        %v2312 = vld [vmem:[%s2308 + $0x18] sm:$0xff]
        %v2313 = vunpack.c.l.bf16 %v2309
        %v2314 = vunpack.c.h.bf16 %v2309
        %v2315 = vunpack.c.l.bf16 %v2310
        %v2316 = vunpack.c.h.bf16 %v2310
        %v2317 = vunpack.c.l.bf16 %v2311
        %v2318 = vunpack.c.h.bf16 %v2311
        %v2319 = vunpack.c.l.bf16 %v2312
        %v2320 = vunpack.c.h.bf16 %v2312
        %v2321 = vrot.slane %v1862, 5
        %v2322 = vsel %vm1894, %v2321, 0
        %2324 = vmatprep.subr.mxu0 %v2314
        %2325 = vmatpush1.msra.mxu0 %v2313
        %2326 = vmatprep.subr.mxu0 %v2316
        %2327 = vmatpush1.msra.mxu0 %v2315
        %2328 = vmatprep.subr.mxu0 %v2318
        %2329 = vmatpush1.msra.mxu0 %v2317
        %2330 = vmatprep.subr.mxu0 %v2320
        %2331 = vmatpush1.msra.mxu0 %v2319
        %2332 = vmatprep.subr.mxu0 0.0
        %2333 = vmatpush1.msra.mxu0 0.0
        %2334 = vmatprep.subr.mxu0 0.0
        %2335 = vmatpush1.msra.mxu0 0.0
        %2336 = vmatprep.subr.mxu0 0.0
        %2337 = vmatpush1.msra.mxu0 0.0
        %2338 = vmatprep.subr.mxu0 0.0
        %2339 = vmatpush1.msra.mxu0 0.0
        %2340 = vmatprep.subr.mxu0 0.0
        %2341 = vmatpush1.msra.mxu0 0.0
        %2342 = vmatprep.subr.mxu0 0.0
        %2343 = vmatpush1.msra.mxu0 0.0
        %2344 = vmatprep.subr.mxu0 0.0
        %2345 = vmatpush1.msra.mxu0 0.0
        %2346 = vmatprep.subr.mxu0 0.0
        %2347 = vmatpush1.msra.mxu0 0.0
        %2348 = vmatprep.subr.mxu0 0.0
        %2349 = vmatpush1.msra.mxu0 0.0
        %2350 = vmatprep.subr.mxu0 0.0
        %2351 = vmatpush1.msra.mxu0 0.0
        %2352 = vmatprep.subr.mxu0 0.0
        %2353 = vmatpush1.msra.mxu0 0.0
        %2354 = vmatprep.subr.mxu0 0.0
        %2355 = vmatpush1.msra.mxu0 0.0
        %2356 = vmatprep.subr.mxu0 0.0
        %2357 = vmatpush1.msra.mxu0 0.0
        %2358 = vmatprep.subr.mxu0 0.0
        %2359 = vmatpush1.msra.mxu0 0.0
        %2360 = vmatprep.subr.mxu0 0.0
        %2361 = vmatpush1.msra.mxu0 0.0
        %2362 = vmatprep.subr.mxu0 0.0
        %2363 = vmatpush1.msra.mxu0 0.0
        %2364 = vmatprep.subr.mxu0 0.0
        %2365 = vmatpush1.msra.mxu0 0.0
        %2366 = vmatprep.subr.mxu0 0.0
        %2367 = vmatpush1.msra.mxu0 0.0
        %2368 = vmatprep.subr.mxu0 0.0
        %2369 = vmatpush1.msra.mxu0 0.0
        %2370 = vmatprep.subr.mxu0 0.0
        %2371 = vmatpush1.msra.mxu0 0.0
        %2372 = vmatprep.subr.mxu0 0.0
        %2373 = vmatpush1.msra.mxu0 0.0
        %2374 = vmatprep.subr.mxu0 0.0
        %2375 = vmatpush1.msra.mxu0 0.0
        %2376 = vmatprep.subr.mxu0 0.0
        %2377 = vmatpush1.msra.mxu0 0.0
        %2378 = vmatprep.subr.mxu0 0.0
        %2379 = vmatpush1.msra.mxu0 0.0
        %2380 = vmatprep.subr.mxu0 0.0
        %2381 = vmatpush1.msra.mxu0 0.0
        %2382 = vmatprep.subr.mxu0 0.0
        %2383 = vmatpush1.msra.mxu0 0.0
        %2384 = vmatprep.subr.mxu0 0.0
        %2385 = vmatpush1.msra.mxu0 0.0
        %2386 = vmatprep.subr.mxu0 0.0
        %2387 = vmatpush1.msra.mxu0 0.0
        %2388 = vmatprep.mubr.f32.mxu0 0.0
        %2389 = vmatmul.mubr.f32.gmra.mrb[0].mxu0 %v2322
        %v2390 = vpop.f32.mrb[0].mxu0
        %v2391 = vadd.f32 0.0, %v2390
        %v2392 = vpop.f32.mrb[0].mxu0
        %v2393 = vadd.f32 0.0, %v2392
        %2394 = vdwg.mxu0
        %v2395 = vadd.f32 %v2306, %v2391
        %v2396 = vadd.f32 %v2307, %v2393
        %s2397 = scalar_lea.vmem [#allocation15], 192
        %v2398 = vld [vmem:[%s2397] sm:$0xff]
        %v2399 = vld [vmem:[%s2397 + $0x8] sm:$0xff]
        %v2400 = vld [vmem:[%s2397 + $0x10] sm:$0xff]
        %v2401 = vld [vmem:[%s2397 + $0x18] sm:$0xff]
        %v2402 = vunpack.c.l.bf16 %v2398
        %v2403 = vunpack.c.h.bf16 %v2398
        %v2404 = vunpack.c.l.bf16 %v2399
        %v2405 = vunpack.c.h.bf16 %v2399
        %v2406 = vunpack.c.l.bf16 %v2400
        %v2407 = vunpack.c.h.bf16 %v2400
        %v2408 = vunpack.c.l.bf16 %v2401
        %v2409 = vunpack.c.h.bf16 %v2401
        %v2410 = vrot.slane %v1862, 6
        %v2411 = vsel %vm1894, %v2410, 0
        %2413 = vmatprep.subr.mxu0 %v2403
        %2414 = vmatpush1.msra.mxu0 %v2402
        %2415 = vmatprep.subr.mxu0 %v2405
        %2416 = vmatpush1.msra.mxu0 %v2404
        %2417 = vmatprep.subr.mxu0 %v2407
        %2418 = vmatpush1.msra.mxu0 %v2406
        %2419 = vmatprep.subr.mxu0 %v2409
        %2420 = vmatpush1.msra.mxu0 %v2408
        %2421 = vmatprep.subr.mxu0 0.0
        %2422 = vmatpush1.msra.mxu0 0.0
        %2423 = vmatprep.subr.mxu0 0.0
        %2424 = vmatpush1.msra.mxu0 0.0
        %2425 = vmatprep.subr.mxu0 0.0
        %2426 = vmatpush1.msra.mxu0 0.0
        %2427 = vmatprep.subr.mxu0 0.0
        %2428 = vmatpush1.msra.mxu0 0.0
        %2429 = vmatprep.subr.mxu0 0.0
        %2430 = vmatpush1.msra.mxu0 0.0
        %2431 = vmatprep.subr.mxu0 0.0
        %2432 = vmatpush1.msra.mxu0 0.0
        %2433 = vmatprep.subr.mxu0 0.0
        %2434 = vmatpush1.msra.mxu0 0.0
        %2435 = vmatprep.subr.mxu0 0.0
        %2436 = vmatpush1.msra.mxu0 0.0
        %2437 = vmatprep.subr.mxu0 0.0
        %2438 = vmatpush1.msra.mxu0 0.0
        %2439 = vmatprep.subr.mxu0 0.0
        %2440 = vmatpush1.msra.mxu0 0.0
        %2441 = vmatprep.subr.mxu0 0.0
        %2442 = vmatpush1.msra.mxu0 0.0
        %2443 = vmatprep.subr.mxu0 0.0
        %2444 = vmatpush1.msra.mxu0 0.0
        %2445 = vmatprep.subr.mxu0 0.0
        %2446 = vmatpush1.msra.mxu0 0.0
        %2447 = vmatprep.subr.mxu0 0.0
        %2448 = vmatpush1.msra.mxu0 0.0
        %2449 = vmatprep.subr.mxu0 0.0
        %2450 = vmatpush1.msra.mxu0 0.0
        %2451 = vmatprep.subr.mxu0 0.0
        %2452 = vmatpush1.msra.mxu0 0.0
        %2453 = vmatprep.subr.mxu0 0.0
        %2454 = vmatpush1.msra.mxu0 0.0
        %2455 = vmatprep.subr.mxu0 0.0
        %2456 = vmatpush1.msra.mxu0 0.0
        %2457 = vmatprep.subr.mxu0 0.0
        %2458 = vmatpush1.msra.mxu0 0.0
        %2459 = vmatprep.subr.mxu0 0.0
        %2460 = vmatpush1.msra.mxu0 0.0
        %2461 = vmatprep.subr.mxu0 0.0
        %2462 = vmatpush1.msra.mxu0 0.0
        %2463 = vmatprep.subr.mxu0 0.0
        %2464 = vmatpush1.msra.mxu0 0.0
        %2465 = vmatprep.subr.mxu0 0.0
        %2466 = vmatpush1.msra.mxu0 0.0
        %2467 = vmatprep.subr.mxu0 0.0
        %2468 = vmatpush1.msra.mxu0 0.0
        %2469 = vmatprep.subr.mxu0 0.0
        %2470 = vmatpush1.msra.mxu0 0.0
        %2471 = vmatprep.subr.mxu0 0.0
        %2472 = vmatpush1.msra.mxu0 0.0
        %2473 = vmatprep.subr.mxu0 0.0
        %2474 = vmatpush1.msra.mxu0 0.0
        %2475 = vmatprep.subr.mxu0 0.0
        %2476 = vmatpush1.msra.mxu0 0.0
        %2477 = vmatprep.mubr.f32.mxu0 0.0
        %2478 = vmatmul.mubr.f32.gmra.mrb[0].mxu0 %v2411
        %v2479 = vpop.f32.mrb[0].mxu0
        %v2480 = vadd.f32 0.0, %v2479
        %v2481 = vpop.f32.mrb[0].mxu0
        %v2482 = vadd.f32 0.0, %v2481
        %2483 = vdwg.mxu0
        %v2484 = vadd.f32 %v2395, %v2480
        %v2485 = vadd.f32 %v2396, %v2482
        %s2486 = scalar_lea.vmem [#allocation15], 224
        %v2487 = vld [vmem:[%s2486] sm:$0xff]
        %v2488 = vld [vmem:[%s2486 + $0x8] sm:$0xff]
        %v2489 = vld [vmem:[%s2486 + $0x10] sm:$0xff]
        %v2490 = vld [vmem:[%s2486 + $0x18] sm:$0xff]
        %v2491 = vunpack.c.l.bf16 %v2487
        %v2492 = vunpack.c.h.bf16 %v2487
        %v2493 = vunpack.c.l.bf16 %v2488
        %v2494 = vunpack.c.h.bf16 %v2488
        %v2495 = vunpack.c.l.bf16 %v2489
        %v2496 = vunpack.c.h.bf16 %v2489
        %v2497 = vunpack.c.l.bf16 %v2490
        %v2498 = vunpack.c.h.bf16 %v2490
        %v2499 = vrot.slane %v1862, 7
        %v2500 = vsel %vm1894, %v2499, 0
        %2502 = vmatprep.subr.mxu0 %v2492
        %2503 = vmatpush1.msra.mxu0 %v2491
        %2504 = vmatprep.subr.mxu0 %v2494
        %2505 = vmatpush1.msra.mxu0 %v2493
        %2506 = vmatprep.subr.mxu0 %v2496
        %2507 = vmatpush1.msra.mxu0 %v2495
        %2508 = vmatprep.subr.mxu0 %v2498
        %2509 = vmatpush1.msra.mxu0 %v2497
        %2510 = vmatprep.subr.mxu0 0.0
        %2511 = vmatpush1.msra.mxu0 0.0
        %2512 = vmatprep.subr.mxu0 0.0
        %2513 = vmatpush1.msra.mxu0 0.0
        %2514 = vmatprep.subr.mxu0 0.0
        %2515 = vmatpush1.msra.mxu0 0.0
        %2516 = vmatprep.subr.mxu0 0.0
        %2517 = vmatpush1.msra.mxu0 0.0
        %2518 = vmatprep.subr.mxu0 0.0
        %2519 = vmatpush1.msra.mxu0 0.0
        %2520 = vmatprep.subr.mxu0 0.0
        %2521 = vmatpush1.msra.mxu0 0.0
        %2522 = vmatprep.subr.mxu0 0.0
        %2523 = vmatpush1.msra.mxu0 0.0
        %2524 = vmatprep.subr.mxu0 0.0
        %2525 = vmatpush1.msra.mxu0 0.0
        %2526 = vmatprep.subr.mxu0 0.0
        %2527 = vmatpush1.msra.mxu0 0.0
        %2528 = vmatprep.subr.mxu0 0.0
        %2529 = vmatpush1.msra.mxu0 0.0
        %2530 = vmatprep.subr.mxu0 0.0
        %2531 = vmatpush1.msra.mxu0 0.0
        %2532 = vmatprep.subr.mxu0 0.0
        %2533 = vmatpush1.msra.mxu0 0.0
        %2534 = vmatprep.subr.mxu0 0.0
        %2535 = vmatpush1.msra.mxu0 0.0
        %2536 = vmatprep.subr.mxu0 0.0
        %2537 = vmatpush1.msra.mxu0 0.0
        %2538 = vmatprep.subr.mxu0 0.0
        %2539 = vmatpush1.msra.mxu0 0.0
        %2540 = vmatprep.subr.mxu0 0.0
        %2541 = vmatpush1.msra.mxu0 0.0
        %2542 = vmatprep.subr.mxu0 0.0
        %2543 = vmatpush1.msra.mxu0 0.0
        %2544 = vmatprep.subr.mxu0 0.0
        %2545 = vmatpush1.msra.mxu0 0.0
        %2546 = vmatprep.subr.mxu0 0.0
        %2547 = vmatpush1.msra.mxu0 0.0
        %2548 = vmatprep.subr.mxu0 0.0
        %2549 = vmatpush1.msra.mxu0 0.0
        %2550 = vmatprep.subr.mxu0 0.0
        %2551 = vmatpush1.msra.mxu0 0.0
        %2552 = vmatprep.subr.mxu0 0.0
        %2553 = vmatpush1.msra.mxu0 0.0
        %2554 = vmatprep.subr.mxu0 0.0
        %2555 = vmatpush1.msra.mxu0 0.0
        %2556 = vmatprep.subr.mxu0 0.0
        %2557 = vmatpush1.msra.mxu0 0.0
        %2558 = vmatprep.subr.mxu0 0.0
        %2559 = vmatpush1.msra.mxu0 0.0
        %2560 = vmatprep.subr.mxu0 0.0
        %2561 = vmatpush1.msra.mxu0 0.0
        %2562 = vmatprep.subr.mxu0 0.0
        %2563 = vmatpush1.msra.mxu0 0.0
        %2564 = vmatprep.subr.mxu0 0.0
        %2565 = vmatpush1.msra.mxu0 0.0
        %2566 = vmatprep.mubr.f32.mxu0 0.0
        %2567 = vmatmul.mubr.f32.gmra.mrb[0].mxu0 %v2500
        %v2568 = vpop.f32.mrb[0].mxu0
        %v2569 = vadd.f32 0.0, %v2568
        %v2570 = vpop.f32.mrb[0].mxu0
        %v2571 = vadd.f32 0.0, %v2570
        %2572 = vdwg.mxu0
        %v2573 = vadd.f32 %v2484, %v2569
        %v2574 = vadd.f32 %v2485, %v2571
        %s2575 = scalar_lea.vmem [#allocation15], 256
        %v2576 = vld [vmem:[%s2575] sm:$0xff]
        %v2577 = vld [vmem:[%s2575 + $0x8] sm:$0xff]
        %v2578 = vld [vmem:[%s2575 + $0x10] sm:$0xff]
        %v2579 = vld [vmem:[%s2575 + $0x18] sm:$0xff]
        %v2580 = vunpack.c.l.bf16 %v2576
        %v2581 = vunpack.c.h.bf16 %v2576
        %v2582 = vunpack.c.l.bf16 %v2577
        %v2583 = vunpack.c.h.bf16 %v2577
        %v2584 = vunpack.c.l.bf16 %v2578
        %v2585 = vunpack.c.h.bf16 %v2578
        %v2586 = vunpack.c.l.bf16 %v2579
        %v2587 = vunpack.c.h.bf16 %v2579
        %v2589 = vsel %vm1894, %v1863, 0
        %2591 = vmatprep.subr.mxu0 %v2581
        %2592 = vmatpush1.msra.mxu0 %v2580
        %2593 = vmatprep.subr.mxu0 %v2583
        %2594 = vmatpush1.msra.mxu0 %v2582
        %2595 = vmatprep.subr.mxu0 %v2585
        %2596 = vmatpush1.msra.mxu0 %v2584
        %2597 = vmatprep.subr.mxu0 %v2587
        %2598 = vmatpush1.msra.mxu0 %v2586
        %2599 = vmatprep.subr.mxu0 0.0
        %2600 = vmatpush1.msra.mxu0 0.0
        %2601 = vmatprep.subr.mxu0 0.0
        %2602 = vmatpush1.msra.mxu0 0.0
        %2603 = vmatprep.subr.mxu0 0.0
        %2604 = vmatpush1.msra.mxu0 0.0
        %2605 = vmatprep.subr.mxu0 0.0
        %2606 = vmatpush1.msra.mxu0 0.0
        %2607 = vmatprep.subr.mxu0 0.0
        %2608 = vmatpush1.msra.mxu0 0.0
        %2609 = vmatprep.subr.mxu0 0.0
        %2610 = vmatpush1.msra.mxu0 0.0
        %2611 = vmatprep.subr.mxu0 0.0
        %2612 = vmatpush1.msra.mxu0 0.0
        %2613 = vmatprep.subr.mxu0 0.0
        %2614 = vmatpush1.msra.mxu0 0.0
        %2615 = vmatprep.subr.mxu0 0.0
        %2616 = vmatpush1.msra.mxu0 0.0
        %2617 = vmatprep.subr.mxu0 0.0
        %2618 = vmatpush1.msra.mxu0 0.0
        %2619 = vmatprep.subr.mxu0 0.0
        %2620 = vmatpush1.msra.mxu0 0.0
        %2621 = vmatprep.subr.mxu0 0.0
        %2622 = vmatpush1.msra.mxu0 0.0
        %2623 = vmatprep.subr.mxu0 0.0
        %2624 = vmatpush1.msra.mxu0 0.0
        %2625 = vmatprep.subr.mxu0 0.0
        %2626 = vmatpush1.msra.mxu0 0.0
        %2627 = vmatprep.subr.mxu0 0.0
        %2628 = vmatpush1.msra.mxu0 0.0
        %2629 = vmatprep.subr.mxu0 0.0
        %2630 = vmatpush1.msra.mxu0 0.0
        %2631 = vmatprep.subr.mxu0 0.0
        %2632 = vmatpush1.msra.mxu0 0.0
        %2633 = vmatprep.subr.mxu0 0.0
        %2634 = vmatpush1.msra.mxu0 0.0
        %2635 = vmatprep.subr.mxu0 0.0
        %2636 = vmatpush1.msra.mxu0 0.0
        %2637 = vmatprep.subr.mxu0 0.0
        %2638 = vmatpush1.msra.mxu0 0.0
        %2639 = vmatprep.subr.mxu0 0.0
        %2640 = vmatpush1.msra.mxu0 0.0
        %2641 = vmatprep.subr.mxu0 0.0
        %2642 = vmatpush1.msra.mxu0 0.0
        %2643 = vmatprep.subr.mxu0 0.0
        %2644 = vmatpush1.msra.mxu0 0.0
        %2645 = vmatprep.subr.mxu0 0.0
        %2646 = vmatpush1.msra.mxu0 0.0
        %2647 = vmatprep.subr.mxu0 0.0
        %2648 = vmatpush1.msra.mxu0 0.0
        %2649 = vmatprep.subr.mxu0 0.0
        %2650 = vmatpush1.msra.mxu0 0.0
        %2651 = vmatprep.subr.mxu0 0.0
        %2652 = vmatpush1.msra.mxu0 0.0
        %2653 = vmatprep.subr.mxu0 0.0
        %2654 = vmatpush1.msra.mxu0 0.0
        %2655 = vmatprep.mubr.f32.mxu0 0.0
        %2656 = vmatmul.mubr.f32.gmra.mrb[0].mxu0 %v2589
        %v2657 = vpop.f32.mrb[0].mxu0
        %v2658 = vadd.f32 0.0, %v2657
        %v2659 = vpop.f32.mrb[0].mxu0
        %v2660 = vadd.f32 0.0, %v2659
        %2661 = vdwg.mxu0
        %v2662 = vadd.f32 %v2573, %v2658
        %v2663 = vadd.f32 %v2574, %v2660
        %s2664 = scalar_lea.vmem [#allocation15], 288
        %v2665 = vld [vmem:[%s2664] sm:$0xff]
        %v2666 = vld [vmem:[%s2664 + $0x8] sm:$0xff]
        %v2667 = vld [vmem:[%s2664 + $0x10] sm:$0xff]
        %v2668 = vld [vmem:[%s2664 + $0x18] sm:$0xff]
        %v2669 = vunpack.c.l.bf16 %v2665
        %v2670 = vunpack.c.h.bf16 %v2665
        %v2671 = vunpack.c.l.bf16 %v2666
        %v2672 = vunpack.c.h.bf16 %v2666
        %v2673 = vunpack.c.l.bf16 %v2667
        %v2674 = vunpack.c.h.bf16 %v2667
        %v2675 = vunpack.c.l.bf16 %v2668
        %v2676 = vunpack.c.h.bf16 %v2668
        %v2677 = vrot.slane %v1863, 1
        %v2678 = vsel %vm1894, %v2677, 0
        %2680 = vmatprep.subr.mxu0 %v2670
        %2681 = vmatpush1.msra.mxu0 %v2669
        %2682 = vmatprep.subr.mxu0 %v2672
        %2683 = vmatpush1.msra.mxu0 %v2671
        %2684 = vmatprep.subr.mxu0 %v2674
        %2685 = vmatpush1.msra.mxu0 %v2673
        %2686 = vmatprep.subr.mxu0 %v2676
        %2687 = vmatpush1.msra.mxu0 %v2675
        %2688 = vmatprep.subr.mxu0 0.0
        %2689 = vmatpush1.msra.mxu0 0.0
        %2690 = vmatprep.subr.mxu0 0.0
        %2691 = vmatpush1.msra.mxu0 0.0
        %2692 = vmatprep.subr.mxu0 0.0
        %2693 = vmatpush1.msra.mxu0 0.0
        %2694 = vmatprep.subr.mxu0 0.0
        %2695 = vmatpush1.msra.mxu0 0.0
        %2696 = vmatprep.subr.mxu0 0.0
        %2697 = vmatpush1.msra.mxu0 0.0
        %2698 = vmatprep.subr.mxu0 0.0
        %2699 = vmatpush1.msra.mxu0 0.0
        %2700 = vmatprep.subr.mxu0 0.0
        %2701 = vmatpush1.msra.mxu0 0.0
        %2702 = vmatprep.subr.mxu0 0.0
        %2703 = vmatpush1.msra.mxu0 0.0
        %2704 = vmatprep.subr.mxu0 0.0
        %2705 = vmatpush1.msra.mxu0 0.0
        %2706 = vmatprep.subr.mxu0 0.0
        %2707 = vmatpush1.msra.mxu0 0.0
        %2708 = vmatprep.subr.mxu0 0.0
        %2709 = vmatpush1.msra.mxu0 0.0
        %2710 = vmatprep.subr.mxu0 0.0
        %2711 = vmatpush1.msra.mxu0 0.0
        %2712 = vmatprep.subr.mxu0 0.0
        %2713 = vmatpush1.msra.mxu0 0.0
        %2714 = vmatprep.subr.mxu0 0.0
        %2715 = vmatpush1.msra.mxu0 0.0
        %2716 = vmatprep.subr.mxu0 0.0
        %2717 = vmatpush1.msra.mxu0 0.0
        %2718 = vmatprep.subr.mxu0 0.0
        %2719 = vmatpush1.msra.mxu0 0.0
        %2720 = vmatprep.subr.mxu0 0.0
        %2721 = vmatpush1.msra.mxu0 0.0
        %2722 = vmatprep.subr.mxu0 0.0
        %2723 = vmatpush1.msra.mxu0 0.0
        %2724 = vmatprep.subr.mxu0 0.0
        %2725 = vmatpush1.msra.mxu0 0.0
        %2726 = vmatprep.subr.mxu0 0.0
        %2727 = vmatpush1.msra.mxu0 0.0
        %2728 = vmatprep.subr.mxu0 0.0
        %2729 = vmatpush1.msra.mxu0 0.0
        %2730 = vmatprep.subr.mxu0 0.0
        %2731 = vmatpush1.msra.mxu0 0.0
        %2732 = vmatprep.subr.mxu0 0.0
        %2733 = vmatpush1.msra.mxu0 0.0
        %2734 = vmatprep.subr.mxu0 0.0
        %2735 = vmatpush1.msra.mxu0 0.0
        %2736 = vmatprep.subr.mxu0 0.0
        %2737 = vmatpush1.msra.mxu0 0.0
        %2738 = vmatprep.subr.mxu0 0.0
        %2739 = vmatpush1.msra.mxu0 0.0
        %2740 = vmatprep.subr.mxu0 0.0
        %2741 = vmatpush1.msra.mxu0 0.0
        %2742 = vmatprep.subr.mxu0 0.0
        %2743 = vmatpush1.msra.mxu0 0.0
        %2744 = vmatprep.mubr.f32.mxu0 0.0
        %2745 = vmatmul.mubr.f32.gmra.mrb[0].mxu0 %v2678
        %v2746 = vpop.f32.mrb[0].mxu0
        %v2747 = vadd.f32 0.0, %v2746
        %v2748 = vpop.f32.mrb[0].mxu0
        %v2749 = vadd.f32 0.0, %v2748
        %2750 = vdwg.mxu0
        %v2751 = vadd.f32 %v2662, %v2747
        %v2752 = vadd.f32 %v2663, %v2749
        %s2753 = scalar_lea.vmem [#allocation15], 320
        %v2754 = vld [vmem:[%s2753] sm:$0xff]
        %v2755 = vld [vmem:[%s2753 + $0x8] sm:$0xff]
        %v2756 = vld [vmem:[%s2753 + $0x10] sm:$0xff]
        %v2757 = vld [vmem:[%s2753 + $0x18] sm:$0xff]
        %v2758 = vunpack.c.l.bf16 %v2754
        %v2759 = vunpack.c.h.bf16 %v2754
        %v2760 = vunpack.c.l.bf16 %v2755
        %v2761 = vunpack.c.h.bf16 %v2755
        %v2762 = vunpack.c.l.bf16 %v2756
        %v2763 = vunpack.c.h.bf16 %v2756
        %v2764 = vunpack.c.l.bf16 %v2757
        %v2765 = vunpack.c.h.bf16 %v2757
        %v2766 = vrot.slane %v1863, 2
        %v2767 = vsel %vm1894, %v2766, 0
        %2769 = vmatprep.subr.mxu0 %v2759
        %2770 = vmatpush1.msra.mxu0 %v2758
        %2771 = vmatprep.subr.mxu0 %v2761
        %2772 = vmatpush1.msra.mxu0 %v2760
        %2773 = vmatprep.subr.mxu0 %v2763
        %2774 = vmatpush1.msra.mxu0 %v2762
        %2775 = vmatprep.subr.mxu0 %v2765
        %2776 = vmatpush1.msra.mxu0 %v2764
        %2777 = vmatprep.subr.mxu0 0.0
        %2778 = vmatpush1.msra.mxu0 0.0
        %2779 = vmatprep.subr.mxu0 0.0
        %2780 = vmatpush1.msra.mxu0 0.0
        %2781 = vmatprep.subr.mxu0 0.0
        %2782 = vmatpush1.msra.mxu0 0.0
        %2783 = vmatprep.subr.mxu0 0.0
        %2784 = vmatpush1.msra.mxu0 0.0
        %2785 = vmatprep.subr.mxu0 0.0
        %2786 = vmatpush1.msra.mxu0 0.0
        %2787 = vmatprep.subr.mxu0 0.0
        %2788 = vmatpush1.msra.mxu0 0.0
        %2789 = vmatprep.subr.mxu0 0.0
        %2790 = vmatpush1.msra.mxu0 0.0
        %2791 = vmatprep.subr.mxu0 0.0
        %2792 = vmatpush1.msra.mxu0 0.0
        %2793 = vmatprep.subr.mxu0 0.0
        %2794 = vmatpush1.msra.mxu0 0.0
        %2795 = vmatprep.subr.mxu0 0.0
        %2796 = vmatpush1.msra.mxu0 0.0
        %2797 = vmatprep.subr.mxu0 0.0
        %2798 = vmatpush1.msra.mxu0 0.0
        %2799 = vmatprep.subr.mxu0 0.0
        %2800 = vmatpush1.msra.mxu0 0.0
        %2801 = vmatprep.subr.mxu0 0.0
        %2802 = vmatpush1.msra.mxu0 0.0
        %2803 = vmatprep.subr.mxu0 0.0
        %2804 = vmatpush1.msra.mxu0 0.0
        %2805 = vmatprep.subr.mxu0 0.0
        %2806 = vmatpush1.msra.mxu0 0.0
        %2807 = vmatprep.subr.mxu0 0.0
        %2808 = vmatpush1.msra.mxu0 0.0
        %2809 = vmatprep.subr.mxu0 0.0
        %2810 = vmatpush1.msra.mxu0 0.0
        %2811 = vmatprep.subr.mxu0 0.0
        %2812 = vmatpush1.msra.mxu0 0.0
        %2813 = vmatprep.subr.mxu0 0.0
        %2814 = vmatpush1.msra.mxu0 0.0
        %2815 = vmatprep.subr.mxu0 0.0
        %2816 = vmatpush1.msra.mxu0 0.0
        %2817 = vmatprep.subr.mxu0 0.0
        %2818 = vmatpush1.msra.mxu0 0.0
        %2819 = vmatprep.subr.mxu0 0.0
        %2820 = vmatpush1.msra.mxu0 0.0
        %2821 = vmatprep.subr.mxu0 0.0
        %2822 = vmatpush1.msra.mxu0 0.0
        %2823 = vmatprep.subr.mxu0 0.0
        %2824 = vmatpush1.msra.mxu0 0.0
        %2825 = vmatprep.subr.mxu0 0.0
        %2826 = vmatpush1.msra.mxu0 0.0
        %2827 = vmatprep.subr.mxu0 0.0
        %2828 = vmatpush1.msra.mxu0 0.0
        %2829 = vmatprep.subr.mxu0 0.0
        %2830 = vmatpush1.msra.mxu0 0.0
        %2831 = vmatprep.subr.mxu0 0.0
        %2832 = vmatpush1.msra.mxu0 0.0
        %2833 = vmatprep.mubr.f32.mxu0 0.0
        %2834 = vmatmul.mubr.f32.gmra.mrb[0].mxu0 %v2767
        %v2835 = vpop.f32.mrb[0].mxu0
        %v2836 = vadd.f32 0.0, %v2835
        %v2837 = vpop.f32.mrb[0].mxu0
        %v2838 = vadd.f32 0.0, %v2837
        %2839 = vdwg.mxu0
        %v2840 = vadd.f32 %v2751, %v2836
        %v2841 = vadd.f32 %v2752, %v2838
        %s2842 = scalar_lea.vmem [#allocation15], 352
        %v2843 = vld [vmem:[%s2842] sm:$0xff]
        %v2844 = vld [vmem:[%s2842 + $0x8] sm:$0xff]
        %v2845 = vld [vmem:[%s2842 + $0x10] sm:$0xff]
        %v2846 = vld [vmem:[%s2842 + $0x18] sm:$0xff]
        %v2847 = vunpack.c.l.bf16 %v2843
        %v2848 = vunpack.c.h.bf16 %v2843
        %v2849 = vunpack.c.l.bf16 %v2844
        %v2850 = vunpack.c.h.bf16 %v2844
        %v2851 = vunpack.c.l.bf16 %v2845
        %v2852 = vunpack.c.h.bf16 %v2845
        %v2853 = vunpack.c.l.bf16 %v2846
        %v2854 = vunpack.c.h.bf16 %v2846
        %v2855 = vrot.slane %v1863, 3
        %v2856 = vsel %vm1894, %v2855, 0
        %2858 = vmatprep.subr.mxu0 %v2848
        %2859 = vmatpush1.msra.mxu0 %v2847
        %2860 = vmatprep.subr.mxu0 %v2850
        %2861 = vmatpush1.msra.mxu0 %v2849
        %2862 = vmatprep.subr.mxu0 %v2852
        %2863 = vmatpush1.msra.mxu0 %v2851
        %2864 = vmatprep.subr.mxu0 %v2854
        %2865 = vmatpush1.msra.mxu0 %v2853
        %2866 = vmatprep.subr.mxu0 0.0
        %2867 = vmatpush1.msra.mxu0 0.0
        %2868 = vmatprep.subr.mxu0 0.0
        %2869 = vmatpush1.msra.mxu0 0.0
        %2870 = vmatprep.subr.mxu0 0.0
        %2871 = vmatpush1.msra.mxu0 0.0
        %2872 = vmatprep.subr.mxu0 0.0
        %2873 = vmatpush1.msra.mxu0 0.0
        %2874 = vmatprep.subr.mxu0 0.0
        %2875 = vmatpush1.msra.mxu0 0.0
        %2876 = vmatprep.subr.mxu0 0.0
        %2877 = vmatpush1.msra.mxu0 0.0
        %2878 = vmatprep.subr.mxu0 0.0
        %2879 = vmatpush1.msra.mxu0 0.0
        %2880 = vmatprep.subr.mxu0 0.0
        %2881 = vmatpush1.msra.mxu0 0.0
        %2882 = vmatprep.subr.mxu0 0.0
        %2883 = vmatpush1.msra.mxu0 0.0
        %2884 = vmatprep.subr.mxu0 0.0
        %2885 = vmatpush1.msra.mxu0 0.0
        %2886 = vmatprep.subr.mxu0 0.0
        %2887 = vmatpush1.msra.mxu0 0.0
        %2888 = vmatprep.subr.mxu0 0.0
        %2889 = vmatpush1.msra.mxu0 0.0
        %2890 = vmatprep.subr.mxu0 0.0
        %2891 = vmatpush1.msra.mxu0 0.0
        %2892 = vmatprep.subr.mxu0 0.0
        %2893 = vmatpush1.msra.mxu0 0.0
        %2894 = vmatprep.subr.mxu0 0.0
        %2895 = vmatpush1.msra.mxu0 0.0
        %2896 = vmatprep.subr.mxu0 0.0
        %2897 = vmatpush1.msra.mxu0 0.0
        %2898 = vmatprep.subr.mxu0 0.0
        %2899 = vmatpush1.msra.mxu0 0.0
        %2900 = vmatprep.subr.mxu0 0.0
        %2901 = vmatpush1.msra.mxu0 0.0
        %2902 = vmatprep.subr.mxu0 0.0
        %2903 = vmatpush1.msra.mxu0 0.0
        %2904 = vmatprep.subr.mxu0 0.0
        %2905 = vmatpush1.msra.mxu0 0.0
        %2906 = vmatprep.subr.mxu0 0.0
        %2907 = vmatpush1.msra.mxu0 0.0
        %2908 = vmatprep.subr.mxu0 0.0
        %2909 = vmatpush1.msra.mxu0 0.0
        %2910 = vmatprep.subr.mxu0 0.0
        %2911 = vmatpush1.msra.mxu0 0.0
        %2912 = vmatprep.subr.mxu0 0.0
        %2913 = vmatpush1.msra.mxu0 0.0
        %2914 = vmatprep.subr.mxu0 0.0
        %2915 = vmatpush1.msra.mxu0 0.0
        %2916 = vmatprep.subr.mxu0 0.0
        %2917 = vmatpush1.msra.mxu0 0.0
        %2918 = vmatprep.subr.mxu0 0.0
        %2919 = vmatpush1.msra.mxu0 0.0
        %2920 = vmatprep.subr.mxu0 0.0
        %2921 = vmatpush1.msra.mxu0 0.0
        %2922 = vmatprep.mubr.f32.mxu0 0.0
        %2923 = vmatmul.mubr.f32.gmra.mrb[0].mxu0 %v2856
        %v2924 = vpop.f32.mrb[0].mxu0
        %v2925 = vadd.f32 0.0, %v2924
        %v2926 = vpop.f32.mrb[0].mxu0
        %v2927 = vadd.f32 0.0, %v2926
        %2928 = vdwg.mxu0
        %v2929 = vadd.f32 %v2840, %v2925
        %v2930 = vadd.f32 %v2841, %v2927
        %s2931 = scalar_lea.vmem [#allocation15], 384
        %v2932 = vld [vmem:[%s2931] sm:$0xff]
        %v2933 = vld [vmem:[%s2931 + $0x8] sm:$0xff]
        %v2934 = vld [vmem:[%s2931 + $0x10] sm:$0xff]
        %v2935 = vld [vmem:[%s2931 + $0x18] sm:$0xff]
        %v2936 = vunpack.c.l.bf16 %v2932
        %v2937 = vunpack.c.h.bf16 %v2932
        %v2938 = vunpack.c.l.bf16 %v2933
        %v2939 = vunpack.c.h.bf16 %v2933
        %v2940 = vunpack.c.l.bf16 %v2934
        %v2941 = vunpack.c.h.bf16 %v2934
        %v2942 = vunpack.c.l.bf16 %v2935
        %v2943 = vunpack.c.h.bf16 %v2935
        %v2944 = vrot.slane %v1863, 4
        %v2945 = vsel %vm1894, %v2944, 0
        %2947 = vmatprep.subr.mxu0 %v2937
        %2948 = vmatpush1.msra.mxu0 %v2936
        %2949 = vmatprep.subr.mxu0 %v2939
        %2950 = vmatpush1.msra.mxu0 %v2938
        %2951 = vmatprep.subr.mxu0 %v2941
        %2952 = vmatpush1.msra.mxu0 %v2940
        %2953 = vmatprep.subr.mxu0 %v2943
        %2954 = vmatpush1.msra.mxu0 %v2942
        %2955 = vmatprep.subr.mxu0 0.0
        %2956 = vmatpush1.msra.mxu0 0.0
        %2957 = vmatprep.subr.mxu0 0.0
        %2958 = vmatpush1.msra.mxu0 0.0
        %2959 = vmatprep.subr.mxu0 0.0
        %2960 = vmatpush1.msra.mxu0 0.0
        %2961 = vmatprep.subr.mxu0 0.0
        %2962 = vmatpush1.msra.mxu0 0.0
        %2963 = vmatprep.subr.mxu0 0.0
        %2964 = vmatpush1.msra.mxu0 0.0
        %2965 = vmatprep.subr.mxu0 0.0
        %2966 = vmatpush1.msra.mxu0 0.0
        %2967 = vmatprep.subr.mxu0 0.0
        %2968 = vmatpush1.msra.mxu0 0.0
        %2969 = vmatprep.subr.mxu0 0.0
        %2970 = vmatpush1.msra.mxu0 0.0
        %2971 = vmatprep.subr.mxu0 0.0
        %2972 = vmatpush1.msra.mxu0 0.0
        %2973 = vmatprep.subr.mxu0 0.0
        %2974 = vmatpush1.msra.mxu0 0.0
        %2975 = vmatprep.subr.mxu0 0.0
        %2976 = vmatpush1.msra.mxu0 0.0
        %2977 = vmatprep.subr.mxu0 0.0
        %2978 = vmatpush1.msra.mxu0 0.0
        %2979 = vmatprep.subr.mxu0 0.0
        %2980 = vmatpush1.msra.mxu0 0.0
        %2981 = vmatprep.subr.mxu0 0.0
        %2982 = vmatpush1.msra.mxu0 0.0
        %2983 = vmatprep.subr.mxu0 0.0
        %2984 = vmatpush1.msra.mxu0 0.0
        %2985 = vmatprep.subr.mxu0 0.0
        %2986 = vmatpush1.msra.mxu0 0.0
        %2987 = vmatprep.subr.mxu0 0.0
        %2988 = vmatpush1.msra.mxu0 0.0
        %2989 = vmatprep.subr.mxu0 0.0
        %2990 = vmatpush1.msra.mxu0 0.0
        %2991 = vmatprep.subr.mxu0 0.0
        %2992 = vmatpush1.msra.mxu0 0.0
        %2993 = vmatprep.subr.mxu0 0.0
        %2994 = vmatpush1.msra.mxu0 0.0
        %2995 = vmatprep.subr.mxu0 0.0
        %2996 = vmatpush1.msra.mxu0 0.0
        %2997 = vmatprep.subr.mxu0 0.0
        %2998 = vmatpush1.msra.mxu0 0.0
        %2999 = vmatprep.subr.mxu0 0.0
        %3000 = vmatpush1.msra.mxu0 0.0
        %3001 = vmatprep.subr.mxu0 0.0
        %3002 = vmatpush1.msra.mxu0 0.0
        %3003 = vmatprep.subr.mxu0 0.0
        %3004 = vmatpush1.msra.mxu0 0.0
        %3005 = vmatprep.subr.mxu0 0.0
        %3006 = vmatpush1.msra.mxu0 0.0
        %3007 = vmatprep.subr.mxu0 0.0
        %3008 = vmatpush1.msra.mxu0 0.0
        %3009 = vmatprep.subr.mxu0 0.0
        %3010 = vmatpush1.msra.mxu0 0.0
        %3011 = vmatprep.mubr.f32.mxu0 0.0
        %3012 = vmatmul.mubr.f32.gmra.mrb[0].mxu0 %v2945
        %v3013 = vpop.f32.mrb[0].mxu0
        %v3014 = vadd.f32 0.0, %v3013
        %v3015 = vpop.f32.mrb[0].mxu0
        %v3016 = vadd.f32 0.0, %v3015
        %3017 = vdwg.mxu0
        %v3018 = vadd.f32 %v2929, %v3014
        %v3019 = vadd.f32 %v2930, %v3016
        %s3020 = scalar_lea.vmem [#allocation15], 416
        %v3021 = vld [vmem:[%s3020] sm:$0xff]
        %v3022 = vld [vmem:[%s3020 + $0x8] sm:$0xff]
        %v3023 = vld [vmem:[%s3020 + $0x10] sm:$0xff]
        %v3024 = vld [vmem:[%s3020 + $0x18] sm:$0xff]
        %v3025 = vunpack.c.l.bf16 %v3021
        %v3026 = vunpack.c.h.bf16 %v3021
        %v3027 = vunpack.c.l.bf16 %v3022
        %v3028 = vunpack.c.h.bf16 %v3022
        %v3029 = vunpack.c.l.bf16 %v3023
        %v3030 = vunpack.c.h.bf16 %v3023
        %v3031 = vunpack.c.l.bf16 %v3024
        %v3032 = vunpack.c.h.bf16 %v3024
        %v3033 = vrot.slane %v1863, 5
        %v3034 = vsel %vm1894, %v3033, 0
        %3036 = vmatprep.subr.mxu0 %v3026
        %3037 = vmatpush1.msra.mxu0 %v3025
        %3038 = vmatprep.subr.mxu0 %v3028
        %3039 = vmatpush1.msra.mxu0 %v3027
        %3040 = vmatprep.subr.mxu0 %v3030
        %3041 = vmatpush1.msra.mxu0 %v3029
        %3042 = vmatprep.subr.mxu0 %v3032
        %3043 = vmatpush1.msra.mxu0 %v3031
        %3044 = vmatprep.subr.mxu0 0.0
        %3045 = vmatpush1.msra.mxu0 0.0
        %3046 = vmatprep.subr.mxu0 0.0
        %3047 = vmatpush1.msra.mxu0 0.0
        %3048 = vmatprep.subr.mxu0 0.0
        %3049 = vmatpush1.msra.mxu0 0.0
        %3050 = vmatprep.subr.mxu0 0.0
        %3051 = vmatpush1.msra.mxu0 0.0
        %3052 = vmatprep.subr.mxu0 0.0
        %3053 = vmatpush1.msra.mxu0 0.0
        %3054 = vmatprep.subr.mxu0 0.0
        %3055 = vmatpush1.msra.mxu0 0.0
        %3056 = vmatprep.subr.mxu0 0.0
        %3057 = vmatpush1.msra.mxu0 0.0
        %3058 = vmatprep.subr.mxu0 0.0
        %3059 = vmatpush1.msra.mxu0 0.0
        %3060 = vmatprep.subr.mxu0 0.0
        %3061 = vmatpush1.msra.mxu0 0.0
        %3062 = vmatprep.subr.mxu0 0.0
        %3063 = vmatpush1.msra.mxu0 0.0
        %3064 = vmatprep.subr.mxu0 0.0
        %3065 = vmatpush1.msra.mxu0 0.0
        %3066 = vmatprep.subr.mxu0 0.0
        %3067 = vmatpush1.msra.mxu0 0.0
        %3068 = vmatprep.subr.mxu0 0.0
        %3069 = vmatpush1.msra.mxu0 0.0
        %3070 = vmatprep.subr.mxu0 0.0
        %3071 = vmatpush1.msra.mxu0 0.0
        %3072 = vmatprep.subr.mxu0 0.0
        %3073 = vmatpush1.msra.mxu0 0.0
        %3074 = vmatprep.subr.mxu0 0.0
        %3075 = vmatpush1.msra.mxu0 0.0
        %3076 = vmatprep.subr.mxu0 0.0
        %3077 = vmatpush1.msra.mxu0 0.0
        %3078 = vmatprep.subr.mxu0 0.0
        %3079 = vmatpush1.msra.mxu0 0.0
        %3080 = vmatprep.subr.mxu0 0.0
        %3081 = vmatpush1.msra.mxu0 0.0
        %3082 = vmatprep.subr.mxu0 0.0
        %3083 = vmatpush1.msra.mxu0 0.0
        %3084 = vmatprep.subr.mxu0 0.0
        %3085 = vmatpush1.msra.mxu0 0.0
        %3086 = vmatprep.subr.mxu0 0.0
        %3087 = vmatpush1.msra.mxu0 0.0
        %3088 = vmatprep.subr.mxu0 0.0
        %3089 = vmatpush1.msra.mxu0 0.0
        %3090 = vmatprep.subr.mxu0 0.0
        %3091 = vmatpush1.msra.mxu0 0.0
        %3092 = vmatprep.subr.mxu0 0.0
        %3093 = vmatpush1.msra.mxu0 0.0
        %3094 = vmatprep.subr.mxu0 0.0
        %3095 = vmatpush1.msra.mxu0 0.0
        %3096 = vmatprep.subr.mxu0 0.0
        %3097 = vmatpush1.msra.mxu0 0.0
        %3098 = vmatprep.subr.mxu0 0.0
        %3099 = vmatpush1.msra.mxu0 0.0
        %3100 = vmatprep.mubr.f32.mxu0 0.0
        %3101 = vmatmul.mubr.f32.gmra.mrb[0].mxu0 %v3034
        %v3102 = vpop.f32.mrb[0].mxu0
        %v3103 = vadd.f32 0.0, %v3102
        %v3104 = vpop.f32.mrb[0].mxu0
        %v3105 = vadd.f32 0.0, %v3104
        %3106 = vdwg.mxu0
        %v3107 = vadd.f32 %v3018, %v3103
        %v3108 = vadd.f32 %v3019, %v3105
        %s3109 = scalar_lea.vmem [#allocation15], 448
        %v3110 = vld [vmem:[%s3109] sm:$0xff]
        %v3111 = vld [vmem:[%s3109 + $0x8] sm:$0xff]
        %v3112 = vld [vmem:[%s3109 + $0x10] sm:$0xff]
        %v3113 = vld [vmem:[%s3109 + $0x18] sm:$0xff]
        %v3114 = vunpack.c.l.bf16 %v3110
        %v3115 = vunpack.c.h.bf16 %v3110
        %v3116 = vunpack.c.l.bf16 %v3111
        %v3117 = vunpack.c.h.bf16 %v3111
        %v3118 = vunpack.c.l.bf16 %v3112
        %v3119 = vunpack.c.h.bf16 %v3112
        %v3120 = vunpack.c.l.bf16 %v3113
        %v3121 = vunpack.c.h.bf16 %v3113
        %v3122 = vrot.slane %v1863, 6
        %v3123 = vsel %vm1894, %v3122, 0
        %3125 = vmatprep.subr.mxu0 %v3115
        %3126 = vmatpush1.msra.mxu0 %v3114
        %3127 = vmatprep.subr.mxu0 %v3117
        %3128 = vmatpush1.msra.mxu0 %v3116
        %3129 = vmatprep.subr.mxu0 %v3119
        %3130 = vmatpush1.msra.mxu0 %v3118
        %3131 = vmatprep.subr.mxu0 %v3121
        %3132 = vmatpush1.msra.mxu0 %v3120
        %3133 = vmatprep.subr.mxu0 0.0
        %3134 = vmatpush1.msra.mxu0 0.0
        %3135 = vmatprep.subr.mxu0 0.0
        %3136 = vmatpush1.msra.mxu0 0.0
        %3137 = vmatprep.subr.mxu0 0.0
        %3138 = vmatpush1.msra.mxu0 0.0
        %3139 = vmatprep.subr.mxu0 0.0
        %3140 = vmatpush1.msra.mxu0 0.0
        %3141 = vmatprep.subr.mxu0 0.0
        %3142 = vmatpush1.msra.mxu0 0.0
        %3143 = vmatprep.subr.mxu0 0.0
        %3144 = vmatpush1.msra.mxu0 0.0
        %3145 = vmatprep.subr.mxu0 0.0
        %3146 = vmatpush1.msra.mxu0 0.0
        %3147 = vmatprep.subr.mxu0 0.0
        %3148 = vmatpush1.msra.mxu0 0.0
        %3149 = vmatprep.subr.mxu0 0.0
        %3150 = vmatpush1.msra.mxu0 0.0
        %3151 = vmatprep.subr.mxu0 0.0
        %3152 = vmatpush1.msra.mxu0 0.0
        %3153 = vmatprep.subr.mxu0 0.0
        %3154 = vmatpush1.msra.mxu0 0.0
        %3155 = vmatprep.subr.mxu0 0.0
        %3156 = vmatpush1.msra.mxu0 0.0
        %3157 = vmatprep.subr.mxu0 0.0
        %3158 = vmatpush1.msra.mxu0 0.0
        %3159 = vmatprep.subr.mxu0 0.0
        %3160 = vmatpush1.msra.mxu0 0.0
        %3161 = vmatprep.subr.mxu0 0.0
        %3162 = vmatpush1.msra.mxu0 0.0
        %3163 = vmatprep.subr.mxu0 0.0
        %3164 = vmatpush1.msra.mxu0 0.0
        %3165 = vmatprep.subr.mxu0 0.0
        %3166 = vmatpush1.msra.mxu0 0.0
        %3167 = vmatprep.subr.mxu0 0.0
        %3168 = vmatpush1.msra.mxu0 0.0
        %3169 = vmatprep.subr.mxu0 0.0
        %3170 = vmatpush1.msra.mxu0 0.0
        %3171 = vmatprep.subr.mxu0 0.0
        %3172 = vmatpush1.msra.mxu0 0.0
        %3173 = vmatprep.subr.mxu0 0.0
        %3174 = vmatpush1.msra.mxu0 0.0
        %3175 = vmatprep.subr.mxu0 0.0
        %3176 = vmatpush1.msra.mxu0 0.0
        %3177 = vmatprep.subr.mxu0 0.0
        %3178 = vmatpush1.msra.mxu0 0.0
        %3179 = vmatprep.subr.mxu0 0.0
        %3180 = vmatpush1.msra.mxu0 0.0
        %3181 = vmatprep.subr.mxu0 0.0
        %3182 = vmatpush1.msra.mxu0 0.0
        %3183 = vmatprep.subr.mxu0 0.0
        %3184 = vmatpush1.msra.mxu0 0.0
        %3185 = vmatprep.subr.mxu0 0.0
        %3186 = vmatpush1.msra.mxu0 0.0
        %3187 = vmatprep.subr.mxu0 0.0
        %3188 = vmatpush1.msra.mxu0 0.0
        %3189 = vmatprep.mubr.f32.mxu0 0.0
        %3190 = vmatmul.mubr.f32.gmra.mrb[0].mxu0 %v3123
        %v3191 = vpop.f32.mrb[0].mxu0
        %v3192 = vadd.f32 0.0, %v3191
        %v3193 = vpop.f32.mrb[0].mxu0
        %v3194 = vadd.f32 0.0, %v3193
        %3195 = vdwg.mxu0
        %v3196 = vadd.f32 %v3107, %v3192
        %v3197 = vadd.f32 %v3108, %v3194
        %s3198 = scalar_lea.vmem [#allocation15], 480
        %v3199 = vld [vmem:[%s3198] sm:$0xff]
        %v3200 = vld [vmem:[%s3198 + $0x8] sm:$0xff]
        %v3201 = vld [vmem:[%s3198 + $0x10] sm:$0xff]
        %v3202 = vld [vmem:[%s3198 + $0x18] sm:$0xff]
        %v3203 = vunpack.c.l.bf16 %v3199
        %v3204 = vunpack.c.h.bf16 %v3199
        %v3205 = vunpack.c.l.bf16 %v3200
        %v3206 = vunpack.c.h.bf16 %v3200
        %v3207 = vunpack.c.l.bf16 %v3201
        %v3208 = vunpack.c.h.bf16 %v3201
        %v3209 = vunpack.c.l.bf16 %v3202
        %v3210 = vunpack.c.h.bf16 %v3202
        %v3211 = vrot.slane %v1863, 7
        %v3212 = vsel %vm1894, %v3211, 0
        %3214 = vmatprep.subr.mxu0 %v3204
        %3215 = vmatpush1.msra.mxu0 %v3203
        %3216 = vmatprep.subr.mxu0 %v3206
        %3217 = vmatpush1.msra.mxu0 %v3205
        %3218 = vmatprep.subr.mxu0 %v3208
        %3219 = vmatpush1.msra.mxu0 %v3207
        %3220 = vmatprep.subr.mxu0 %v3210
        %3221 = vmatpush1.msra.mxu0 %v3209
        %3222 = vmatprep.subr.mxu0 0.0
        %3223 = vmatpush1.msra.mxu0 0.0
        %3224 = vmatprep.subr.mxu0 0.0
        %3225 = vmatpush1.msra.mxu0 0.0
        %3226 = vmatprep.subr.mxu0 0.0
        %3227 = vmatpush1.msra.mxu0 0.0
        %3228 = vmatprep.subr.mxu0 0.0
        %3229 = vmatpush1.msra.mxu0 0.0
        %3230 = vmatprep.subr.mxu0 0.0
        %3231 = vmatpush1.msra.mxu0 0.0
        %3232 = vmatprep.subr.mxu0 0.0
        %3233 = vmatpush1.msra.mxu0 0.0
        %3234 = vmatprep.subr.mxu0 0.0
        %3235 = vmatpush1.msra.mxu0 0.0
        %3236 = vmatprep.subr.mxu0 0.0
        %3237 = vmatpush1.msra.mxu0 0.0
        %3238 = vmatprep.subr.mxu0 0.0
        %3239 = vmatpush1.msra.mxu0 0.0
        %3240 = vmatprep.subr.mxu0 0.0
        %3241 = vmatpush1.msra.mxu0 0.0
        %3242 = vmatprep.subr.mxu0 0.0
        %3243 = vmatpush1.msra.mxu0 0.0
        %3244 = vmatprep.subr.mxu0 0.0
        %3245 = vmatpush1.msra.mxu0 0.0
        %3246 = vmatprep.subr.mxu0 0.0
        %3247 = vmatpush1.msra.mxu0 0.0
        %3248 = vmatprep.subr.mxu0 0.0
        %3249 = vmatpush1.msra.mxu0 0.0
        %3250 = vmatprep.subr.mxu0 0.0
        %3251 = vmatpush1.msra.mxu0 0.0
        %3252 = vmatprep.subr.mxu0 0.0
        %3253 = vmatpush1.msra.mxu0 0.0
        %3254 = vmatprep.subr.mxu0 0.0
        %3255 = vmatpush1.msra.mxu0 0.0
        %3256 = vmatprep.subr.mxu0 0.0
        %3257 = vmatpush1.msra.mxu0 0.0
        %3258 = vmatprep.subr.mxu0 0.0
        %3259 = vmatpush1.msra.mxu0 0.0
        %3260 = vmatprep.subr.mxu0 0.0
        %3261 = vmatpush1.msra.mxu0 0.0
        %3262 = vmatprep.subr.mxu0 0.0
        %3263 = vmatpush1.msra.mxu0 0.0
        %3264 = vmatprep.subr.mxu0 0.0
        %3265 = vmatpush1.msra.mxu0 0.0
        %3266 = vmatprep.subr.mxu0 0.0
        %3267 = vmatpush1.msra.mxu0 0.0
        %3268 = vmatprep.subr.mxu0 0.0
        %3269 = vmatpush1.msra.mxu0 0.0
        %3270 = vmatprep.subr.mxu0 0.0
        %3271 = vmatpush1.msra.mxu0 0.0
        %3272 = vmatprep.subr.mxu0 0.0
        %3273 = vmatpush1.msra.mxu0 0.0
        %3274 = vmatprep.subr.mxu0 0.0
        %3275 = vmatpush1.msra.mxu0 0.0
        %3276 = vmatprep.subr.mxu0 0.0
        %3277 = vmatpush1.msra.mxu0 0.0
        %3278 = vmatprep.mubr.f32.mxu0 0.0
        %3279 = vmatmul.mubr.f32.gmra.mrb[0].mxu0 %v3212
        %v3280 = vpop.f32.mrb[0].mxu0
        %v3281 = vadd.f32 0.0, %v3280
        %v3282 = vpop.f32.mrb[0].mxu0
        %v3283 = vadd.f32 0.0, %v3282
        %3284 = vdwg.mxu0
        %v3285 = vadd.f32 %v3196, %v3281
        %v3286 = vadd.f32 %v3197, %v3283
        %s3287 = scalar_lea.vmem [#allocation15], 512
        %v3288 = vld [vmem:[%s3287] sm:$0xff]
        %v3289 = vld [vmem:[%s3287 + $0x8] sm:$0xff]
        %v3290 = vld [vmem:[%s3287 + $0x10] sm:$0xff]
        %v3291 = vld [vmem:[%s3287 + $0x18] sm:$0xff]
        %v3292 = vunpack.c.l.bf16 %v3288
        %v3293 = vunpack.c.h.bf16 %v3288
        %v3294 = vunpack.c.l.bf16 %v3289
        %v3295 = vunpack.c.h.bf16 %v3289
        %v3296 = vunpack.c.l.bf16 %v3290
        %v3297 = vunpack.c.h.bf16 %v3290
        %v3298 = vunpack.c.l.bf16 %v3291
        %v3299 = vunpack.c.h.bf16 %v3291
        %v3301 = vsel %vm1894, %v1864, 0
        %3303 = vmatprep.subr.mxu0 %v3293
        %3304 = vmatpush1.msra.mxu0 %v3292
        %3305 = vmatprep.subr.mxu0 %v3295
        %3306 = vmatpush1.msra.mxu0 %v3294
        %3307 = vmatprep.subr.mxu0 %v3297
        %3308 = vmatpush1.msra.mxu0 %v3296
        %3309 = vmatprep.subr.mxu0 %v3299
        %3310 = vmatpush1.msra.mxu0 %v3298
        %3311 = vmatprep.subr.mxu0 0.0
        %3312 = vmatpush1.msra.mxu0 0.0
        %3313 = vmatprep.subr.mxu0 0.0
        %3314 = vmatpush1.msra.mxu0 0.0
        %3315 = vmatprep.subr.mxu0 0.0
        %3316 = vmatpush1.msra.mxu0 0.0
        %3317 = vmatprep.subr.mxu0 0.0
        %3318 = vmatpush1.msra.mxu0 0.0
        %3319 = vmatprep.subr.mxu0 0.0
        %3320 = vmatpush1.msra.mxu0 0.0
        %3321 = vmatprep.subr.mxu0 0.0
        %3322 = vmatpush1.msra.mxu0 0.0
        %3323 = vmatprep.subr.mxu0 0.0
        %3324 = vmatpush1.msra.mxu0 0.0
        %3325 = vmatprep.subr.mxu0 0.0
        %3326 = vmatpush1.msra.mxu0 0.0
        %3327 = vmatprep.subr.mxu0 0.0
        %3328 = vmatpush1.msra.mxu0 0.0
        %3329 = vmatprep.subr.mxu0 0.0
        %3330 = vmatpush1.msra.mxu0 0.0
        %3331 = vmatprep.subr.mxu0 0.0
        %3332 = vmatpush1.msra.mxu0 0.0
        %3333 = vmatprep.subr.mxu0 0.0
        %3334 = vmatpush1.msra.mxu0 0.0
        %3335 = vmatprep.subr.mxu0 0.0
        %3336 = vmatpush1.msra.mxu0 0.0
        %3337 = vmatprep.subr.mxu0 0.0
        %3338 = vmatpush1.msra.mxu0 0.0
        %3339 = vmatprep.subr.mxu0 0.0
        %3340 = vmatpush1.msra.mxu0 0.0
        %3341 = vmatprep.subr.mxu0 0.0
        %3342 = vmatpush1.msra.mxu0 0.0
        %3343 = vmatprep.subr.mxu0 0.0
        %3344 = vmatpush1.msra.mxu0 0.0
        %3345 = vmatprep.subr.mxu0 0.0
        %3346 = vmatpush1.msra.mxu0 0.0
        %3347 = vmatprep.subr.mxu0 0.0
        %3348 = vmatpush1.msra.mxu0 0.0
        %3349 = vmatprep.subr.mxu0 0.0
        %3350 = vmatpush1.msra.mxu0 0.0
        %3351 = vmatprep.subr.mxu0 0.0
        %3352 = vmatpush1.msra.mxu0 0.0
        %3353 = vmatprep.subr.mxu0 0.0
        %3354 = vmatpush1.msra.mxu0 0.0
        %3355 = vmatprep.subr.mxu0 0.0
        %3356 = vmatpush1.msra.mxu0 0.0
        %3357 = vmatprep.subr.mxu0 0.0
        %3358 = vmatpush1.msra.mxu0 0.0
        %3359 = vmatprep.subr.mxu0 0.0
        %3360 = vmatpush1.msra.mxu0 0.0
        %3361 = vmatprep.subr.mxu0 0.0
        %3362 = vmatpush1.msra.mxu0 0.0
        %3363 = vmatprep.subr.mxu0 0.0
        %3364 = vmatpush1.msra.mxu0 0.0
        %3365 = vmatprep.subr.mxu0 0.0
        %3366 = vmatpush1.msra.mxu0 0.0
        %3367 = vmatprep.mubr.f32.mxu0 0.0
        %3368 = vmatmul.mubr.f32.gmra.mrb[0].mxu0 %v3301
        %v3369 = vpop.f32.mrb[0].mxu0
        %v3370 = vadd.f32 0.0, %v3369
        %v3371 = vpop.f32.mrb[0].mxu0
        %v3372 = vadd.f32 0.0, %v3371
        %3373 = vdwg.mxu0
        %v3374 = vadd.f32 %v3285, %v3370
        %v3375 = vadd.f32 %v3286, %v3372
        %s3376 = scalar_lea.vmem [#allocation15], 544
        %v3377 = vld [vmem:[%s3376] sm:$0xff]
        %v3378 = vld [vmem:[%s3376 + $0x8] sm:$0xff]
        %v3379 = vld [vmem:[%s3376 + $0x10] sm:$0xff]
        %v3380 = vld [vmem:[%s3376 + $0x18] sm:$0xff]
        %v3381 = vunpack.c.l.bf16 %v3377
        %v3382 = vunpack.c.h.bf16 %v3377
        %v3383 = vunpack.c.l.bf16 %v3378
        %v3384 = vunpack.c.h.bf16 %v3378
        %v3385 = vunpack.c.l.bf16 %v3379
        %v3386 = vunpack.c.h.bf16 %v3379
        %v3387 = vunpack.c.l.bf16 %v3380
        %v3388 = vunpack.c.h.bf16 %v3380
        %v3389 = vrot.slane %v1864, 1
        %v3390 = vsel %vm1894, %v3389, 0
        %3392 = vmatprep.subr.mxu0 %v3382
        %3393 = vmatpush1.msra.mxu0 %v3381
        %3394 = vmatprep.subr.mxu0 %v3384
        %3395 = vmatpush1.msra.mxu0 %v3383
        %3396 = vmatprep.subr.mxu0 %v3386
        %3397 = vmatpush1.msra.mxu0 %v3385
        %3398 = vmatprep.subr.mxu0 %v3388
        %3399 = vmatpush1.msra.mxu0 %v3387
        %3400 = vmatprep.subr.mxu0 0.0
        %3401 = vmatpush1.msra.mxu0 0.0
        %3402 = vmatprep.subr.mxu0 0.0
        %3403 = vmatpush1.msra.mxu0 0.0
        %3404 = vmatprep.subr.mxu0 0.0
        %3405 = vmatpush1.msra.mxu0 0.0
        %3406 = vmatprep.subr.mxu0 0.0
        %3407 = vmatpush1.msra.mxu0 0.0
        %3408 = vmatprep.subr.mxu0 0.0
        %3409 = vmatpush1.msra.mxu0 0.0
        %3410 = vmatprep.subr.mxu0 0.0
        %3411 = vmatpush1.msra.mxu0 0.0
        %3412 = vmatprep.subr.mxu0 0.0
        %3413 = vmatpush1.msra.mxu0 0.0
        %3414 = vmatprep.subr.mxu0 0.0
        %3415 = vmatpush1.msra.mxu0 0.0
        %3416 = vmatprep.subr.mxu0 0.0
        %3417 = vmatpush1.msra.mxu0 0.0
        %3418 = vmatprep.subr.mxu0 0.0
        %3419 = vmatpush1.msra.mxu0 0.0
        %3420 = vmatprep.subr.mxu0 0.0
        %3421 = vmatpush1.msra.mxu0 0.0
        %3422 = vmatprep.subr.mxu0 0.0
        %3423 = vmatpush1.msra.mxu0 0.0
        %3424 = vmatprep.subr.mxu0 0.0
        %3425 = vmatpush1.msra.mxu0 0.0
        %3426 = vmatprep.subr.mxu0 0.0
        %3427 = vmatpush1.msra.mxu0 0.0
        %3428 = vmatprep.subr.mxu0 0.0
        %3429 = vmatpush1.msra.mxu0 0.0
        %3430 = vmatprep.subr.mxu0 0.0
        %3431 = vmatpush1.msra.mxu0 0.0
        %3432 = vmatprep.subr.mxu0 0.0
        %3433 = vmatpush1.msra.mxu0 0.0
        %3434 = vmatprep.subr.mxu0 0.0
        %3435 = vmatpush1.msra.mxu0 0.0
        %3436 = vmatprep.subr.mxu0 0.0
        %3437 = vmatpush1.msra.mxu0 0.0
        %3438 = vmatprep.subr.mxu0 0.0
        %3439 = vmatpush1.msra.mxu0 0.0
        %3440 = vmatprep.subr.mxu0 0.0
        %3441 = vmatpush1.msra.mxu0 0.0
        %3442 = vmatprep.subr.mxu0 0.0
        %3443 = vmatpush1.msra.mxu0 0.0
        %3444 = vmatprep.subr.mxu0 0.0
        %3445 = vmatpush1.msra.mxu0 0.0
        %3446 = vmatprep.subr.mxu0 0.0
        %3447 = vmatpush1.msra.mxu0 0.0
        %3448 = vmatprep.subr.mxu0 0.0
        %3449 = vmatpush1.msra.mxu0 0.0
        %3450 = vmatprep.subr.mxu0 0.0
        %3451 = vmatpush1.msra.mxu0 0.0
        %3452 = vmatprep.subr.mxu0 0.0
        %3453 = vmatpush1.msra.mxu0 0.0
        %3454 = vmatprep.subr.mxu0 0.0
        %3455 = vmatpush1.msra.mxu0 0.0
        %3456 = vmatprep.mubr.f32.mxu0 0.0
        %3457 = vmatmul.mubr.f32.gmra.mrb[0].mxu0 %v3390
        %v3458 = vpop.f32.mrb[0].mxu0
        %v3459 = vadd.f32 0.0, %v3458
        %v3460 = vpop.f32.mrb[0].mxu0
        %v3461 = vadd.f32 0.0, %v3460
        %3462 = vdwg.mxu0
        %v3463 = vadd.f32 %v3374, %v3459
        %v3464 = vadd.f32 %v3375, %v3461
        %s3465 = scalar_lea.vmem [#allocation15], 576
        %v3466 = vld [vmem:[%s3465] sm:$0xff]
        %v3467 = vld [vmem:[%s3465 + $0x8] sm:$0xff]
        %v3468 = vld [vmem:[%s3465 + $0x10] sm:$0xff]
        %v3469 = vld [vmem:[%s3465 + $0x18] sm:$0xff]
        %v3470 = vunpack.c.l.bf16 %v3466
        %v3471 = vunpack.c.h.bf16 %v3466
        %v3472 = vunpack.c.l.bf16 %v3467
        %v3473 = vunpack.c.h.bf16 %v3467
        %v3474 = vunpack.c.l.bf16 %v3468
        %v3475 = vunpack.c.h.bf16 %v3468
        %v3476 = vunpack.c.l.bf16 %v3469
        %v3477 = vunpack.c.h.bf16 %v3469
        %v3478 = vrot.slane %v1864, 2
        %v3479 = vsel %vm1894, %v3478, 0
        %3481 = vmatprep.subr.mxu0 %v3471
        %3482 = vmatpush1.msra.mxu0 %v3470
        %3483 = vmatprep.subr.mxu0 %v3473
        %3484 = vmatpush1.msra.mxu0 %v3472
        %3485 = vmatprep.subr.mxu0 %v3475
        %3486 = vmatpush1.msra.mxu0 %v3474
        %3487 = vmatprep.subr.mxu0 %v3477
        %3488 = vmatpush1.msra.mxu0 %v3476
        %3489 = vmatprep.subr.mxu0 0.0
        %3490 = vmatpush1.msra.mxu0 0.0
        %3491 = vmatprep.subr.mxu0 0.0
        %3492 = vmatpush1.msra.mxu0 0.0
        %3493 = vmatprep.subr.mxu0 0.0
        %3494 = vmatpush1.msra.mxu0 0.0
        %3495 = vmatprep.subr.mxu0 0.0
        %3496 = vmatpush1.msra.mxu0 0.0
        %3497 = vmatprep.subr.mxu0 0.0
        %3498 = vmatpush1.msra.mxu0 0.0
        %3499 = vmatprep.subr.mxu0 0.0
        %3500 = vmatpush1.msra.mxu0 0.0
        %3501 = vmatprep.subr.mxu0 0.0
        %3502 = vmatpush1.msra.mxu0 0.0
        %3503 = vmatprep.subr.mxu0 0.0
        %3504 = vmatpush1.msra.mxu0 0.0
        %3505 = vmatprep.subr.mxu0 0.0
        %3506 = vmatpush1.msra.mxu0 0.0
        %3507 = vmatprep.subr.mxu0 0.0
        %3508 = vmatpush1.msra.mxu0 0.0
        %3509 = vmatprep.subr.mxu0 0.0
        %3510 = vmatpush1.msra.mxu0 0.0
        %3511 = vmatprep.subr.mxu0 0.0
        %3512 = vmatpush1.msra.mxu0 0.0
        %3513 = vmatprep.subr.mxu0 0.0
        %3514 = vmatpush1.msra.mxu0 0.0
        %3515 = vmatprep.subr.mxu0 0.0
        %3516 = vmatpush1.msra.mxu0 0.0
        %3517 = vmatprep.subr.mxu0 0.0
        %3518 = vmatpush1.msra.mxu0 0.0
        %3519 = vmatprep.subr.mxu0 0.0
        %3520 = vmatpush1.msra.mxu0 0.0
        %3521 = vmatprep.subr.mxu0 0.0
        %3522 = vmatpush1.msra.mxu0 0.0
        %3523 = vmatprep.subr.mxu0 0.0
        %3524 = vmatpush1.msra.mxu0 0.0
        %3525 = vmatprep.subr.mxu0 0.0
        %3526 = vmatpush1.msra.mxu0 0.0
        %3527 = vmatprep.subr.mxu0 0.0
        %3528 = vmatpush1.msra.mxu0 0.0
        %3529 = vmatprep.subr.mxu0 0.0
        %3530 = vmatpush1.msra.mxu0 0.0
        %3531 = vmatprep.subr.mxu0 0.0
        %3532 = vmatpush1.msra.mxu0 0.0
        %3533 = vmatprep.subr.mxu0 0.0
        %3534 = vmatpush1.msra.mxu0 0.0
        %3535 = vmatprep.subr.mxu0 0.0
        %3536 = vmatpush1.msra.mxu0 0.0
        %3537 = vmatprep.subr.mxu0 0.0
        %3538 = vmatpush1.msra.mxu0 0.0
        %3539 = vmatprep.subr.mxu0 0.0
        %3540 = vmatpush1.msra.mxu0 0.0
        %3541 = vmatprep.subr.mxu0 0.0
        %3542 = vmatpush1.msra.mxu0 0.0
        %3543 = vmatprep.subr.mxu0 0.0
        %3544 = vmatpush1.msra.mxu0 0.0
        %3545 = vmatprep.mubr.f32.mxu0 0.0
        %3546 = vmatmul.mubr.f32.gmra.mrb[0].mxu0 %v3479
        %v3547 = vpop.f32.mrb[0].mxu0
        %v3548 = vadd.f32 0.0, %v3547
        %v3549 = vpop.f32.mrb[0].mxu0
        %v3550 = vadd.f32 0.0, %v3549
        %3551 = vdwg.mxu0
        %v3552 = vadd.f32 %v3463, %v3548
        %v3553 = vadd.f32 %v3464, %v3550
        %s3554 = scalar_lea.vmem [#allocation15], 608
        %v3555 = vld [vmem:[%s3554] sm:$0xff]
        %v3556 = vld [vmem:[%s3554 + $0x8] sm:$0xff]
        %v3557 = vld [vmem:[%s3554 + $0x10] sm:$0xff]
        %v3558 = vld [vmem:[%s3554 + $0x18] sm:$0xff]
        %v3559 = vunpack.c.l.bf16 %v3555
        %v3560 = vunpack.c.h.bf16 %v3555
        %v3561 = vunpack.c.l.bf16 %v3556
        %v3562 = vunpack.c.h.bf16 %v3556
        %v3563 = vunpack.c.l.bf16 %v3557
        %v3564 = vunpack.c.h.bf16 %v3557
        %v3565 = vunpack.c.l.bf16 %v3558
        %v3566 = vunpack.c.h.bf16 %v3558
        %v3567 = vrot.slane %v1864, 3
        %v3568 = vsel %vm1894, %v3567, 0
        %3570 = vmatprep.subr.mxu0 %v3560
        %3571 = vmatpush1.msra.mxu0 %v3559
        %3572 = vmatprep.subr.mxu0 %v3562
        %3573 = vmatpush1.msra.mxu0 %v3561
        %3574 = vmatprep.subr.mxu0 %v3564
        %3575 = vmatpush1.msra.mxu0 %v3563
        %3576 = vmatprep.subr.mxu0 %v3566
        %3577 = vmatpush1.msra.mxu0 %v3565
        %3578 = vmatprep.subr.mxu0 0.0
        %3579 = vmatpush1.msra.mxu0 0.0
        %3580 = vmatprep.subr.mxu0 0.0
        %3581 = vmatpush1.msra.mxu0 0.0
        %3582 = vmatprep.subr.mxu0 0.0
        %3583 = vmatpush1.msra.mxu0 0.0
        %3584 = vmatprep.subr.mxu0 0.0
        %3585 = vmatpush1.msra.mxu0 0.0
        %3586 = vmatprep.subr.mxu0 0.0
        %3587 = vmatpush1.msra.mxu0 0.0
        %3588 = vmatprep.subr.mxu0 0.0
        %3589 = vmatpush1.msra.mxu0 0.0
        %3590 = vmatprep.subr.mxu0 0.0
        %3591 = vmatpush1.msra.mxu0 0.0
        %3592 = vmatprep.subr.mxu0 0.0
        %3593 = vmatpush1.msra.mxu0 0.0
        %3594 = vmatprep.subr.mxu0 0.0
        %3595 = vmatpush1.msra.mxu0 0.0
        %3596 = vmatprep.subr.mxu0 0.0
        %3597 = vmatpush1.msra.mxu0 0.0
        %3598 = vmatprep.subr.mxu0 0.0
        %3599 = vmatpush1.msra.mxu0 0.0
        %3600 = vmatprep.subr.mxu0 0.0
        %3601 = vmatpush1.msra.mxu0 0.0
        %3602 = vmatprep.subr.mxu0 0.0
        %3603 = vmatpush1.msra.mxu0 0.0
        %3604 = vmatprep.subr.mxu0 0.0
        %3605 = vmatpush1.msra.mxu0 0.0
        %3606 = vmatprep.subr.mxu0 0.0
        %3607 = vmatpush1.msra.mxu0 0.0
        %3608 = vmatprep.subr.mxu0 0.0
        %3609 = vmatpush1.msra.mxu0 0.0
        %3610 = vmatprep.subr.mxu0 0.0
        %3611 = vmatpush1.msra.mxu0 0.0
        %3612 = vmatprep.subr.mxu0 0.0
        %3613 = vmatpush1.msra.mxu0 0.0
        %3614 = vmatprep.subr.mxu0 0.0
        %3615 = vmatpush1.msra.mxu0 0.0
        %3616 = vmatprep.subr.mxu0 0.0
        %3617 = vmatpush1.msra.mxu0 0.0
        %3618 = vmatprep.subr.mxu0 0.0
        %3619 = vmatpush1.msra.mxu0 0.0
        %3620 = vmatprep.subr.mxu0 0.0
        %3621 = vmatpush1.msra.mxu0 0.0
        %3622 = vmatprep.subr.mxu0 0.0
        %3623 = vmatpush1.msra.mxu0 0.0
        %3624 = vmatprep.subr.mxu0 0.0
        %3625 = vmatpush1.msra.mxu0 0.0
        %3626 = vmatprep.subr.mxu0 0.0
        %3627 = vmatpush1.msra.mxu0 0.0
        %3628 = vmatprep.subr.mxu0 0.0
        %3629 = vmatpush1.msra.mxu0 0.0
        %3630 = vmatprep.subr.mxu0 0.0
        %3631 = vmatpush1.msra.mxu0 0.0
        %3632 = vmatprep.subr.mxu0 0.0
        %3633 = vmatpush1.msra.mxu0 0.0
        %3634 = vmatprep.mubr.f32.mxu0 0.0
        %3635 = vmatmul.mubr.f32.gmra.mrb[0].mxu0 %v3568
        %v3636 = vpop.f32.mrb[0].mxu0
        %v3637 = vadd.f32 0.0, %v3636
        %v3638 = vpop.f32.mrb[0].mxu0
        %v3639 = vadd.f32 0.0, %v3638
        %3640 = vdwg.mxu0
        %v3641 = vadd.f32 %v3552, %v3637
        %v3642 = vadd.f32 %v3553, %v3639
        %s3643 = scalar_lea.vmem [#allocation15], 640
        %v3644 = vld [vmem:[%s3643] sm:$0xff]
        %v3645 = vld [vmem:[%s3643 + $0x8] sm:$0xff]
        %v3646 = vld [vmem:[%s3643 + $0x10] sm:$0xff]
        %v3647 = vld [vmem:[%s3643 + $0x18] sm:$0xff]
        %v3648 = vunpack.c.l.bf16 %v3644
        %v3649 = vunpack.c.h.bf16 %v3644
        %v3650 = vunpack.c.l.bf16 %v3645
        %v3651 = vunpack.c.h.bf16 %v3645
        %v3652 = vunpack.c.l.bf16 %v3646
        %v3653 = vunpack.c.h.bf16 %v3646
        %v3654 = vunpack.c.l.bf16 %v3647
        %v3655 = vunpack.c.h.bf16 %v3647
        %v3656 = vrot.slane %v1864, 4
        %v3657 = vsel %vm1894, %v3656, 0
        %3659 = vmatprep.subr.mxu0 %v3649
        %3660 = vmatpush1.msra.mxu0 %v3648
        %3661 = vmatprep.subr.mxu0 %v3651
        %3662 = vmatpush1.msra.mxu0 %v3650
        %3663 = vmatprep.subr.mxu0 %v3653
        %3664 = vmatpush1.msra.mxu0 %v3652
        %3665 = vmatprep.subr.mxu0 %v3655
        %3666 = vmatpush1.msra.mxu0 %v3654
        %3667 = vmatprep.subr.mxu0 0.0
        %3668 = vmatpush1.msra.mxu0 0.0
        %3669 = vmatprep.subr.mxu0 0.0
        %3670 = vmatpush1.msra.mxu0 0.0
        %3671 = vmatprep.subr.mxu0 0.0
        %3672 = vmatpush1.msra.mxu0 0.0
        %3673 = vmatprep.subr.mxu0 0.0
        %3674 = vmatpush1.msra.mxu0 0.0
        %3675 = vmatprep.subr.mxu0 0.0
        %3676 = vmatpush1.msra.mxu0 0.0
        %3677 = vmatprep.subr.mxu0 0.0
        %3678 = vmatpush1.msra.mxu0 0.0
        %3679 = vmatprep.subr.mxu0 0.0
        %3680 = vmatpush1.msra.mxu0 0.0
        %3681 = vmatprep.subr.mxu0 0.0
        %3682 = vmatpush1.msra.mxu0 0.0
        %3683 = vmatprep.subr.mxu0 0.0
        %3684 = vmatpush1.msra.mxu0 0.0
        %3685 = vmatprep.subr.mxu0 0.0
        %3686 = vmatpush1.msra.mxu0 0.0
        %3687 = vmatprep.subr.mxu0 0.0
        %3688 = vmatpush1.msra.mxu0 0.0
        %3689 = vmatprep.subr.mxu0 0.0
        %3690 = vmatpush1.msra.mxu0 0.0
        %3691 = vmatprep.subr.mxu0 0.0
        %3692 = vmatpush1.msra.mxu0 0.0
        %3693 = vmatprep.subr.mxu0 0.0
        %3694 = vmatpush1.msra.mxu0 0.0
        %3695 = vmatprep.subr.mxu0 0.0
        %3696 = vmatpush1.msra.mxu0 0.0
        %3697 = vmatprep.subr.mxu0 0.0
        %3698 = vmatpush1.msra.mxu0 0.0
        %3699 = vmatprep.subr.mxu0 0.0
        %3700 = vmatpush1.msra.mxu0 0.0
        %3701 = vmatprep.subr.mxu0 0.0
        %3702 = vmatpush1.msra.mxu0 0.0
        %3703 = vmatprep.subr.mxu0 0.0
        %3704 = vmatpush1.msra.mxu0 0.0
        %3705 = vmatprep.subr.mxu0 0.0
        %3706 = vmatpush1.msra.mxu0 0.0
        %3707 = vmatprep.subr.mxu0 0.0
        %3708 = vmatpush1.msra.mxu0 0.0
        %3709 = vmatprep.subr.mxu0 0.0
        %3710 = vmatpush1.msra.mxu0 0.0
        %3711 = vmatprep.subr.mxu0 0.0
        %3712 = vmatpush1.msra.mxu0 0.0
        %3713 = vmatprep.subr.mxu0 0.0
        %3714 = vmatpush1.msra.mxu0 0.0
        %3715 = vmatprep.subr.mxu0 0.0
        %3716 = vmatpush1.msra.mxu0 0.0
        %3717 = vmatprep.subr.mxu0 0.0
        %3718 = vmatpush1.msra.mxu0 0.0
        %3719 = vmatprep.subr.mxu0 0.0
        %3720 = vmatpush1.msra.mxu0 0.0
        %3721 = vmatprep.subr.mxu0 0.0
        %3722 = vmatpush1.msra.mxu0 0.0
        %3723 = vmatprep.mubr.f32.mxu0 0.0
        %3724 = vmatmul.mubr.f32.gmra.mrb[0].mxu0 %v3657
        %v3725 = vpop.f32.mrb[0].mxu0
        %v3726 = vadd.f32 0.0, %v3725
        %v3727 = vpop.f32.mrb[0].mxu0
        %v3728 = vadd.f32 0.0, %v3727
        %3729 = vdwg.mxu0
        %v3730 = vadd.f32 %v3641, %v3726
        %v3731 = vadd.f32 %v3642, %v3728
        %s3732 = scalar_lea.vmem [#allocation15], 672
        %v3733 = vld [vmem:[%s3732] sm:$0xff]
        %v3734 = vld [vmem:[%s3732 + $0x8] sm:$0xff]
        %v3735 = vld [vmem:[%s3732 + $0x10] sm:$0xff]
        %v3736 = vld [vmem:[%s3732 + $0x18] sm:$0xff]
        %v3737 = vunpack.c.l.bf16 %v3733
        %v3738 = vunpack.c.h.bf16 %v3733
        %v3739 = vunpack.c.l.bf16 %v3734
        %v3740 = vunpack.c.h.bf16 %v3734
        %v3741 = vunpack.c.l.bf16 %v3735
        %v3742 = vunpack.c.h.bf16 %v3735
        %v3743 = vunpack.c.l.bf16 %v3736
        %v3744 = vunpack.c.h.bf16 %v3736
        %v3745 = vrot.slane %v1864, 5
        %v3746 = vsel %vm1894, %v3745, 0
        %3748 = vmatprep.subr.mxu0 %v3738
        %3749 = vmatpush1.msra.mxu0 %v3737
        %3750 = vmatprep.subr.mxu0 %v3740
        %3751 = vmatpush1.msra.mxu0 %v3739
        %3752 = vmatprep.subr.mxu0 %v3742
        %3753 = vmatpush1.msra.mxu0 %v3741
        %3754 = vmatprep.subr.mxu0 %v3744
        %3755 = vmatpush1.msra.mxu0 %v3743
        %3756 = vmatprep.subr.mxu0 0.0
        %3757 = vmatpush1.msra.mxu0 0.0
        %3758 = vmatprep.subr.mxu0 0.0
        %3759 = vmatpush1.msra.mxu0 0.0
        %3760 = vmatprep.subr.mxu0 0.0
        %3761 = vmatpush1.msra.mxu0 0.0
        %3762 = vmatprep.subr.mxu0 0.0
        %3763 = vmatpush1.msra.mxu0 0.0
        %3764 = vmatprep.subr.mxu0 0.0
        %3765 = vmatpush1.msra.mxu0 0.0
        %3766 = vmatprep.subr.mxu0 0.0
        %3767 = vmatpush1.msra.mxu0 0.0
        %3768 = vmatprep.subr.mxu0 0.0
        %3769 = vmatpush1.msra.mxu0 0.0
        %3770 = vmatprep.subr.mxu0 0.0
        %3771 = vmatpush1.msra.mxu0 0.0
        %3772 = vmatprep.subr.mxu0 0.0
        %3773 = vmatpush1.msra.mxu0 0.0
        %3774 = vmatprep.subr.mxu0 0.0
        %3775 = vmatpush1.msra.mxu0 0.0
        %3776 = vmatprep.subr.mxu0 0.0
        %3777 = vmatpush1.msra.mxu0 0.0
        %3778 = vmatprep.subr.mxu0 0.0
        %3779 = vmatpush1.msra.mxu0 0.0
        %3780 = vmatprep.subr.mxu0 0.0
        %3781 = vmatpush1.msra.mxu0 0.0
        %3782 = vmatprep.subr.mxu0 0.0
        %3783 = vmatpush1.msra.mxu0 0.0
        %3784 = vmatprep.subr.mxu0 0.0
        %3785 = vmatpush1.msra.mxu0 0.0
        %3786 = vmatprep.subr.mxu0 0.0
        %3787 = vmatpush1.msra.mxu0 0.0
        %3788 = vmatprep.subr.mxu0 0.0
        %3789 = vmatpush1.msra.mxu0 0.0
        %3790 = vmatprep.subr.mxu0 0.0
        %3791 = vmatpush1.msra.mxu0 0.0
        %3792 = vmatprep.subr.mxu0 0.0
        %3793 = vmatpush1.msra.mxu0 0.0
        %3794 = vmatprep.subr.mxu0 0.0
        %3795 = vmatpush1.msra.mxu0 0.0
        %3796 = vmatprep.subr.mxu0 0.0
        %3797 = vmatpush1.msra.mxu0 0.0
        %3798 = vmatprep.subr.mxu0 0.0
        %3799 = vmatpush1.msra.mxu0 0.0
        %3800 = vmatprep.subr.mxu0 0.0
        %3801 = vmatpush1.msra.mxu0 0.0
        %3802 = vmatprep.subr.mxu0 0.0
        %3803 = vmatpush1.msra.mxu0 0.0
        %3804 = vmatprep.subr.mxu0 0.0
        %3805 = vmatpush1.msra.mxu0 0.0
        %3806 = vmatprep.subr.mxu0 0.0
        %3807 = vmatpush1.msra.mxu0 0.0
        %3808 = vmatprep.subr.mxu0 0.0
        %3809 = vmatpush1.msra.mxu0 0.0
        %3810 = vmatprep.subr.mxu0 0.0
        %3811 = vmatpush1.msra.mxu0 0.0
        %3812 = vmatprep.mubr.f32.mxu0 0.0
        %3813 = vmatmul.mubr.f32.gmra.mrb[0].mxu0 %v3746
        %v3814 = vpop.f32.mrb[0].mxu0
        %v3815 = vadd.f32 0.0, %v3814
        %v3816 = vpop.f32.mrb[0].mxu0
        %v3817 = vadd.f32 0.0, %v3816
        %3818 = vdwg.mxu0
        %v3819 = vadd.f32 %v3730, %v3815
        %v3820 = vadd.f32 %v3731, %v3817
        %s3821 = scalar_lea.vmem [#allocation15], 704
        %v3822 = vld [vmem:[%s3821] sm:$0xff]
        %v3823 = vld [vmem:[%s3821 + $0x8] sm:$0xff]
        %v3824 = vld [vmem:[%s3821 + $0x10] sm:$0xff]
        %v3825 = vld [vmem:[%s3821 + $0x18] sm:$0xff]
        %v3826 = vunpack.c.l.bf16 %v3822
        %v3827 = vunpack.c.h.bf16 %v3822
        %v3828 = vunpack.c.l.bf16 %v3823
        %v3829 = vunpack.c.h.bf16 %v3823
        %v3830 = vunpack.c.l.bf16 %v3824
        %v3831 = vunpack.c.h.bf16 %v3824
        %v3832 = vunpack.c.l.bf16 %v3825
        %v3833 = vunpack.c.h.bf16 %v3825
        %v3834 = vrot.slane %v1864, 6
        %v3835 = vsel %vm1894, %v3834, 0
        %3837 = vmatprep.subr.mxu0 %v3827
        %3838 = vmatpush1.msra.mxu0 %v3826
        %3839 = vmatprep.subr.mxu0 %v3829
        %3840 = vmatpush1.msra.mxu0 %v3828
        %3841 = vmatprep.subr.mxu0 %v3831
        %3842 = vmatpush1.msra.mxu0 %v3830
        %3843 = vmatprep.subr.mxu0 %v3833
        %3844 = vmatpush1.msra.mxu0 %v3832
        %3845 = vmatprep.subr.mxu0 0.0
        %3846 = vmatpush1.msra.mxu0 0.0
        %3847 = vmatprep.subr.mxu0 0.0
        %3848 = vmatpush1.msra.mxu0 0.0
        %3849 = vmatprep.subr.mxu0 0.0
        %3850 = vmatpush1.msra.mxu0 0.0
        %3851 = vmatprep.subr.mxu0 0.0
        %3852 = vmatpush1.msra.mxu0 0.0
        %3853 = vmatprep.subr.mxu0 0.0
        %3854 = vmatpush1.msra.mxu0 0.0
        %3855 = vmatprep.subr.mxu0 0.0
        %3856 = vmatpush1.msra.mxu0 0.0
        %3857 = vmatprep.subr.mxu0 0.0
        %3858 = vmatpush1.msra.mxu0 0.0
        %3859 = vmatprep.subr.mxu0 0.0
        %3860 = vmatpush1.msra.mxu0 0.0
        %3861 = vmatprep.subr.mxu0 0.0
        %3862 = vmatpush1.msra.mxu0 0.0
        %3863 = vmatprep.subr.mxu0 0.0
        %3864 = vmatpush1.msra.mxu0 0.0
        %3865 = vmatprep.subr.mxu0 0.0
        %3866 = vmatpush1.msra.mxu0 0.0
        %3867 = vmatprep.subr.mxu0 0.0
        %3868 = vmatpush1.msra.mxu0 0.0
        %3869 = vmatprep.subr.mxu0 0.0
        %3870 = vmatpush1.msra.mxu0 0.0
        %3871 = vmatprep.subr.mxu0 0.0
        %3872 = vmatpush1.msra.mxu0 0.0
        %3873 = vmatprep.subr.mxu0 0.0
        %3874 = vmatpush1.msra.mxu0 0.0
        %3875 = vmatprep.subr.mxu0 0.0
        %3876 = vmatpush1.msra.mxu0 0.0
        %3877 = vmatprep.subr.mxu0 0.0
        %3878 = vmatpush1.msra.mxu0 0.0
        %3879 = vmatprep.subr.mxu0 0.0
        %3880 = vmatpush1.msra.mxu0 0.0
        %3881 = vmatprep.subr.mxu0 0.0
        %3882 = vmatpush1.msra.mxu0 0.0
        %3883 = vmatprep.subr.mxu0 0.0
        %3884 = vmatpush1.msra.mxu0 0.0
        %3885 = vmatprep.subr.mxu0 0.0
        %3886 = vmatpush1.msra.mxu0 0.0
        %3887 = vmatprep.subr.mxu0 0.0
        %3888 = vmatpush1.msra.mxu0 0.0
        %3889 = vmatprep.subr.mxu0 0.0
        %3890 = vmatpush1.msra.mxu0 0.0
        %3891 = vmatprep.subr.mxu0 0.0
        %3892 = vmatpush1.msra.mxu0 0.0
        %3893 = vmatprep.subr.mxu0 0.0
        %3894 = vmatpush1.msra.mxu0 0.0
        %3895 = vmatprep.subr.mxu0 0.0
        %3896 = vmatpush1.msra.mxu0 0.0
        %3897 = vmatprep.subr.mxu0 0.0
        %3898 = vmatpush1.msra.mxu0 0.0
        %3899 = vmatprep.subr.mxu0 0.0
        %3900 = vmatpush1.msra.mxu0 0.0
        %3901 = vmatprep.mubr.f32.mxu0 0.0
        %3902 = vmatmul.mubr.f32.gmra.mrb[0].mxu0 %v3835
        %v3903 = vpop.f32.mrb[0].mxu0
        %v3904 = vadd.f32 0.0, %v3903
        %v3905 = vpop.f32.mrb[0].mxu0
        %v3906 = vadd.f32 0.0, %v3905
        %3907 = vdwg.mxu0
        %v3908 = vadd.f32 %v3819, %v3904
        %v3909 = vadd.f32 %v3820, %v3906
        %s3910 = scalar_lea.vmem [#allocation15], 736
        %v3911 = vld [vmem:[%s3910] sm:$0xff]
        %v3912 = vld [vmem:[%s3910 + $0x8] sm:$0xff]
        %v3913 = vld [vmem:[%s3910 + $0x10] sm:$0xff]
        %v3914 = vld [vmem:[%s3910 + $0x18] sm:$0xff]
        %v3915 = vunpack.c.l.bf16 %v3911
        %v3916 = vunpack.c.h.bf16 %v3911
        %v3917 = vunpack.c.l.bf16 %v3912
        %v3918 = vunpack.c.h.bf16 %v3912
        %v3919 = vunpack.c.l.bf16 %v3913
        %v3920 = vunpack.c.h.bf16 %v3913
        %v3921 = vunpack.c.l.bf16 %v3914
        %v3922 = vunpack.c.h.bf16 %v3914
        %v3923 = vrot.slane %v1864, 7
        %v3924 = vsel %vm1894, %v3923, 0
        %3926 = vmatprep.subr.mxu0 %v3916
        %3927 = vmatpush1.msra.mxu0 %v3915
        %3928 = vmatprep.subr.mxu0 %v3918
        %3929 = vmatpush1.msra.mxu0 %v3917
        %3930 = vmatprep.subr.mxu0 %v3920
        %3931 = vmatpush1.msra.mxu0 %v3919
        %3932 = vmatprep.subr.mxu0 %v3922
        %3933 = vmatpush1.msra.mxu0 %v3921
        %3934 = vmatprep.subr.mxu0 0.0
        %3935 = vmatpush1.msra.mxu0 0.0
        %3936 = vmatprep.subr.mxu0 0.0
        %3937 = vmatpush1.msra.mxu0 0.0
        %3938 = vmatprep.subr.mxu0 0.0
        %3939 = vmatpush1.msra.mxu0 0.0
        %3940 = vmatprep.subr.mxu0 0.0
        %3941 = vmatpush1.msra.mxu0 0.0
        %3942 = vmatprep.subr.mxu0 0.0
        %3943 = vmatpush1.msra.mxu0 0.0
        %3944 = vmatprep.subr.mxu0 0.0
        %3945 = vmatpush1.msra.mxu0 0.0
        %3946 = vmatprep.subr.mxu0 0.0
        %3947 = vmatpush1.msra.mxu0 0.0
        %3948 = vmatprep.subr.mxu0 0.0
        %3949 = vmatpush1.msra.mxu0 0.0
        %3950 = vmatprep.subr.mxu0 0.0
        %3951 = vmatpush1.msra.mxu0 0.0
        %3952 = vmatprep.subr.mxu0 0.0
        %3953 = vmatpush1.msra.mxu0 0.0
        %3954 = vmatprep.subr.mxu0 0.0
        %3955 = vmatpush1.msra.mxu0 0.0
        %3956 = vmatprep.subr.mxu0 0.0
        %3957 = vmatpush1.msra.mxu0 0.0
        %3958 = vmatprep.subr.mxu0 0.0
        %3959 = vmatpush1.msra.mxu0 0.0
        %3960 = vmatprep.subr.mxu0 0.0
        %3961 = vmatpush1.msra.mxu0 0.0
        %3962 = vmatprep.subr.mxu0 0.0
        %3963 = vmatpush1.msra.mxu0 0.0
        %3964 = vmatprep.subr.mxu0 0.0
        %3965 = vmatpush1.msra.mxu0 0.0
        %3966 = vmatprep.subr.mxu0 0.0
        %3967 = vmatpush1.msra.mxu0 0.0
        %3968 = vmatprep.subr.mxu0 0.0
        %3969 = vmatpush1.msra.mxu0 0.0
        %3970 = vmatprep.subr.mxu0 0.0
        %3971 = vmatpush1.msra.mxu0 0.0
        %3972 = vmatprep.subr.mxu0 0.0
        %3973 = vmatpush1.msra.mxu0 0.0
        %3974 = vmatprep.subr.mxu0 0.0
        %3975 = vmatpush1.msra.mxu0 0.0
        %3976 = vmatprep.subr.mxu0 0.0
        %3977 = vmatpush1.msra.mxu0 0.0
        %3978 = vmatprep.subr.mxu0 0.0
        %3979 = vmatpush1.msra.mxu0 0.0
        %3980 = vmatprep.subr.mxu0 0.0
        %3981 = vmatpush1.msra.mxu0 0.0
        %3982 = vmatprep.subr.mxu0 0.0
        %3983 = vmatpush1.msra.mxu0 0.0
        %3984 = vmatprep.subr.mxu0 0.0
        %3985 = vmatpush1.msra.mxu0 0.0
        %3986 = vmatprep.subr.mxu0 0.0
        %3987 = vmatpush1.msra.mxu0 0.0
        %3988 = vmatprep.subr.mxu0 0.0
        %3989 = vmatpush1.msra.mxu0 0.0
        %3990 = vmatprep.mubr.f32.mxu0 0.0
        %3991 = vmatmul.mubr.f32.gmra.mrb[0].mxu0 %v3924
        %v3992 = vpop.f32.mrb[0].mxu0
        %v3993 = vadd.f32 0.0, %v3992
        %v3994 = vpop.f32.mrb[0].mxu0
        %v3995 = vadd.f32 0.0, %v3994
        %3996 = vdwg.mxu0
        %v3997 = vadd.f32 %v3908, %v3993
        %v3998 = vadd.f32 %v3909, %v3995
        %s3999 = scalar_lea.vmem [#allocation15], 768
        %v4000 = vld [vmem:[%s3999] sm:$0xff]
        %v4001 = vld [vmem:[%s3999 + $0x8] sm:$0xff]
        %v4002 = vld [vmem:[%s3999 + $0x10] sm:$0xff]
        %v4003 = vld [vmem:[%s3999 + $0x18] sm:$0xff]
        %v4004 = vunpack.c.l.bf16 %v4000
        %v4005 = vunpack.c.h.bf16 %v4000
        %v4006 = vunpack.c.l.bf16 %v4001
        %v4007 = vunpack.c.h.bf16 %v4001
        %v4008 = vunpack.c.l.bf16 %v4002
        %v4009 = vunpack.c.h.bf16 %v4002
        %v4010 = vunpack.c.l.bf16 %v4003
        %v4011 = vunpack.c.h.bf16 %v4003
        %v4013 = vsel %vm1894, %v1865, 0
        %4015 = vmatprep.subr.mxu0 %v4005
        %4016 = vmatpush1.msra.mxu0 %v4004
        %4017 = vmatprep.subr.mxu0 %v4007
        %4018 = vmatpush1.msra.mxu0 %v4006
        %4019 = vmatprep.subr.mxu0 %v4009
        %4020 = vmatpush1.msra.mxu0 %v4008
        %4021 = vmatprep.subr.mxu0 %v4011
        %4022 = vmatpush1.msra.mxu0 %v4010
        %4023 = vmatprep.subr.mxu0 0.0
        %4024 = vmatpush1.msra.mxu0 0.0
        %4025 = vmatprep.subr.mxu0 0.0
        %4026 = vmatpush1.msra.mxu0 0.0
        %4027 = vmatprep.subr.mxu0 0.0
        %4028 = vmatpush1.msra.mxu0 0.0
        %4029 = vmatprep.subr.mxu0 0.0
        %4030 = vmatpush1.msra.mxu0 0.0
        %4031 = vmatprep.subr.mxu0 0.0
        %4032 = vmatpush1.msra.mxu0 0.0
        %4033 = vmatprep.subr.mxu0 0.0
        %4034 = vmatpush1.msra.mxu0 0.0
        %4035 = vmatprep.subr.mxu0 0.0
        %4036 = vmatpush1.msra.mxu0 0.0
        %4037 = vmatprep.subr.mxu0 0.0
        %4038 = vmatpush1.msra.mxu0 0.0
        %4039 = vmatprep.subr.mxu0 0.0
        %4040 = vmatpush1.msra.mxu0 0.0
        %4041 = vmatprep.subr.mxu0 0.0
        %4042 = vmatpush1.msra.mxu0 0.0
        %4043 = vmatprep.subr.mxu0 0.0
        %4044 = vmatpush1.msra.mxu0 0.0
        %4045 = vmatprep.subr.mxu0 0.0
        %4046 = vmatpush1.msra.mxu0 0.0
        %4047 = vmatprep.subr.mxu0 0.0
        %4048 = vmatpush1.msra.mxu0 0.0
        %4049 = vmatprep.subr.mxu0 0.0
        %4050 = vmatpush1.msra.mxu0 0.0
        %4051 = vmatprep.subr.mxu0 0.0
        %4052 = vmatpush1.msra.mxu0 0.0
        %4053 = vmatprep.subr.mxu0 0.0
        %4054 = vmatpush1.msra.mxu0 0.0
        %4055 = vmatprep.subr.mxu0 0.0
        %4056 = vmatpush1.msra.mxu0 0.0
        %4057 = vmatprep.subr.mxu0 0.0
        %4058 = vmatpush1.msra.mxu0 0.0
        %4059 = vmatprep.subr.mxu0 0.0
        %4060 = vmatpush1.msra.mxu0 0.0
        %4061 = vmatprep.subr.mxu0 0.0
        %4062 = vmatpush1.msra.mxu0 0.0
        %4063 = vmatprep.subr.mxu0 0.0
        %4064 = vmatpush1.msra.mxu0 0.0
        %4065 = vmatprep.subr.mxu0 0.0
        %4066 = vmatpush1.msra.mxu0 0.0
        %4067 = vmatprep.subr.mxu0 0.0
        %4068 = vmatpush1.msra.mxu0 0.0
        %4069 = vmatprep.subr.mxu0 0.0
        %4070 = vmatpush1.msra.mxu0 0.0
        %4071 = vmatprep.subr.mxu0 0.0
        %4072 = vmatpush1.msra.mxu0 0.0
        %4073 = vmatprep.subr.mxu0 0.0
        %4074 = vmatpush1.msra.mxu0 0.0
        %4075 = vmatprep.subr.mxu0 0.0
        %4076 = vmatpush1.msra.mxu0 0.0
        %4077 = vmatprep.subr.mxu0 0.0
        %4078 = vmatpush1.msra.mxu0 0.0
        %4079 = vmatprep.mubr.f32.mxu0 0.0
        %4080 = vmatmul.mubr.f32.gmra.mrb[0].mxu0 %v4013
        %v4081 = vpop.f32.mrb[0].mxu0
        %v4082 = vadd.f32 0.0, %v4081
        %v4083 = vpop.f32.mrb[0].mxu0
        %v4084 = vadd.f32 0.0, %v4083
        %4085 = vdwg.mxu0
        %v4086 = vadd.f32 %v3997, %v4082
        %v4087 = vadd.f32 %v3998, %v4084
        %s4088 = scalar_lea.vmem [#allocation15], 800
        %v4089 = vld [vmem:[%s4088] sm:$0xff]
        %v4090 = vld [vmem:[%s4088 + $0x8] sm:$0xff]
        %v4091 = vld [vmem:[%s4088 + $0x10] sm:$0xff]
        %v4092 = vld [vmem:[%s4088 + $0x18] sm:$0xff]
        %v4093 = vunpack.c.l.bf16 %v4089
        %v4094 = vunpack.c.h.bf16 %v4089
        %v4095 = vunpack.c.l.bf16 %v4090
        %v4096 = vunpack.c.h.bf16 %v4090
        %v4097 = vunpack.c.l.bf16 %v4091
        %v4098 = vunpack.c.h.bf16 %v4091
        %v4099 = vunpack.c.l.bf16 %v4092
        %v4100 = vunpack.c.h.bf16 %v4092
        %v4101 = vrot.slane %v1865, 1
        %v4102 = vsel %vm1894, %v4101, 0
        %4104 = vmatprep.subr.mxu0 %v4094
        %4105 = vmatpush1.msra.mxu0 %v4093
        %4106 = vmatprep.subr.mxu0 %v4096
        %4107 = vmatpush1.msra.mxu0 %v4095
        %4108 = vmatprep.subr.mxu0 %v4098
        %4109 = vmatpush1.msra.mxu0 %v4097
        %4110 = vmatprep.subr.mxu0 %v4100
        %4111 = vmatpush1.msra.mxu0 %v4099
        %4112 = vmatprep.subr.mxu0 0.0
        %4113 = vmatpush1.msra.mxu0 0.0
        %4114 = vmatprep.subr.mxu0 0.0
        %4115 = vmatpush1.msra.mxu0 0.0
        %4116 = vmatprep.subr.mxu0 0.0
        %4117 = vmatpush1.msra.mxu0 0.0
        %4118 = vmatprep.subr.mxu0 0.0
        %4119 = vmatpush1.msra.mxu0 0.0
        %4120 = vmatprep.subr.mxu0 0.0
        %4121 = vmatpush1.msra.mxu0 0.0
        %4122 = vmatprep.subr.mxu0 0.0
        %4123 = vmatpush1.msra.mxu0 0.0
        %4124 = vmatprep.subr.mxu0 0.0
        %4125 = vmatpush1.msra.mxu0 0.0
        %4126 = vmatprep.subr.mxu0 0.0
        %4127 = vmatpush1.msra.mxu0 0.0
        %4128 = vmatprep.subr.mxu0 0.0
        %4129 = vmatpush1.msra.mxu0 0.0
        %4130 = vmatprep.subr.mxu0 0.0
        %4131 = vmatpush1.msra.mxu0 0.0
        %4132 = vmatprep.subr.mxu0 0.0
        %4133 = vmatpush1.msra.mxu0 0.0
        %4134 = vmatprep.subr.mxu0 0.0
        %4135 = vmatpush1.msra.mxu0 0.0
        %4136 = vmatprep.subr.mxu0 0.0
        %4137 = vmatpush1.msra.mxu0 0.0
        %4138 = vmatprep.subr.mxu0 0.0
        %4139 = vmatpush1.msra.mxu0 0.0
        %4140 = vmatprep.subr.mxu0 0.0
        %4141 = vmatpush1.msra.mxu0 0.0
        %4142 = vmatprep.subr.mxu0 0.0
        %4143 = vmatpush1.msra.mxu0 0.0
        %4144 = vmatprep.subr.mxu0 0.0
        %4145 = vmatpush1.msra.mxu0 0.0
        %4146 = vmatprep.subr.mxu0 0.0
        %4147 = vmatpush1.msra.mxu0 0.0
        %4148 = vmatprep.subr.mxu0 0.0
        %4149 = vmatpush1.msra.mxu0 0.0
        %4150 = vmatprep.subr.mxu0 0.0
        %4151 = vmatpush1.msra.mxu0 0.0
        %4152 = vmatprep.subr.mxu0 0.0
        %4153 = vmatpush1.msra.mxu0 0.0
        %4154 = vmatprep.subr.mxu0 0.0
        %4155 = vmatpush1.msra.mxu0 0.0
        %4156 = vmatprep.subr.mxu0 0.0
        %4157 = vmatpush1.msra.mxu0 0.0
        %4158 = vmatprep.subr.mxu0 0.0
        %4159 = vmatpush1.msra.mxu0 0.0
        %4160 = vmatprep.subr.mxu0 0.0
        %4161 = vmatpush1.msra.mxu0 0.0
        %4162 = vmatprep.subr.mxu0 0.0
        %4163 = vmatpush1.msra.mxu0 0.0
        %4164 = vmatprep.subr.mxu0 0.0
        %4165 = vmatpush1.msra.mxu0 0.0
        %4166 = vmatprep.subr.mxu0 0.0
        %4167 = vmatpush1.msra.mxu0 0.0
        %4168 = vmatprep.mubr.f32.mxu0 0.0
        %4169 = vmatmul.mubr.f32.gmra.mrb[0].mxu0 %v4102
        %v4170 = vpop.f32.mrb[0].mxu0
        %v4171 = vadd.f32 0.0, %v4170
        %v4172 = vpop.f32.mrb[0].mxu0
        %v4173 = vadd.f32 0.0, %v4172
        %4174 = vdwg.mxu0
        %v4175 = vadd.f32 %v4086, %v4171
        %v4176 = vadd.f32 %v4087, %v4173
        %s4177 = scalar_lea.vmem [#allocation15], 832
        %v4178 = vld [vmem:[%s4177] sm:$0xff]
        %v4179 = vld [vmem:[%s4177 + $0x8] sm:$0xff]
        %v4180 = vld [vmem:[%s4177 + $0x10] sm:$0xff]
        %v4181 = vld [vmem:[%s4177 + $0x18] sm:$0xff]
        %v4182 = vunpack.c.l.bf16 %v4178
        %v4183 = vunpack.c.h.bf16 %v4178
        %v4184 = vunpack.c.l.bf16 %v4179
        %v4185 = vunpack.c.h.bf16 %v4179
        %v4186 = vunpack.c.l.bf16 %v4180
        %v4187 = vunpack.c.h.bf16 %v4180
        %v4188 = vunpack.c.l.bf16 %v4181
        %v4189 = vunpack.c.h.bf16 %v4181
        %v4190 = vrot.slane %v1865, 2
        %v4191 = vsel %vm1894, %v4190, 0
        %4193 = vmatprep.subr.mxu0 %v4183
        %4194 = vmatpush1.msra.mxu0 %v4182
        %4195 = vmatprep.subr.mxu0 %v4185
        %4196 = vmatpush1.msra.mxu0 %v4184
        %4197 = vmatprep.subr.mxu0 %v4187
        %4198 = vmatpush1.msra.mxu0 %v4186
        %4199 = vmatprep.subr.mxu0 %v4189
        %4200 = vmatpush1.msra.mxu0 %v4188
        %4201 = vmatprep.subr.mxu0 0.0
        %4202 = vmatpush1.msra.mxu0 0.0
        %4203 = vmatprep.subr.mxu0 0.0
        %4204 = vmatpush1.msra.mxu0 0.0
        %4205 = vmatprep.subr.mxu0 0.0
        %4206 = vmatpush1.msra.mxu0 0.0
        %4207 = vmatprep.subr.mxu0 0.0
        %4208 = vmatpush1.msra.mxu0 0.0
        %4209 = vmatprep.subr.mxu0 0.0
        %4210 = vmatpush1.msra.mxu0 0.0
        %4211 = vmatprep.subr.mxu0 0.0
        %4212 = vmatpush1.msra.mxu0 0.0
        %4213 = vmatprep.subr.mxu0 0.0
        %4214 = vmatpush1.msra.mxu0 0.0
        %4215 = vmatprep.subr.mxu0 0.0
        %4216 = vmatpush1.msra.mxu0 0.0
        %4217 = vmatprep.subr.mxu0 0.0
        %4218 = vmatpush1.msra.mxu0 0.0
        %4219 = vmatprep.subr.mxu0 0.0
        %4220 = vmatpush1.msra.mxu0 0.0
        %4221 = vmatprep.subr.mxu0 0.0
        %4222 = vmatpush1.msra.mxu0 0.0
        %4223 = vmatprep.subr.mxu0 0.0
        %4224 = vmatpush1.msra.mxu0 0.0
        %4225 = vmatprep.subr.mxu0 0.0
        %4226 = vmatpush1.msra.mxu0 0.0
        %4227 = vmatprep.subr.mxu0 0.0
        %4228 = vmatpush1.msra.mxu0 0.0
        %4229 = vmatprep.subr.mxu0 0.0
        %4230 = vmatpush1.msra.mxu0 0.0
        %4231 = vmatprep.subr.mxu0 0.0
        %4232 = vmatpush1.msra.mxu0 0.0
        %4233 = vmatprep.subr.mxu0 0.0
        %4234 = vmatpush1.msra.mxu0 0.0
        %4235 = vmatprep.subr.mxu0 0.0
        %4236 = vmatpush1.msra.mxu0 0.0
        %4237 = vmatprep.subr.mxu0 0.0
        %4238 = vmatpush1.msra.mxu0 0.0
        %4239 = vmatprep.subr.mxu0 0.0
        %4240 = vmatpush1.msra.mxu0 0.0
        %4241 = vmatprep.subr.mxu0 0.0
        %4242 = vmatpush1.msra.mxu0 0.0
        %4243 = vmatprep.subr.mxu0 0.0
        %4244 = vmatpush1.msra.mxu0 0.0
        %4245 = vmatprep.subr.mxu0 0.0
        %4246 = vmatpush1.msra.mxu0 0.0
        %4247 = vmatprep.subr.mxu0 0.0
        %4248 = vmatpush1.msra.mxu0 0.0
        %4249 = vmatprep.subr.mxu0 0.0
        %4250 = vmatpush1.msra.mxu0 0.0
        %4251 = vmatprep.subr.mxu0 0.0
        %4252 = vmatpush1.msra.mxu0 0.0
        %4253 = vmatprep.subr.mxu0 0.0
        %4254 = vmatpush1.msra.mxu0 0.0
        %4255 = vmatprep.subr.mxu0 0.0
        %4256 = vmatpush1.msra.mxu0 0.0
        %4257 = vmatprep.mubr.f32.mxu0 0.0
        %4258 = vmatmul.mubr.f32.gmra.mrb[0].mxu0 %v4191
        %v4259 = vpop.f32.mrb[0].mxu0
        %v4260 = vadd.f32 0.0, %v4259
        %v4261 = vpop.f32.mrb[0].mxu0
        %v4262 = vadd.f32 0.0, %v4261
        %4263 = vdwg.mxu0
        %v4264 = vadd.f32 %v4175, %v4260
        %v4265 = vadd.f32 %v4176, %v4262
        %s4266 = scalar_lea.vmem [#allocation15], 864
        %v4267 = vld [vmem:[%s4266] sm:$0xff]
        %v4268 = vld [vmem:[%s4266 + $0x8] sm:$0xff]
        %v4269 = vld [vmem:[%s4266 + $0x10] sm:$0xff]
        %v4270 = vld [vmem:[%s4266 + $0x18] sm:$0xff]
        %v4271 = vunpack.c.l.bf16 %v4267
        %v4272 = vunpack.c.h.bf16 %v4267
        %v4273 = vunpack.c.l.bf16 %v4268
        %v4274 = vunpack.c.h.bf16 %v4268
        %v4275 = vunpack.c.l.bf16 %v4269
        %v4276 = vunpack.c.h.bf16 %v4269
        %v4277 = vunpack.c.l.bf16 %v4270
        %v4278 = vunpack.c.h.bf16 %v4270
        %v4279 = vrot.slane %v1865, 3
        %v4280 = vsel %vm1894, %v4279, 0
        %4282 = vmatprep.subr.mxu0 %v4272
        %4283 = vmatpush1.msra.mxu0 %v4271
        %4284 = vmatprep.subr.mxu0 %v4274
        %4285 = vmatpush1.msra.mxu0 %v4273
        %4286 = vmatprep.subr.mxu0 %v4276
        %4287 = vmatpush1.msra.mxu0 %v4275
        %4288 = vmatprep.subr.mxu0 %v4278
        %4289 = vmatpush1.msra.mxu0 %v4277
        %4290 = vmatprep.subr.mxu0 0.0
        %4291 = vmatpush1.msra.mxu0 0.0
        %4292 = vmatprep.subr.mxu0 0.0
        %4293 = vmatpush1.msra.mxu0 0.0
        %4294 = vmatprep.subr.mxu0 0.0
        %4295 = vmatpush1.msra.mxu0 0.0
        %4296 = vmatprep.subr.mxu0 0.0
        %4297 = vmatpush1.msra.mxu0 0.0
        %4298 = vmatprep.subr.mxu0 0.0
        %4299 = vmatpush1.msra.mxu0 0.0
        %4300 = vmatprep.subr.mxu0 0.0
        %4301 = vmatpush1.msra.mxu0 0.0
        %4302 = vmatprep.subr.mxu0 0.0
        %4303 = vmatpush1.msra.mxu0 0.0
        %4304 = vmatprep.subr.mxu0 0.0
        %4305 = vmatpush1.msra.mxu0 0.0
        %4306 = vmatprep.subr.mxu0 0.0
        %4307 = vmatpush1.msra.mxu0 0.0
        %4308 = vmatprep.subr.mxu0 0.0
        %4309 = vmatpush1.msra.mxu0 0.0
        %4310 = vmatprep.subr.mxu0 0.0
        %4311 = vmatpush1.msra.mxu0 0.0
        %4312 = vmatprep.subr.mxu0 0.0
        %4313 = vmatpush1.msra.mxu0 0.0
        %4314 = vmatprep.subr.mxu0 0.0
        %4315 = vmatpush1.msra.mxu0 0.0
        %4316 = vmatprep.subr.mxu0 0.0
        %4317 = vmatpush1.msra.mxu0 0.0
        %4318 = vmatprep.subr.mxu0 0.0
        %4319 = vmatpush1.msra.mxu0 0.0
        %4320 = vmatprep.subr.mxu0 0.0
        %4321 = vmatpush1.msra.mxu0 0.0
        %4322 = vmatprep.subr.mxu0 0.0
        %4323 = vmatpush1.msra.mxu0 0.0
        %4324 = vmatprep.subr.mxu0 0.0
        %4325 = vmatpush1.msra.mxu0 0.0
        %4326 = vmatprep.subr.mxu0 0.0
        %4327 = vmatpush1.msra.mxu0 0.0
        %4328 = vmatprep.subr.mxu0 0.0
        %4329 = vmatpush1.msra.mxu0 0.0
        %4330 = vmatprep.subr.mxu0 0.0
        %4331 = vmatpush1.msra.mxu0 0.0
        %4332 = vmatprep.subr.mxu0 0.0
        %4333 = vmatpush1.msra.mxu0 0.0
        %4334 = vmatprep.subr.mxu0 0.0
        %4335 = vmatpush1.msra.mxu0 0.0
        %4336 = vmatprep.subr.mxu0 0.0
        %4337 = vmatpush1.msra.mxu0 0.0
        %4338 = vmatprep.subr.mxu0 0.0
        %4339 = vmatpush1.msra.mxu0 0.0
        %4340 = vmatprep.subr.mxu0 0.0
        %4341 = vmatpush1.msra.mxu0 0.0
        %4342 = vmatprep.subr.mxu0 0.0
        %4343 = vmatpush1.msra.mxu0 0.0
        %4344 = vmatprep.subr.mxu0 0.0
        %4345 = vmatpush1.msra.mxu0 0.0
        %4346 = vmatprep.mubr.f32.mxu0 0.0
        %4347 = vmatmul.mubr.f32.gmra.mrb[0].mxu0 %v4280
        %v4348 = vpop.f32.mrb[0].mxu0
        %v4349 = vadd.f32 0.0, %v4348
        %v4350 = vpop.f32.mrb[0].mxu0
        %v4351 = vadd.f32 0.0, %v4350
        %4352 = vdwg.mxu0
        %v4353 = vadd.f32 %v4264, %v4349
        %v4354 = vadd.f32 %v4265, %v4351
        %s4355 = scalar_lea.vmem [#allocation15], 896
        %v4356 = vld [vmem:[%s4355] sm:$0xff]
        %v4357 = vld [vmem:[%s4355 + $0x8] sm:$0xff]
        %v4358 = vld [vmem:[%s4355 + $0x10] sm:$0xff]
        %v4359 = vld [vmem:[%s4355 + $0x18] sm:$0xff]
        %v4360 = vunpack.c.l.bf16 %v4356
        %v4361 = vunpack.c.h.bf16 %v4356
        %v4362 = vunpack.c.l.bf16 %v4357
        %v4363 = vunpack.c.h.bf16 %v4357
        %v4364 = vunpack.c.l.bf16 %v4358
        %v4365 = vunpack.c.h.bf16 %v4358
        %v4366 = vunpack.c.l.bf16 %v4359
        %v4367 = vunpack.c.h.bf16 %v4359
        %v4368 = vrot.slane %v1865, 4
        %v4369 = vsel %vm1894, %v4368, 0
        %4371 = vmatprep.subr.mxu0 %v4361
        %4372 = vmatpush1.msra.mxu0 %v4360
        %4373 = vmatprep.subr.mxu0 %v4363
        %4374 = vmatpush1.msra.mxu0 %v4362
        %4375 = vmatprep.subr.mxu0 %v4365
        %4376 = vmatpush1.msra.mxu0 %v4364
        %4377 = vmatprep.subr.mxu0 %v4367
        %4378 = vmatpush1.msra.mxu0 %v4366
        %4379 = vmatprep.subr.mxu0 0.0
        %4380 = vmatpush1.msra.mxu0 0.0
        %4381 = vmatprep.subr.mxu0 0.0
        %4382 = vmatpush1.msra.mxu0 0.0
        %4383 = vmatprep.subr.mxu0 0.0
        %4384 = vmatpush1.msra.mxu0 0.0
        %4385 = vmatprep.subr.mxu0 0.0
        %4386 = vmatpush1.msra.mxu0 0.0
        %4387 = vmatprep.subr.mxu0 0.0
        %4388 = vmatpush1.msra.mxu0 0.0
        %4389 = vmatprep.subr.mxu0 0.0
        %4390 = vmatpush1.msra.mxu0 0.0
        %4391 = vmatprep.subr.mxu0 0.0
        %4392 = vmatpush1.msra.mxu0 0.0
        %4393 = vmatprep.subr.mxu0 0.0
        %4394 = vmatpush1.msra.mxu0 0.0
        %4395 = vmatprep.subr.mxu0 0.0
        %4396 = vmatpush1.msra.mxu0 0.0
        %4397 = vmatprep.subr.mxu0 0.0
        %4398 = vmatpush1.msra.mxu0 0.0
        %4399 = vmatprep.subr.mxu0 0.0
        %4400 = vmatpush1.msra.mxu0 0.0
        %4401 = vmatprep.subr.mxu0 0.0
        %4402 = vmatpush1.msra.mxu0 0.0
        %4403 = vmatprep.subr.mxu0 0.0
        %4404 = vmatpush1.msra.mxu0 0.0
        %4405 = vmatprep.subr.mxu0 0.0
        %4406 = vmatpush1.msra.mxu0 0.0
        %4407 = vmatprep.subr.mxu0 0.0
        %4408 = vmatpush1.msra.mxu0 0.0
        %4409 = vmatprep.subr.mxu0 0.0
        %4410 = vmatpush1.msra.mxu0 0.0
        %4411 = vmatprep.subr.mxu0 0.0
        %4412 = vmatpush1.msra.mxu0 0.0
        %4413 = vmatprep.subr.mxu0 0.0
        %4414 = vmatpush1.msra.mxu0 0.0
        %4415 = vmatprep.subr.mxu0 0.0
        %4416 = vmatpush1.msra.mxu0 0.0
        %4417 = vmatprep.subr.mxu0 0.0
        %4418 = vmatpush1.msra.mxu0 0.0
        %4419 = vmatprep.subr.mxu0 0.0
        %4420 = vmatpush1.msra.mxu0 0.0
        %4421 = vmatprep.subr.mxu0 0.0
        %4422 = vmatpush1.msra.mxu0 0.0
        %4423 = vmatprep.subr.mxu0 0.0
        %4424 = vmatpush1.msra.mxu0 0.0
        %4425 = vmatprep.subr.mxu0 0.0
        %4426 = vmatpush1.msra.mxu0 0.0
        %4427 = vmatprep.subr.mxu0 0.0
        %4428 = vmatpush1.msra.mxu0 0.0
        %4429 = vmatprep.subr.mxu0 0.0
        %4430 = vmatpush1.msra.mxu0 0.0
        %4431 = vmatprep.subr.mxu0 0.0
        %4432 = vmatpush1.msra.mxu0 0.0
        %4433 = vmatprep.subr.mxu0 0.0
        %4434 = vmatpush1.msra.mxu0 0.0
        %4435 = vmatprep.mubr.f32.mxu0 0.0
        %4436 = vmatmul.mubr.f32.gmra.mrb[0].mxu0 %v4369
        %v4437 = vpop.f32.mrb[0].mxu0
        %v4438 = vadd.f32 0.0, %v4437
        %v4439 = vpop.f32.mrb[0].mxu0
        %v4440 = vadd.f32 0.0, %v4439
        %4441 = vdwg.mxu0
        %v4442 = vadd.f32 %v4353, %v4438
        %v4443 = vadd.f32 %v4354, %v4440
        %s4444 = scalar_lea.vmem [#allocation15], 928
        %v4445 = vld [vmem:[%s4444] sm:$0xff]
        %v4446 = vld [vmem:[%s4444 + $0x8] sm:$0xff]
        %v4447 = vld [vmem:[%s4444 + $0x10] sm:$0xff]
        %v4448 = vld [vmem:[%s4444 + $0x18] sm:$0xff]
        %v4449 = vunpack.c.l.bf16 %v4445
        %v4450 = vunpack.c.h.bf16 %v4445
        %v4451 = vunpack.c.l.bf16 %v4446
        %v4452 = vunpack.c.h.bf16 %v4446
        %v4453 = vunpack.c.l.bf16 %v4447
        %v4454 = vunpack.c.h.bf16 %v4447
        %v4455 = vunpack.c.l.bf16 %v4448
        %v4456 = vunpack.c.h.bf16 %v4448
        %v4457 = vrot.slane %v1865, 5
        %v4458 = vsel %vm1894, %v4457, 0
        %4460 = vmatprep.subr.mxu0 %v4450
        %4461 = vmatpush1.msra.mxu0 %v4449
        %4462 = vmatprep.subr.mxu0 %v4452
        %4463 = vmatpush1.msra.mxu0 %v4451
        %4464 = vmatprep.subr.mxu0 %v4454
        %4465 = vmatpush1.msra.mxu0 %v4453
        %4466 = vmatprep.subr.mxu0 %v4456
        %4467 = vmatpush1.msra.mxu0 %v4455
        %4468 = vmatprep.subr.mxu0 0.0
        %4469 = vmatpush1.msra.mxu0 0.0
        %4470 = vmatprep.subr.mxu0 0.0
        %4471 = vmatpush1.msra.mxu0 0.0
        %4472 = vmatprep.subr.mxu0 0.0
        %4473 = vmatpush1.msra.mxu0 0.0
        %4474 = vmatprep.subr.mxu0 0.0
        %4475 = vmatpush1.msra.mxu0 0.0
        %4476 = vmatprep.subr.mxu0 0.0
        %4477 = vmatpush1.msra.mxu0 0.0
        %4478 = vmatprep.subr.mxu0 0.0
        %4479 = vmatpush1.msra.mxu0 0.0
        %4480 = vmatprep.subr.mxu0 0.0
        %4481 = vmatpush1.msra.mxu0 0.0
        %4482 = vmatprep.subr.mxu0 0.0
        %4483 = vmatpush1.msra.mxu0 0.0
        %4484 = vmatprep.subr.mxu0 0.0
        %4485 = vmatpush1.msra.mxu0 0.0
        %4486 = vmatprep.subr.mxu0 0.0
        %4487 = vmatpush1.msra.mxu0 0.0
        %4488 = vmatprep.subr.mxu0 0.0
        %4489 = vmatpush1.msra.mxu0 0.0
        %4490 = vmatprep.subr.mxu0 0.0
        %4491 = vmatpush1.msra.mxu0 0.0
        %4492 = vmatprep.subr.mxu0 0.0
        %4493 = vmatpush1.msra.mxu0 0.0
        %4494 = vmatprep.subr.mxu0 0.0
        %4495 = vmatpush1.msra.mxu0 0.0
        %4496 = vmatprep.subr.mxu0 0.0
        %4497 = vmatpush1.msra.mxu0 0.0
        %4498 = vmatprep.subr.mxu0 0.0
        %4499 = vmatpush1.msra.mxu0 0.0
        %4500 = vmatprep.subr.mxu0 0.0
        %4501 = vmatpush1.msra.mxu0 0.0
        %4502 = vmatprep.subr.mxu0 0.0
        %4503 = vmatpush1.msra.mxu0 0.0
        %4504 = vmatprep.subr.mxu0 0.0
        %4505 = vmatpush1.msra.mxu0 0.0
        %4506 = vmatprep.subr.mxu0 0.0
        %4507 = vmatpush1.msra.mxu0 0.0
        %4508 = vmatprep.subr.mxu0 0.0
        %4509 = vmatpush1.msra.mxu0 0.0
        %4510 = vmatprep.subr.mxu0 0.0
        %4511 = vmatpush1.msra.mxu0 0.0
        %4512 = vmatprep.subr.mxu0 0.0
        %4513 = vmatpush1.msra.mxu0 0.0
        %4514 = vmatprep.subr.mxu0 0.0
        %4515 = vmatpush1.msra.mxu0 0.0
        %4516 = vmatprep.subr.mxu0 0.0
        %4517 = vmatpush1.msra.mxu0 0.0
        %4518 = vmatprep.subr.mxu0 0.0
        %4519 = vmatpush1.msra.mxu0 0.0
        %4520 = vmatprep.subr.mxu0 0.0
        %4521 = vmatpush1.msra.mxu0 0.0
        %4522 = vmatprep.subr.mxu0 0.0
        %4523 = vmatpush1.msra.mxu0 0.0
        %4524 = vmatprep.mubr.f32.mxu0 0.0
        %4525 = vmatmul.mubr.f32.gmra.mrb[0].mxu0 %v4458
        %v4526 = vpop.f32.mrb[0].mxu0
        %v4527 = vadd.f32 0.0, %v4526
        %v4528 = vpop.f32.mrb[0].mxu0
        %v4529 = vadd.f32 0.0, %v4528
        %4530 = vdwg.mxu0
        %v4531 = vadd.f32 %v4442, %v4527
        %v4532 = vadd.f32 %v4443, %v4529
        %s4533 = scalar_lea.vmem [#allocation15], 960
        %v4534 = vld [vmem:[%s4533] sm:$0xff]
        %v4535 = vld [vmem:[%s4533 + $0x8] sm:$0xff]
        %v4536 = vld [vmem:[%s4533 + $0x10] sm:$0xff]
        %v4537 = vld [vmem:[%s4533 + $0x18] sm:$0xff]
        %v4538 = vunpack.c.l.bf16 %v4534
        %v4539 = vunpack.c.h.bf16 %v4534
        %v4540 = vunpack.c.l.bf16 %v4535
        %v4541 = vunpack.c.h.bf16 %v4535
        %v4542 = vunpack.c.l.bf16 %v4536
        %v4543 = vunpack.c.h.bf16 %v4536
        %v4544 = vunpack.c.l.bf16 %v4537
        %v4545 = vunpack.c.h.bf16 %v4537
        %v4546 = vrot.slane %v1865, 6
        %v4547 = vsel %vm1894, %v4546, 0
        %4549 = vmatprep.subr.mxu0 %v4539
        %4550 = vmatpush1.msra.mxu0 %v4538
        %4551 = vmatprep.subr.mxu0 %v4541
        %4552 = vmatpush1.msra.mxu0 %v4540
        %4553 = vmatprep.subr.mxu0 %v4543
        %4554 = vmatpush1.msra.mxu0 %v4542
        %4555 = vmatprep.subr.mxu0 %v4545
        %4556 = vmatpush1.msra.mxu0 %v4544
        %4557 = vmatprep.subr.mxu0 0.0
        %4558 = vmatpush1.msra.mxu0 0.0
        %4559 = vmatprep.subr.mxu0 0.0
        %4560 = vmatpush1.msra.mxu0 0.0
        %4561 = vmatprep.subr.mxu0 0.0
        %4562 = vmatpush1.msra.mxu0 0.0
        %4563 = vmatprep.subr.mxu0 0.0
        %4564 = vmatpush1.msra.mxu0 0.0
        %4565 = vmatprep.subr.mxu0 0.0
        %4566 = vmatpush1.msra.mxu0 0.0
        %4567 = vmatprep.subr.mxu0 0.0
        %4568 = vmatpush1.msra.mxu0 0.0
        %4569 = vmatprep.subr.mxu0 0.0
        %4570 = vmatpush1.msra.mxu0 0.0
        %4571 = vmatprep.subr.mxu0 0.0
        %4572 = vmatpush1.msra.mxu0 0.0
        %4573 = vmatprep.subr.mxu0 0.0
        %4574 = vmatpush1.msra.mxu0 0.0
        %4575 = vmatprep.subr.mxu0 0.0
        %4576 = vmatpush1.msra.mxu0 0.0
        %4577 = vmatprep.subr.mxu0 0.0
        %4578 = vmatpush1.msra.mxu0 0.0
        %4579 = vmatprep.subr.mxu0 0.0
        %4580 = vmatpush1.msra.mxu0 0.0
        %4581 = vmatprep.subr.mxu0 0.0
        %4582 = vmatpush1.msra.mxu0 0.0
        %4583 = vmatprep.subr.mxu0 0.0
        %4584 = vmatpush1.msra.mxu0 0.0
        %4585 = vmatprep.subr.mxu0 0.0
        %4586 = vmatpush1.msra.mxu0 0.0
        %4587 = vmatprep.subr.mxu0 0.0
        %4588 = vmatpush1.msra.mxu0 0.0
        %4589 = vmatprep.subr.mxu0 0.0
        %4590 = vmatpush1.msra.mxu0 0.0
        %4591 = vmatprep.subr.mxu0 0.0
        %4592 = vmatpush1.msra.mxu0 0.0
        %4593 = vmatprep.subr.mxu0 0.0
        %4594 = vmatpush1.msra.mxu0 0.0
        %4595 = vmatprep.subr.mxu0 0.0
        %4596 = vmatpush1.msra.mxu0 0.0
        %4597 = vmatprep.subr.mxu0 0.0
        %4598 = vmatpush1.msra.mxu0 0.0
        %4599 = vmatprep.subr.mxu0 0.0
        %4600 = vmatpush1.msra.mxu0 0.0
        %4601 = vmatprep.subr.mxu0 0.0
        %4602 = vmatpush1.msra.mxu0 0.0
        %4603 = vmatprep.subr.mxu0 0.0
        %4604 = vmatpush1.msra.mxu0 0.0
        %4605 = vmatprep.subr.mxu0 0.0
        %4606 = vmatpush1.msra.mxu0 0.0
        %4607 = vmatprep.subr.mxu0 0.0
        %4608 = vmatpush1.msra.mxu0 0.0
        %4609 = vmatprep.subr.mxu0 0.0
        %4610 = vmatpush1.msra.mxu0 0.0
        %4611 = vmatprep.subr.mxu0 0.0
        %4612 = vmatpush1.msra.mxu0 0.0
        %4613 = vmatprep.mubr.f32.mxu0 0.0
        %4614 = vmatmul.mubr.f32.gmra.mrb[0].mxu0 %v4547
        %v4615 = vpop.f32.mrb[0].mxu0
        %v4616 = vadd.f32 0.0, %v4615
        %v4617 = vpop.f32.mrb[0].mxu0
        %v4618 = vadd.f32 0.0, %v4617
        %4619 = vdwg.mxu0
        %v4620 = vadd.f32 %v4531, %v4616
        %v4621 = vadd.f32 %v4532, %v4618
        %s4622 = scalar_lea.vmem [#allocation15], 992
        %v4623 = vld [vmem:[%s4622] sm:$0xff]
        %v4624 = vld [vmem:[%s4622 + $0x8] sm:$0xff]
        %v4625 = vld [vmem:[%s4622 + $0x10] sm:$0xff]
        %v4626 = vld [vmem:[%s4622 + $0x18] sm:$0xff]
        %v4627 = vunpack.c.l.bf16 %v4623
        %v4628 = vunpack.c.h.bf16 %v4623
        %v4629 = vunpack.c.l.bf16 %v4624
        %v4630 = vunpack.c.h.bf16 %v4624
        %v4631 = vunpack.c.l.bf16 %v4625
        %v4632 = vunpack.c.h.bf16 %v4625
        %v4633 = vunpack.c.l.bf16 %v4626
        %v4634 = vunpack.c.h.bf16 %v4626
        %v4635 = vrot.slane %v1865, 7
        %v4636 = vsel %vm1894, %v4635, 0
        %4638 = vmatprep.subr.mxu0 %v4628
        %4639 = vmatpush1.msra.mxu0 %v4627
        %4640 = vmatprep.subr.mxu0 %v4630
        %4641 = vmatpush1.msra.mxu0 %v4629
        %4642 = vmatprep.subr.mxu0 %v4632
        %4643 = vmatpush1.msra.mxu0 %v4631
        %4644 = vmatprep.subr.mxu0 %v4634
        %4645 = vmatpush1.msra.mxu0 %v4633
        %4646 = vmatprep.subr.mxu0 0.0
        %4647 = vmatpush1.msra.mxu0 0.0
        %4648 = vmatprep.subr.mxu0 0.0
        %4649 = vmatpush1.msra.mxu0 0.0
        %4650 = vmatprep.subr.mxu0 0.0
        %4651 = vmatpush1.msra.mxu0 0.0
        %4652 = vmatprep.subr.mxu0 0.0
        %4653 = vmatpush1.msra.mxu0 0.0
        %4654 = vmatprep.subr.mxu0 0.0
        %4655 = vmatpush1.msra.mxu0 0.0
        %4656 = vmatprep.subr.mxu0 0.0
        %4657 = vmatpush1.msra.mxu0 0.0
        %4658 = vmatprep.subr.mxu0 0.0
        %4659 = vmatpush1.msra.mxu0 0.0
        %4660 = vmatprep.subr.mxu0 0.0
        %4661 = vmatpush1.msra.mxu0 0.0
        %4662 = vmatprep.subr.mxu0 0.0
        %4663 = vmatpush1.msra.mxu0 0.0
        %4664 = vmatprep.subr.mxu0 0.0
        %4665 = vmatpush1.msra.mxu0 0.0
        %4666 = vmatprep.subr.mxu0 0.0
        %4667 = vmatpush1.msra.mxu0 0.0
        %4668 = vmatprep.subr.mxu0 0.0
        %4669 = vmatpush1.msra.mxu0 0.0
        %4670 = vmatprep.subr.mxu0 0.0
        %4671 = vmatpush1.msra.mxu0 0.0
        %4672 = vmatprep.subr.mxu0 0.0
        %4673 = vmatpush1.msra.mxu0 0.0
        %4674 = vmatprep.subr.mxu0 0.0
        %4675 = vmatpush1.msra.mxu0 0.0
        %4676 = vmatprep.subr.mxu0 0.0
        %4677 = vmatpush1.msra.mxu0 0.0
        %4678 = vmatprep.subr.mxu0 0.0
        %4679 = vmatpush1.msra.mxu0 0.0
        %4680 = vmatprep.subr.mxu0 0.0
        %4681 = vmatpush1.msra.mxu0 0.0
        %4682 = vmatprep.subr.mxu0 0.0
        %4683 = vmatpush1.msra.mxu0 0.0
        %4684 = vmatprep.subr.mxu0 0.0
        %4685 = vmatpush1.msra.mxu0 0.0
        %4686 = vmatprep.subr.mxu0 0.0
        %4687 = vmatpush1.msra.mxu0 0.0
        %4688 = vmatprep.subr.mxu0 0.0
        %4689 = vmatpush1.msra.mxu0 0.0
        %4690 = vmatprep.subr.mxu0 0.0
        %4691 = vmatpush1.msra.mxu0 0.0
        %4692 = vmatprep.subr.mxu0 0.0
        %4693 = vmatpush1.msra.mxu0 0.0
        %4694 = vmatprep.subr.mxu0 0.0
        %4695 = vmatpush1.msra.mxu0 0.0
        %4696 = vmatprep.subr.mxu0 0.0
        %4697 = vmatpush1.msra.mxu0 0.0
        %4698 = vmatprep.subr.mxu0 0.0
        %4699 = vmatpush1.msra.mxu0 0.0
        %4700 = vmatprep.subr.mxu0 0.0
        %4701 = vmatpush1.msra.mxu0 0.0
        %4702 = vmatprep.mubr.f32.mxu0 0.0
        %4703 = vmatmul.mubr.f32.gmra.mrb[0].mxu0 %v4636
        %v4704 = vpop.f32.mrb[0].mxu0
        %v4705 = vadd.f32 0.0, %v4704
        %v4706 = vpop.f32.mrb[0].mxu0
        %v4707 = vadd.f32 0.0, %v4706
        %4708 = vdwg.mxu0
        %v4709 = vadd.f32 %v4620, %v4705
        %v4710 = vadd.f32 %v4621, %v4707
        %s4711 = scalar_lea.vmem [#allocation15], 1024
        %v4712 = vld [vmem:[%s4711] sm:$0xff]
        %v4713 = vld [vmem:[%s4711 + $0x8] sm:$0xff]
        %v4714 = vld [vmem:[%s4711 + $0x10] sm:$0xff]
        %v4715 = vld [vmem:[%s4711 + $0x18] sm:$0xff]
        %v4716 = vunpack.c.l.bf16 %v4712
        %v4717 = vunpack.c.h.bf16 %v4712
        %v4718 = vunpack.c.l.bf16 %v4713
        %v4719 = vunpack.c.h.bf16 %v4713
        %v4720 = vunpack.c.l.bf16 %v4714
        %v4721 = vunpack.c.h.bf16 %v4714
        %v4722 = vunpack.c.l.bf16 %v4715
        %v4723 = vunpack.c.h.bf16 %v4715
        %v4725 = vsel %vm1894, %v1866, 0
        %4727 = vmatprep.subr.mxu0 %v4717
        %4728 = vmatpush1.msra.mxu0 %v4716
        %4729 = vmatprep.subr.mxu0 %v4719
        %4730 = vmatpush1.msra.mxu0 %v4718
        %4731 = vmatprep.subr.mxu0 %v4721
        %4732 = vmatpush1.msra.mxu0 %v4720
        %4733 = vmatprep.subr.mxu0 %v4723
        %4734 = vmatpush1.msra.mxu0 %v4722
        %4735 = vmatprep.subr.mxu0 0.0
        %4736 = vmatpush1.msra.mxu0 0.0
        %4737 = vmatprep.subr.mxu0 0.0
        %4738 = vmatpush1.msra.mxu0 0.0
        %4739 = vmatprep.subr.mxu0 0.0
        %4740 = vmatpush1.msra.mxu0 0.0
        %4741 = vmatprep.subr.mxu0 0.0
        %4742 = vmatpush1.msra.mxu0 0.0
        %4743 = vmatprep.subr.mxu0 0.0
        %4744 = vmatpush1.msra.mxu0 0.0
        %4745 = vmatprep.subr.mxu0 0.0
        %4746 = vmatpush1.msra.mxu0 0.0
        %4747 = vmatprep.subr.mxu0 0.0
        %4748 = vmatpush1.msra.mxu0 0.0
        %4749 = vmatprep.subr.mxu0 0.0
        %4750 = vmatpush1.msra.mxu0 0.0
        %4751 = vmatprep.subr.mxu0 0.0
        %4752 = vmatpush1.msra.mxu0 0.0
        %4753 = vmatprep.subr.mxu0 0.0
        %4754 = vmatpush1.msra.mxu0 0.0
        %4755 = vmatprep.subr.mxu0 0.0
        %4756 = vmatpush1.msra.mxu0 0.0
        %4757 = vmatprep.subr.mxu0 0.0
        %4758 = vmatpush1.msra.mxu0 0.0
        %4759 = vmatprep.subr.mxu0 0.0
        %4760 = vmatpush1.msra.mxu0 0.0
        %4761 = vmatprep.subr.mxu0 0.0
        %4762 = vmatpush1.msra.mxu0 0.0
        %4763 = vmatprep.subr.mxu0 0.0
        %4764 = vmatpush1.msra.mxu0 0.0
        %4765 = vmatprep.subr.mxu0 0.0
        %4766 = vmatpush1.msra.mxu0 0.0
        %4767 = vmatprep.subr.mxu0 0.0
        %4768 = vmatpush1.msra.mxu0 0.0
        %4769 = vmatprep.subr.mxu0 0.0
        %4770 = vmatpush1.msra.mxu0 0.0
        %4771 = vmatprep.subr.mxu0 0.0
        %4772 = vmatpush1.msra.mxu0 0.0
        %4773 = vmatprep.subr.mxu0 0.0
        %4774 = vmatpush1.msra.mxu0 0.0
        %4775 = vmatprep.subr.mxu0 0.0
        %4776 = vmatpush1.msra.mxu0 0.0
        %4777 = vmatprep.subr.mxu0 0.0
        %4778 = vmatpush1.msra.mxu0 0.0
        %4779 = vmatprep.subr.mxu0 0.0
        %4780 = vmatpush1.msra.mxu0 0.0
        %4781 = vmatprep.subr.mxu0 0.0
        %4782 = vmatpush1.msra.mxu0 0.0
        %4783 = vmatprep.subr.mxu0 0.0
        %4784 = vmatpush1.msra.mxu0 0.0
        %4785 = vmatprep.subr.mxu0 0.0
        %4786 = vmatpush1.msra.mxu0 0.0
        %4787 = vmatprep.subr.mxu0 0.0
        %4788 = vmatpush1.msra.mxu0 0.0
        %4789 = vmatprep.subr.mxu0 0.0
        %4790 = vmatpush1.msra.mxu0 0.0
        %4791 = vmatprep.mubr.f32.mxu0 0.0
        %4792 = vmatmul.mubr.f32.gmra.mrb[0].mxu0 %v4725
        %v4793 = vpop.f32.mrb[0].mxu0
        %v4794 = vadd.f32 0.0, %v4793
        %v4795 = vpop.f32.mrb[0].mxu0
        %v4796 = vadd.f32 0.0, %v4795
        %4797 = vdwg.mxu0
        %v4798 = vadd.f32 %v4709, %v4794
        %v4799 = vadd.f32 %v4710, %v4796
        %s4800 = scalar_lea.vmem [#allocation15], 1056
        %v4801 = vld [vmem:[%s4800] sm:$0xff]
        %v4802 = vld [vmem:[%s4800 + $0x8] sm:$0xff]
        %v4803 = vld [vmem:[%s4800 + $0x10] sm:$0xff]
        %v4804 = vld [vmem:[%s4800 + $0x18] sm:$0xff]
        %v4805 = vunpack.c.l.bf16 %v4801
        %v4806 = vunpack.c.h.bf16 %v4801
        %v4807 = vunpack.c.l.bf16 %v4802
        %v4808 = vunpack.c.h.bf16 %v4802
        %v4809 = vunpack.c.l.bf16 %v4803
        %v4810 = vunpack.c.h.bf16 %v4803
        %v4811 = vunpack.c.l.bf16 %v4804
        %v4812 = vunpack.c.h.bf16 %v4804
        %v4813 = vrot.slane %v1866, 1
        %v4814 = vsel %vm1894, %v4813, 0
        %4816 = vmatprep.subr.mxu0 %v4806
        %4817 = vmatpush1.msra.mxu0 %v4805
        %4818 = vmatprep.subr.mxu0 %v4808
        %4819 = vmatpush1.msra.mxu0 %v4807
        %4820 = vmatprep.subr.mxu0 %v4810
        %4821 = vmatpush1.msra.mxu0 %v4809
        %4822 = vmatprep.subr.mxu0 %v4812
        %4823 = vmatpush1.msra.mxu0 %v4811
        %4824 = vmatprep.subr.mxu0 0.0
        %4825 = vmatpush1.msra.mxu0 0.0
        %4826 = vmatprep.subr.mxu0 0.0
        %4827 = vmatpush1.msra.mxu0 0.0
        %4828 = vmatprep.subr.mxu0 0.0
        %4829 = vmatpush1.msra.mxu0 0.0
        %4830 = vmatprep.subr.mxu0 0.0
        %4831 = vmatpush1.msra.mxu0 0.0
        %4832 = vmatprep.subr.mxu0 0.0
        %4833 = vmatpush1.msra.mxu0 0.0
        %4834 = vmatprep.subr.mxu0 0.0
        %4835 = vmatpush1.msra.mxu0 0.0
        %4836 = vmatprep.subr.mxu0 0.0
        %4837 = vmatpush1.msra.mxu0 0.0
        %4838 = vmatprep.subr.mxu0 0.0
        %4839 = vmatpush1.msra.mxu0 0.0
        %4840 = vmatprep.subr.mxu0 0.0
        %4841 = vmatpush1.msra.mxu0 0.0
        %4842 = vmatprep.subr.mxu0 0.0
        %4843 = vmatpush1.msra.mxu0 0.0
        %4844 = vmatprep.subr.mxu0 0.0
        %4845 = vmatpush1.msra.mxu0 0.0
        %4846 = vmatprep.subr.mxu0 0.0
        %4847 = vmatpush1.msra.mxu0 0.0
        %4848 = vmatprep.subr.mxu0 0.0
        %4849 = vmatpush1.msra.mxu0 0.0
        %4850 = vmatprep.subr.mxu0 0.0
        %4851 = vmatpush1.msra.mxu0 0.0
        %4852 = vmatprep.subr.mxu0 0.0
        %4853 = vmatpush1.msra.mxu0 0.0
        %4854 = vmatprep.subr.mxu0 0.0
        %4855 = vmatpush1.msra.mxu0 0.0
        %4856 = vmatprep.subr.mxu0 0.0
        %4857 = vmatpush1.msra.mxu0 0.0
        %4858 = vmatprep.subr.mxu0 0.0
        %4859 = vmatpush1.msra.mxu0 0.0
        %4860 = vmatprep.subr.mxu0 0.0
        %4861 = vmatpush1.msra.mxu0 0.0
        %4862 = vmatprep.subr.mxu0 0.0
        %4863 = vmatpush1.msra.mxu0 0.0
        %4864 = vmatprep.subr.mxu0 0.0
        %4865 = vmatpush1.msra.mxu0 0.0
        %4866 = vmatprep.subr.mxu0 0.0
        %4867 = vmatpush1.msra.mxu0 0.0
        %4868 = vmatprep.subr.mxu0 0.0
        %4869 = vmatpush1.msra.mxu0 0.0
        %4870 = vmatprep.subr.mxu0 0.0
        %4871 = vmatpush1.msra.mxu0 0.0
        %4872 = vmatprep.subr.mxu0 0.0
        %4873 = vmatpush1.msra.mxu0 0.0
        %4874 = vmatprep.subr.mxu0 0.0
        %4875 = vmatpush1.msra.mxu0 0.0
        %4876 = vmatprep.subr.mxu0 0.0
        %4877 = vmatpush1.msra.mxu0 0.0
        %4878 = vmatprep.subr.mxu0 0.0
        %4879 = vmatpush1.msra.mxu0 0.0
        %4880 = vmatprep.mubr.f32.mxu0 0.0
        %4881 = vmatmul.mubr.f32.gmra.mrb[0].mxu0 %v4814
        %v4882 = vpop.f32.mrb[0].mxu0
        %v4883 = vadd.f32 0.0, %v4882
        %v4884 = vpop.f32.mrb[0].mxu0
        %v4885 = vadd.f32 0.0, %v4884
        %4886 = vdwg.mxu0
        %v4887 = vadd.f32 %v4798, %v4883
        %v4888 = vadd.f32 %v4799, %v4885
        %v4889 = vld [vmem:[#allocation17] sm:$0x3]
        %v4891 = vlaneseq
        %v4892 = vshrl.u32 %v4891, 7
        %v4893 = vsub.s32 0, %v4892
        %v4894 = vrot.slane %v4889, %v4893
        %v4895 = vlaneseq
        %v4896 = vshrl.u32 %v4895, 7
        %v4897 = vsub.s32 1, %v4896
        %v4898 = vrot.slane %v4889, %v4897
        %v4901 = vadd.f32 %v4887, %v4894
        %v4902 = vadd.f32 %v4888, %v4898
        %v4903 = vmax.f32 %v4901, 0.0
        %v4904 = vmax.f32 %v4902, 0.0
        %v4905 = vld [vmem:[%s12] sm:$0xff]
        %v4906 = vld [vmem:[%s12 + $0x8] sm:$0xff]
        %v4907 = vld [vmem:[%s12 + $0x10] sm:$0xff]
        %v4908 = vld [vmem:[%s12 + $0x18] sm:$0xff]
        %v4909 = vld [vmem:[%s12 + $0x20] sm:$0xff]
        %v4910 = vld [vmem:[%s12 + $0x28] sm:$0xff]
        %v4911 = vld [vmem:[%s12 + $0x30] sm:$0xff]
        %v4912 = vld [vmem:[%s12 + $0x38] sm:$0xff]
        %v4913 = vld [vmem:[%s12 + $0x40] sm:$0xff]
        %v4914 = vld [vmem:[%s12 + $0x48] sm:$0xff]
        %v4915 = vld [vmem:[%s12 + $0x50] sm:$0xff]
        %v4916 = vld [vmem:[%s12 + $0x58] sm:$0xff]
        %v4917 = vld [vmem:[%s12 + $0x60] sm:$0xff]
        %v4918 = vld [vmem:[%s12 + $0x68] sm:$0xff]
        %v4919 = vld [vmem:[%s12 + $0x70] sm:$0xff]
        %v4920 = vld [vmem:[%s12 + $0x78] sm:$0xff]
        %v4921 = vld [vmem:[%s12 + $0x80] sm:$0xff]
        %v4922 = vld [vmem:[%s12 + $0x88] sm:$0xff]
        %v4923 = vld [vmem:[%s12 + $0x90] sm:$0xff]
        %v4924 = vld [vmem:[%s12 + $0x98] sm:$0xff]
        %v4925 = vld [vmem:[%s12 + $0xa0] sm:$0xff]
        %v4926 = vld [vmem:[%s12 + $0xa8] sm:$0xff]
        %v4927 = vld [vmem:[%s12 + $0xb0] sm:$0xff]
        %v4928 = vld [vmem:[%s12 + $0xb8] sm:$0xff]
        %v4929 = vld [vmem:[%s12 + $0xc0] sm:$0xff]
        %v4930 = vld [vmem:[%s12 + $0xc8] sm:$0xff]
        %v4931 = vld [vmem:[%s12 + $0xd0] sm:$0xff]
        %v4932 = vld [vmem:[%s12 + $0xd8] sm:$0xff]
        %v4933 = vld [vmem:[%s12 + $0xe0] sm:$0xff]
        %v4934 = vld [vmem:[%s12 + $0xe8] sm:$0xff]
        %v4935 = vld [vmem:[%s12 + $0xf0] sm:$0xff]
        %v4936 = vld [vmem:[%s12 + $0xf8] sm:$0xff]
        %v4937 = vld [vmem:[#allocation18] sm:$0x1]
        %4938 = vmatprep.subr.mxu0 0.0
        %4939 = vmatpush1.msra.mxu0 %v4905
        %4940 = vmatprep.subr.mxu0 0.0
        %4941 = vmatpush1.msra.mxu0 %v4906
        %4942 = vmatprep.subr.mxu0 0.0
        %4943 = vmatpush1.msra.mxu0 %v4907
        %4944 = vmatprep.subr.mxu0 0.0
        %4945 = vmatpush1.msra.mxu0 %v4908
        %4946 = vmatprep.subr.mxu0 0.0
        %4947 = vmatpush1.msra.mxu0 %v4909
        %4948 = vmatprep.subr.mxu0 0.0
        %4949 = vmatpush1.msra.mxu0 %v4910
        %4950 = vmatprep.subr.mxu0 0.0
        %4951 = vmatpush1.msra.mxu0 %v4911
        %4952 = vmatprep.subr.mxu0 0.0
        %4953 = vmatpush1.msra.mxu0 %v4912
        %4954 = vmatprep.subr.mxu0 0.0
        %4955 = vmatpush1.msra.mxu0 %v4913
        %4956 = vmatprep.subr.mxu0 0.0
        %4957 = vmatpush1.msra.mxu0 %v4914
        %4958 = vmatprep.subr.mxu0 0.0
        %4959 = vmatpush1.msra.mxu0 %v4915
        %4960 = vmatprep.subr.mxu0 0.0
        %4961 = vmatpush1.msra.mxu0 %v4916
        %4962 = vmatprep.subr.mxu0 0.0
        %4963 = vmatpush1.msra.mxu0 %v4917
        %4964 = vmatprep.subr.mxu0 0.0
        %4965 = vmatpush1.msra.mxu0 %v4918
        %4966 = vmatprep.subr.mxu0 0.0
        %4967 = vmatpush1.msra.mxu0 %v4919
        %4968 = vmatprep.subr.mxu0 0.0
        %4969 = vmatpush1.msra.mxu0 %v4920
        %4970 = vmatprep.subr.mxu0 0.0
        %4971 = vmatpush1.msra.mxu0 %v4921
        %4972 = vmatprep.subr.mxu0 0.0
        %4973 = vmatpush1.msra.mxu0 %v4922
        %4974 = vmatprep.subr.mxu0 0.0
        %4975 = vmatpush1.msra.mxu0 %v4923
        %4976 = vmatprep.subr.mxu0 0.0
        %4977 = vmatpush1.msra.mxu0 %v4924
        %4978 = vmatprep.subr.mxu0 0.0
        %4979 = vmatpush1.msra.mxu0 %v4925
        %4980 = vmatprep.subr.mxu0 0.0
        %4981 = vmatpush1.msra.mxu0 %v4926
        %4982 = vmatprep.subr.mxu0 0.0
        %4983 = vmatpush1.msra.mxu0 %v4927
        %4984 = vmatprep.subr.mxu0 0.0
        %4985 = vmatpush1.msra.mxu0 %v4928
        %4986 = vmatprep.subr.mxu0 0.0
        %4987 = vmatpush1.msra.mxu0 %v4929
        %4988 = vmatprep.subr.mxu0 0.0
        %4989 = vmatpush1.msra.mxu0 %v4930
        %4990 = vmatprep.subr.mxu0 0.0
        %4991 = vmatpush1.msra.mxu0 %v4931
        %4992 = vmatprep.subr.mxu0 0.0
        %4993 = vmatpush1.msra.mxu0 %v4932
        %4994 = vmatprep.subr.mxu0 0.0
        %4995 = vmatpush1.msra.mxu0 %v4933
        %4996 = vmatprep.subr.mxu0 0.0
        %4997 = vmatpush1.msra.mxu0 %v4934
        %4998 = vmatprep.subr.mxu0 0.0
        %4999 = vmatpush1.msra.mxu0 %v4935
        %5000 = vmatprep.subr.mxu0 0.0
        %5001 = vmatpush1.msra.mxu0 %v4936
        %5002 = vmatprep.mubr.f32.mxu0 %v4904
        %5003 = vmatmul.mubr.f32.gmra.mrb[0].mxu0 %v4903
        %v5004 = vpop.f32.mrb[0].mxu0
        %v5005 = vadd.f32 %v4937, %v5004
        %v5006 = vpop.f32.mrb[0].mxu0
        %5007 = vdwg.mxu0
        %vm5008 = vcmask 270336
        %5009 = vst.msk [vmem:[%s593] sm:$0x1] %vm5008, %v5005
        %s5010 = sand.u32 %s341, 1
        %s5011 = scalar_lea.sflag [#allocation5], %s5010
        %s5012 = sand.u32 %s341, 1
        %s5013 = scalar_lea.vmem [#allocation20], %s5012
        // Predicated region
        $region124: #{forward.1} parent=75 // pred_check
          %p5014 = pneg %p351
        $region125: #{forward.1} parent=75 // pred_check_branch
          %5016 = sbr.rel (%p5014) target = $region127
        $region126: #{forward.1} parent=75 // pred_region
          %s5018 = ssub.s32 16, 16
          %5019 = vsyncadd %s5011, %s5018
          %s5020 = smul.addr %s34, 16
          %s5021 = scalar_lea.hbm %s14, %s5020
          %s5023 = sshll.u32 %s5013, 4
          %s5024 = int_to_ptr.vmem [resolvable:$true] %s5023
          %5026 = dma.vmem_to_hbm [thread:$0]  %s5024, 16, %s5021, %s5011
        $region127: #{forward.1} parent=75 // pred_fallthru
          _
      $region76: #{forward.1} parent=5 // pred_fallthru
        _
      %p5027 = scmp.le.s32.totalorder 2, %s29
      // Predicated region
      $region128: #{forward.1} parent=5 // pred_check
        %p5028 = pneg %p5027
      $region129: #{forward.1} parent=5 // pred_check_branch
        %5030 = sbr.rel (%p5028) target = $region131
      $region130: #{forward.1} parent=5 // pred_region
        %s5031 = ssub.s32 %s29, 2
        // Predicated region
        $region132: #{forward.1} parent=130 // pred_check
          %p5032 = pneg %p357
        $region133: #{forward.1} parent=130 // pred_check_branch
          %5034 = sbr.rel (%p5032) target = $region135
        $region134: #{forward.1} parent=130 // pred_region
          %s5035 = sand.u32 %s342, 1
          %s5036 = scalar_lea.sflag [#allocation5], %s5035
          %s5037 = sand.u32 %s342, 1
          %s5038 = scalar_lea.vmem [#allocation20], %s5037
          %5039 = dma.done %s5036, 16
        $region135: #{forward.1} parent=130 // pred_fallthru
          _
      $region131: #{forward.1} parent=5 // pred_fallthru
        _
    $region6: #{forward.1} parent=1 // loop_footer
      %s33 = sadd.s32 1, %s29
    $region7: #{forward.1} parent=1 // loop_footer_branch
      %28 = sbr.rel target = $region3
    $region8: #{forward.1} parent=1 // loop_exit
      _
    %5040 = vsyncpa [#allocation4], 1
    %s5041 = scalar_lea.sflag [#allocation4], 1
    %5042 = vsyncpa %s5041, 1
    %5043 = vsyncpa [#allocation7], 1
    %5044 = vsyncpa [#allocation10], 1
    %5045 = vsyncpa [#allocation13], 1
    %5046 = vsyncpa [#allocation16], 1
    %5047 = vsyncpa [#allocation19], 1
    %5048 = vsyncpa [#allocation5], 1
    %s5049 = scalar_lea.sflag [#allocation5], 1
    %5050 = vsyncpa %s5049, 1

</llo_original>
